<compile_context>
chip_gen: v6e
topology: v6e:2x2x1
jax: 0.10.0
libtpu: 0.0.40
codegen_flags: <defaults>
</compile_context>

<pallas_src>
import functools

import jax
import jax.numpy as jnp
from jax import lax
from jax.experimental import pallas as pl
from jax.experimental.pallas import tpu as pltpu


def _convblock_kernel(x_ref, w_ref, beta_ref, o_ref, sum_ref, ssq_ref,
                      *, K, H, W, relu, eps, m_total):
    """x_ref:   (1, H+2p, W+2p, C)  bf16   (zero-padded NHWC tile, one batch elem)
       w_ref:   (K*K, C, O_pad)     bf16   (per-tap 1x1 weights)
       beta_ref:(1, O_pad)          f32
       o_ref:   (H*W, O_pad)        f32    (lane-dense output tile)
       sum/ssq: (1, O_pad)          f32    VMEM scratch, persist across grid."""
    p = pl.program_id(0)   # phase: 0 = conv + stats accumulation, 1 = normalize
    b = pl.program_id(1)   # batch tile

    @pl.when((p == 0) & (b == 0))
    def _init():
        sum_ref[...] = jnp.zeros_like(sum_ref)
        ssq_ref[...] = jnp.zeros_like(ssq_ref)

    C = x_ref.shape[-1]
    rows = H * W
    o_pad = o_ref.shape[-1]

    # Conv as K*K shifted 1x1 matmuls, f32 accumulation on the MXU.
    x_full = x_ref[0]                                        # (Hp, Wp, C) bf16
    acc = jnp.zeros((rows, o_pad), jnp.float32)
    for t in range(K * K):
        kh, kw = t // K, t % K
        xs = x_full[kh:kh + H, kw:kw + W, :].reshape(rows, C)  # (H*W, C) bf16
        acc = acc + jnp.dot(xs, w_ref[t], preferred_element_type=jnp.float32)

    @pl.when(p == 0)
    def _accumulate_stats():
        # Single fused pass: per-channel sum and sum-of-squares.
        sum_ref[...] += jnp.sum(acc, axis=0, keepdims=True)
        ssq_ref[...] += jnp.sum(acc * acc, axis=0, keepdims=True)
        o_ref[...] = acc.astype(o_ref.dtype)   # raw conv; overwritten in phase 1

    @pl.when((p == 1) & (b == 0))
    def _finalize_stats():
        inv_m = 1.0 / m_total
        mean = sum_ref[...] * inv_m
        var = ssq_ref[...] * inv_m - mean * mean   # biased (training-mode) variance
        sum_ref[...] = mean                        # repurpose scratch: mean
        ssq_ref[...] = lax.rsqrt(var + eps)        # repurpose scratch: rstd

    @pl.when(p == 1)
    def _normalize():
        y = (acc - sum_ref[...]) * ssq_ref[...] + beta_ref[...]
        if relu:
            y = jnp.maximum(y, 0.0)
        o_ref[...] = y.astype(o_ref.dtype)


@functools.partial(jax.jit, static_argnames=("kernel_size", "relu", "eps"))
def conv_block_forward(x, weight, beta, *, kernel_size: int, relu: bool = True,
                       eps: float = 1e-5):
    """x: (N, C, H, W); weight: (O, C, K, K); beta: (O,).  Returns (N, O, H, W)."""
    assert kernel_size in (1, 3)
    N, C, H, W = x.shape
    O = weight.shape[0]
    K = kernel_size
    pad = 1 if K == 3 else 0
    Hp, Wp = H + 2 * pad, W + 2 * pad
    M = N * H * W
    O_pad = ((O + 127) // 128) * 128       # lane-dense out-channel dim

    # Output tile sublane dim must be (8,128)-tileable when N > 1.
    assert N == 1 or (H * W) % 8 == 0, "H*W must be a multiple of 8 for N>1"

    # --- host-side prep (one transpose in / one out; no im2col inflation) ----
    x_nhwc = jnp.transpose(x, (0, 2, 3, 1)).astype(jnp.bfloat16)    # (N,H,W,C)
    if pad:
        x_nhwc = jnp.pad(x_nhwc, ((0, 0), (pad, pad), (pad, pad), (0, 0)))

    # (O, C, K, K) -> (K*K taps, C, O_pad), bf16
    w_taps = jnp.transpose(weight.astype(jnp.float32), (2, 3, 1, 0)).reshape(K * K, C, O)
    w_taps = jnp.pad(w_taps, ((0, 0), (0, 0), (0, O_pad - O))).astype(jnp.bfloat16)

    beta_p = jnp.pad(beta.astype(jnp.float32), (0, O_pad - O)).reshape(1, O_pad)

    kernel = functools.partial(_convblock_kernel, K=K, H=H, W=W,
                               relu=relu, eps=eps, m_total=float(M))

    bytes_acc = (2 * x_nhwc.size * 2            # x read in both phases (bf16)
                 + 2 * w_taps.size * 2          # weights (bf16)
                 + beta_p.size * 4
                 + 2 * M * O_pad * 4)           # output written in both phases
    cost = pl.CostEstimate(flops=2 * 2 * M * C * K * K * O_pad,
                           transcendentals=0,
                           bytes_accessed=bytes_acc)

    out2d = pl.pallas_call(
        kernel,
        out_shape=jax.ShapeDtypeStruct((M, O_pad), jnp.float32),
        grid=(2, N),
        in_specs=[
            pl.BlockSpec((1, Hp, Wp, C), lambda p, b: (b, 0, 0, 0)),
            pl.BlockSpec((K * K, C, O_pad), lambda p, b: (0, 0, 0)),
            pl.BlockSpec((1, O_pad), lambda p, b: (0, 0)),
        ],
        out_specs=pl.BlockSpec((H * W, O_pad), lambda p, b: (b, 0)),
        scratch_shapes=[pltpu.VMEM((1, O_pad), jnp.float32),   # sum  -> mean
                        pltpu.VMEM((1, O_pad), jnp.float32)],  # ssq  -> rstd
        compiler_params=pltpu.CompilerParams(
            dimension_semantics=("arbitrary", "arbitrary")),
        cost_estimate=cost,
    )(x_nhwc, w_taps, beta_p)

    # (M, O_pad) -> (N, H, W, O) -> NCHW (host interface matches the PyTorch module)
    out = out2d.reshape(N, H, W, O_pad)[..., :O]
    return jnp.transpose(out, (0, 3, 1, 2))


def init_params(key, in_channels: int, out_channels: int, kernel_size: int):
    """Mirror PyTorch __init__: kaiming_normal_(fan_out, relu) weight, beta=0."""
    fan_out = out_channels * kernel_size * kernel_size
    std = (2.0 / fan_out) ** 0.5
    weight = std * jax.random.normal(
        key, (out_channels, in_channels, kernel_size, kernel_size), dtype=jnp.float32)
    beta = jnp.zeros((out_channels,), dtype=jnp.float32)
    return weight, beta


def reference_forward(x, weight, beta, *, kernel_size: int, relu: bool = True,
                      eps: float = 1e-5):
    """Pure-JAX reference (conv + batch-stat BN).  Inputs are bf16-rounded to
    match the kernel's bf16 MXU operands (accumulation stays f32)."""
    pad = 1 if kernel_size == 3 else 0
    xr = x.astype(jnp.bfloat16).astype(jnp.float32)
    wr = weight.astype(jnp.bfloat16).astype(jnp.float32)
    y = lax.conv_general_dilated(
        xr, wr, window_strides=(1, 1), padding=[(pad, pad), (pad, pad)],
        dimension_numbers=("NCHW", "OIHW", "NCHW"))
    mean = jnp.mean(y, axis=(0, 2, 3), keepdims=True)
    var = jnp.mean((y - mean) ** 2, axis=(0, 2, 3), keepdims=True)
    y = (y - mean) * lax.rsqrt(var + eps) + beta.reshape(1, -1, 1, 1)
    return jnp.maximum(y, 0.0) if relu else y


if __name__ == "__main__":
    key = jax.random.PRNGKey(0)
    k_x, k_w, k_b = jax.random.split(key, 3)

    # Small shapes consistent with the module: batch=2, C_in=4, C_out=8, 16x16 board.
    N, C_in, C_out, H, W = 2, 4, 8, 16, 16
    x = jax.random.normal(k_x, (N, C_in, H, W), dtype=jnp.float32)

    for kernel_size, relu in ((3, True), (1, False)):
        weight, _ = init_params(k_w, C_in, C_out, kernel_size)
        beta = 0.1 * jax.random.normal(k_b, (C_out,), dtype=jnp.float32)

        out = conv_block_forward(x, weight, beta, kernel_size=kernel_size, relu=relu)
        out = jax.block_until_ready(out)

        ref = reference_forward(x, weight, beta, kernel_size=kernel_size, relu=relu)
        assert out.shape == (N, C_out, H, W)
        assert jnp.allclose(out, ref, atol=2e-3, rtol=2e-3), \
            f"mismatch vs reference (k={kernel_size}, relu={relu})"

    print("KERNEL_OK")
</pallas_src>

<mosaic_0001>
module attributes {stable_mosaic.version = 11 : i64} {
  func.func @_convblock_kernel(%arg0: i32, %arg1: i32, %arg2: memref<1x18x18x4xbf16, #tpu.memory_space<vmem>>, %arg3: memref<9x4x128xbf16, #tpu.memory_space<vmem>>, %arg4: memref<1x128xf32, #tpu.memory_space<vmem>>, %arg5: memref<256x128xf32, #tpu.memory_space<vmem>>, %arg6: memref<1x128xf32, #tpu.memory_space<vmem>>, %arg7: memref<1x128xf32, #tpu.memory_space<vmem>>) attributes {dimension_semantics = [#tpu.dimension_semantics<arbitrary>, #tpu.dimension_semantics<arbitrary>], iteration_bounds = array<i64: 2, 2>, scalar_prefetch = 0 : i64, scratch_operands = 2 : i64, tpu.core_type = #tpu.core_type<tc>, window_params = [{transform_indices = @transform_0, window_bounds = array<i64: 1, 18, 18, 4>}, {pipeline_mode = #tpu.pipeline_mode<synchronous>, transform_indices = @transform_1, window_bounds = array<i64: 9, 4, 128>}, {pipeline_mode = #tpu.pipeline_mode<synchronous>, transform_indices = @transform_2, window_bounds = array<i64: 1, 128>}, {transform_indices = @transform_3, window_bounds = array<i64: 256, 128>}]} {
    %c0_i32 = arith.constant 0 : i32
    %0 = arith.cmpi eq, %arg0, %c0_i32 : i32
    %c0_i32_0 = arith.constant 0 : i32
    %1 = arith.cmpi eq, %arg1, %c0_i32_0 : i32
    %2 = arith.andi %0, %1 : i1
    %3 = arith.extui %2 : i1 to i32
    %c0_i32_1 = arith.constant 0 : i32
    %4 = arith.cmpi ne, %3, %c0_i32_1 : i32
    scf.if %4 {
      %cst_39 = arith.constant 0.000000e+00 : f32
      %73 = vector.broadcast %cst_39 : f32 to vector<1x128xf32>
      %c0_40 = arith.constant 0 : index
      %c0_41 = arith.constant 0 : index
      %74 = vector.load %arg6[%c0_40, %c0_41] : memref<1x128xf32, #tpu.memory_space<vmem>>, vector<1x128xf32>
      tpu.vector_store %arg6[%c0_40, %c0_41], %73 {strides = array<i32>} : memref<1x128xf32, #tpu.memory_space<vmem>>, vector<1x128xf32>,
      %cst_42 = arith.constant 0.000000e+00 : f32
      %75 = vector.broadcast %cst_42 : f32 to vector<1x128xf32>
      %c0_43 = arith.constant 0 : index
      %c0_44 = arith.constant 0 : index
      %76 = vector.load %arg7[%c0_43, %c0_44] : memref<1x128xf32, #tpu.memory_space<vmem>>, vector<1x128xf32>
      tpu.vector_store %arg7[%c0_43, %c0_44], %75 {strides = array<i32>} : memref<1x128xf32, #tpu.memory_space<vmem>>, vector<1x128xf32>,
    } else {
    }
    %c0 = arith.constant 0 : index
    %c0_2 = arith.constant 0 : index
    %c0_3 = arith.constant 0 : index
    %c0_4 = arith.constant 0 : index
    %5 = vector.load %arg2[%c0, %c0_2, %c0_3, %c0_4] : memref<1x18x18x4xbf16, #tpu.memory_space<vmem>>, vector<1x18x18x4xbf16>
    %6 = vector.shape_cast %5 : vector<1x18x18x4xbf16> to vector<18x18x4xbf16>
    %cst = arith.constant 0.000000e+00 : f32
    %7 = vector.broadcast %cst : f32 to vector<256x128xf32>
    %8 = vector.extract_strided_slice %6 {offsets = [0, 0, 0], sizes = [16, 16, 4], strides = [1, 1, 1]} : vector<18x18x4xbf16> to vector<16x16x4xbf16>
    %9 = vector.shape_cast %8 : vector<16x16x4xbf16> to vector<256x4xbf16>
    %c0_5 = arith.constant 0 : index
    %c0_6 = arith.constant 0 : index
    %c0_7 = arith.constant 0 : index
    %10 = vector.load %arg3[%c0_5, %c0_6, %c0_7] : memref<9x4x128xbf16, #tpu.memory_space<vmem>>, vector<1x4x128xbf16>
    %11 = vector.shape_cast %10 : vector<1x4x128xbf16> to vector<4x128xbf16>
    %cst_8 = arith.constant dense<0.000000e+00> : vector<256x128xf32>
    %12 = tpu.matmul %9, %11, %cst_8 {dimension_numbers = #tpu.dot_dimension_numbers<[1], [0], [0], [1], [0, 0, 1, 1], [], []>} : vector<256x4xbf16>, vector<4x128xbf16>, vector<256x128xf32> -> vector<256x128xf32>
    %13 = arith.addf %7, %12 : vector<256x128xf32>
    %14 = vector.extract_strided_slice %6 {offsets = [0, 1, 0], sizes = [16, 16, 4], strides = [1, 1, 1]} : vector<18x18x4xbf16> to vector<16x16x4xbf16>
    %15 = vector.shape_cast %14 : vector<16x16x4xbf16> to vector<256x4xbf16>
    %c1 = arith.constant 1 : index
    %c0_9 = arith.constant 0 : index
    %c0_10 = arith.constant 0 : index
    %16 = vector.load %arg3[%c1, %c0_9, %c0_10] : memref<9x4x128xbf16, #tpu.memory_space<vmem>>, vector<1x4x128xbf16>
    %17 = vector.shape_cast %16 : vector<1x4x128xbf16> to vector<4x128xbf16>
    %cst_11 = arith.constant dense<0.000000e+00> : vector<256x128xf32>
    %18 = tpu.matmul %15, %17, %cst_11 {dimension_numbers = #tpu.dot_dimension_numbers<[1], [0], [0], [1], [0, 0, 1, 1], [], []>} : vector<256x4xbf16>, vector<4x128xbf16>, vector<256x128xf32> -> vector<256x128xf32>
    %19 = arith.addf %13, %18 : vector<256x128xf32>
    %20 = vector.extract_strided_slice %6 {offsets = [0, 2, 0], sizes = [16, 16, 4], strides = [1, 1, 1]} : vector<18x18x4xbf16> to vector<16x16x4xbf16>
    %21 = vector.shape_cast %20 : vector<16x16x4xbf16> to vector<256x4xbf16>
    %c2 = arith.constant 2 : index
    %c0_12 = arith.constant 0 : index
    %c0_13 = arith.constant 0 : index
    %22 = vector.load %arg3[%c2, %c0_12, %c0_13] : memref<9x4x128xbf16, #tpu.memory_space<vmem>>, vector<1x4x128xbf16>
    %23 = vector.shape_cast %22 : vector<1x4x128xbf16> to vector<4x128xbf16>
    %cst_14 = arith.constant dense<0.000000e+00> : vector<256x128xf32>
    %24 = tpu.matmul %21, %23, %cst_14 {dimension_numbers = #tpu.dot_dimension_numbers<[1], [0], [0], [1], [0, 0, 1, 1], [], []>} : vector<256x4xbf16>, vector<4x128xbf16>, vector<256x128xf32> -> vector<256x128xf32>
    %25 = arith.addf %19, %24 : vector<256x128xf32>
    %26 = vector.extract_strided_slice %6 {offsets = [1, 0, 0], sizes = [16, 16, 4], strides = [1, 1, 1]} : vector<18x18x4xbf16> to vector<16x16x4xbf16>
    %27 = vector.shape_cast %26 : vector<16x16x4xbf16> to vector<256x4xbf16>
    %c3 = arith.constant 3 : index
    %c0_15 = arith.constant 0 : index
    %c0_16 = arith.constant 0 : index
    %28 = vector.load %arg3[%c3, %c0_15, %c0_16] : memref<9x4x128xbf16, #tpu.memory_space<vmem>>, vector<1x4x128xbf16>
    %29 = vector.shape_cast %28 : vector<1x4x128xbf16> to vector<4x128xbf16>
    %cst_17 = arith.constant dense<0.000000e+00> : vector<256x128xf32>
    %30 = tpu.matmul %27, %29, %cst_17 {dimension_numbers = #tpu.dot_dimension_numbers<[1], [0], [0], [1], [0, 0, 1, 1], [], []>} : vector<256x4xbf16>, vector<4x128xbf16>, vector<256x128xf32> -> vector<256x128xf32>
    %31 = arith.addf %25, %30 : vector<256x128xf32>
    %32 = vector.extract_strided_slice %6 {offsets = [1, 1, 0], sizes = [16, 16, 4], strides = [1, 1, 1]} : vector<18x18x4xbf16> to vector<16x16x4xbf16>
    %33 = vector.shape_cast %32 : vector<16x16x4xbf16> to vector<256x4xbf16>
    %c4 = arith.constant 4 : index
    %c0_18 = arith.constant 0 : index
    %c0_19 = arith.constant 0 : index
    %34 = vector.load %arg3[%c4, %c0_18, %c0_19] : memref<9x4x128xbf16, #tpu.memory_space<vmem>>, vector<1x4x128xbf16>
    %35 = vector.shape_cast %34 : vector<1x4x128xbf16> to vector<4x128xbf16>
    %cst_20 = arith.constant dense<0.000000e+00> : vector<256x128xf32>
    %36 = tpu.matmul %33, %35, %cst_20 {dimension_numbers = #tpu.dot_dimension_numbers<[1], [0], [0], [1], [0, 0, 1, 1], [], []>} : vector<256x4xbf16>, vector<4x128xbf16>, vector<256x128xf32> -> vector<256x128xf32>
    %37 = arith.addf %31, %36 : vector<256x128xf32>
    %38 = vector.extract_strided_slice %6 {offsets = [1, 2, 0], sizes = [16, 16, 4], strides = [1, 1, 1]} : vector<18x18x4xbf16> to vector<16x16x4xbf16>
    %39 = vector.shape_cast %38 : vector<16x16x4xbf16> to vector<256x4xbf16>
    %c5 = arith.constant 5 : index
    %c0_21 = arith.constant 0 : index
    %c0_22 = arith.constant 0 : index
    %40 = vector.load %arg3[%c5, %c0_21, %c0_22] : memref<9x4x128xbf16, #tpu.memory_space<vmem>>, vector<1x4x128xbf16>
    %41 = vector.shape_cast %40 : vector<1x4x128xbf16> to vector<4x128xbf16>
    %cst_23 = arith.constant dense<0.000000e+00> : vector<256x128xf32>
    %42 = tpu.matmul %39, %41, %cst_23 {dimension_numbers = #tpu.dot_dimension_numbers<[1], [0], [0], [1], [0, 0, 1, 1], [], []>} : vector<256x4xbf16>, vector<4x128xbf16>, vector<256x128xf32> -> vector<256x128xf32>
    %43 = arith.addf %37, %42 : vector<256x128xf32>
    %44 = vector.extract_strided_slice %6 {offsets = [2, 0, 0], sizes = [16, 16, 4], strides = [1, 1, 1]} : vector<18x18x4xbf16> to vector<16x16x4xbf16>
    %45 = vector.shape_cast %44 : vector<16x16x4xbf16> to vector<256x4xbf16>
    %c6 = arith.constant 6 : index
    %c0_24 = arith.constant 0 : index
    %c0_25 = arith.constant 0 : index
    %46 = vector.load %arg3[%c6, %c0_24, %c0_25] : memref<9x4x128xbf16, #tpu.memory_space<vmem>>, vector<1x4x128xbf16>
    %47 = vector.shape_cast %46 : vector<1x4x128xbf16> to vector<4x128xbf16>
    %cst_26 = arith.constant dense<0.000000e+00> : vector<256x128xf32>
    %48 = tpu.matmul %45, %47, %cst_26 {dimension_numbers = #tpu.dot_dimension_numbers<[1], [0], [0], [1], [0, 0, 1, 1], [], []>} : vector<256x4xbf16>, vector<4x128xbf16>, vector<256x128xf32> -> vector<256x128xf32>
    %49 = arith.addf %43, %48 : vector<256x128xf32>
    %50 = vector.extract_strided_slice %6 {offsets = [2, 1, 0], sizes = [16, 16, 4], strides = [1, 1, 1]} : vector<18x18x4xbf16> to vector<16x16x4xbf16>
    %51 = vector.shape_cast %50 : vector<16x16x4xbf16> to vector<256x4xbf16>
    %c7 = arith.constant 7 : index
    %c0_27 = arith.constant 0 : index
    %c0_28 = arith.constant 0 : index
    %52 = vector.load %arg3[%c7, %c0_27, %c0_28] : memref<9x4x128xbf16, #tpu.memory_space<vmem>>, vector<1x4x128xbf16>
    %53 = vector.shape_cast %52 : vector<1x4x128xbf16> to vector<4x128xbf16>
    %cst_29 = arith.constant dense<0.000000e+00> : vector<256x128xf32>
    %54 = tpu.matmul %51, %53, %cst_29 {dimension_numbers = #tpu.dot_dimension_numbers<[1], [0], [0], [1], [0, 0, 1, 1], [], []>} : vector<256x4xbf16>, vector<4x128xbf16>, vector<256x128xf32> -> vector<256x128xf32>
    %55 = arith.addf %49, %54 : vector<256x128xf32>
    %56 = vector.extract_strided_slice %6 {offsets = [2, 2, 0], sizes = [16, 16, 4], strides = [1, 1, 1]} : vector<18x18x4xbf16> to vector<16x16x4xbf16>
    %57 = vector.shape_cast %56 : vector<16x16x4xbf16> to vector<256x4xbf16>
    %c8 = arith.constant 8 : index
    %c0_30 = arith.constant 0 : index
    %c0_31 = arith.constant 0 : index
    %58 = vector.load %arg3[%c8, %c0_30, %c0_31] : memref<9x4x128xbf16, #tpu.memory_space<vmem>>, vector<1x4x128xbf16>
    %59 = vector.shape_cast %58 : vector<1x4x128xbf16> to vector<4x128xbf16>
    %cst_32 = arith.constant dense<0.000000e+00> : vector<256x128xf32>
    %60 = tpu.matmul %57, %59, %cst_32 {dimension_numbers = #tpu.dot_dimension_numbers<[1], [0], [0], [1], [0, 0, 1, 1], [], []>} : vector<256x4xbf16>, vector<4x128xbf16>, vector<256x128xf32> -> vector<256x128xf32>
    %61 = arith.addf %55, %60 : vector<256x128xf32>
    %c0_i32_33 = arith.constant 0 : i32
    %62 = arith.cmpi eq, %arg0, %c0_i32_33 : i32
    %63 = arith.extui %62 : i1 to i32
    %c0_i32_34 = arith.constant 0 : i32
    %64 = arith.cmpi ne, %63, %c0_i32_34 : i32
    scf.if %64 {
      %c0_39 = arith.constant 0 : index
      %c0_40 = arith.constant 0 : index
      %73 = vector.load %arg6[%c0_39, %c0_40] : memref<1x128xf32, #tpu.memory_space<vmem>>, vector<1x128xf32>
      %cst_41 = arith.constant dense<0.000000e+00> : vector<128xf32>
      %74 = vector.multi_reduction <add>, %61, %cst_41 [0] : vector<256x128xf32> to vector<128xf32>
      %75 = vector.shape_cast %74 : vector<128xf32> to vector<1x128xf32>
      %76 = arith.addf %73, %75 : vector<1x128xf32>
      %c0_42 = arith.constant 0 : index
      %c0_43 = arith.constant 0 : index
      %77 = vector.load %arg6[%c0_42, %c0_43] : memref<1x128xf32, #tpu.memory_space<vmem>>, vector<1x128xf32>
      tpu.vector_store %arg6[%c0_42, %c0_43], %76 {strides = array<i32>} : memref<1x128xf32, #tpu.memory_space<vmem>>, vector<1x128xf32>,
      %c0_44 = arith.constant 0 : index
      %c0_45 = arith.constant 0 : index
      %78 = vector.load %arg7[%c0_44, %c0_45] : memref<1x128xf32, #tpu.memory_space<vmem>>, vector<1x128xf32>
      %79 = arith.mulf %61, %61 : vector<256x128xf32>
      %cst_46 = arith.constant dense<0.000000e+00> : vector<128xf32>
      %80 = vector.multi_reduction <add>, %79, %cst_46 [0] : vector<256x128xf32> to vector<128xf32>
      %81 = vector.shape_cast %80 : vector<128xf32> to vector<1x128xf32>
      %82 = arith.addf %78, %81 : vector<1x128xf32>
      %c0_47 = arith.constant 0 : index
      %c0_48 = arith.constant 0 : index
      %83 = vector.load %arg7[%c0_47, %c0_48] : memref<1x128xf32, #tpu.memory_space<vmem>>, vector<1x128xf32>
      tpu.vector_store %arg7[%c0_47, %c0_48], %82 {strides = array<i32>} : memref<1x128xf32, #tpu.memory_space<vmem>>, vector<1x128xf32>,
      %c0_49 = arith.constant 0 : index
      %c0_50 = arith.constant 0 : index
      %84 = vector.load %arg5[%c0_49, %c0_50] : memref<256x128xf32, #tpu.memory_space<vmem>>, vector<256x128xf32>
      tpu.vector_store %arg5[%c0_49, %c0_50], %61 {strides = array<i32>} : memref<256x128xf32, #tpu.memory_space<vmem>>, vector<256x128xf32>,
    } else {
    }
    %c1_i32 = arith.constant 1 : i32
    %65 = arith.cmpi eq, %arg0, %c1_i32 : i32
    %c0_i32_35 = arith.constant 0 : i32
    %66 = arith.cmpi eq, %arg1, %c0_i32_35 : i32
    %67 = arith.andi %65, %66 : i1
    %68 = arith.extui %67 : i1 to i32
    %c0_i32_36 = arith.constant 0 : i32
    %69 = arith.cmpi ne, %68, %c0_i32_36 : i32
    scf.if %69 {
      %c0_39 = arith.constant 0 : index
      %c0_40 = arith.constant 0 : index
      %73 = vector.load %arg6[%c0_39, %c0_40] : memref<1x128xf32, #tpu.memory_space<vmem>>, vector<1x128xf32>
      %cst_41 = arith.constant 0.001953125 : f32
      %74 = vector.broadcast %cst_41 : f32 to vector<1x128xf32>
      %75 = arith.mulf %73, %74 : vector<1x128xf32>
      %c0_42 = arith.constant 0 : index
      %c0_43 = arith.constant 0 : index
      %76 = vector.load %arg7[%c0_42, %c0_43] : memref<1x128xf32, #tpu.memory_space<vmem>>, vector<1x128xf32>
      %cst_44 = arith.constant 0.001953125 : f32
      %77 = vector.broadcast %cst_44 : f32 to vector<1x128xf32>
      %78 = arith.mulf %76, %77 : vector<1x128xf32>
      %79 = arith.mulf %75, %75 : vector<1x128xf32>
      %80 = arith.subf %78, %79 : vector<1x128xf32>
      %c0_45 = arith.constant 0 : index
      %c0_46 = arith.constant 0 : index
      %81 = vector.load %arg6[%c0_45, %c0_46] : memref<1x128xf32, #tpu.memory_space<vmem>>, vector<1x128xf32>
      tpu.vector_store %arg6[%c0_45, %c0_46], %75 {strides = array<i32>} : memref<1x128xf32, #tpu.memory_space<vmem>>, vector<1x128xf32>,
      %cst_47 = arith.constant 9.99999974E-6 : f32
      %82 = vector.broadcast %cst_47 : f32 to vector<1x128xf32>
      %83 = arith.addf %80, %82 : vector<1x128xf32>
      %84 = math.rsqrt %83 : vector<1x128xf32>
      %c0_48 = arith.constant 0 : index
      %c0_49 = arith.constant 0 : index
      %85 = vector.load %arg7[%c0_48, %c0_49] : memref<1x128xf32, #tpu.memory_space<vmem>>, vector<1x128xf32>
      tpu.vector_store %arg7[%c0_48, %c0_49], %84 {strides = array<i32>} : memref<1x128xf32, #tpu.memory_space<vmem>>, vector<1x128xf32>,
    } else {
    }
    %c1_i32_37 = arith.constant 1 : i32
    %70 = arith.cmpi eq, %arg0, %c1_i32_37 : i32
    %71 = arith.extui %70 : i1 to i32
    %c0_i32_38 = arith.constant 0 : i32
    %72 = arith.cmpi ne, %71, %c0_i32_38 : i32
    scf.if %72 {
      %c0_39 = arith.constant 0 : index
      %c0_40 = arith.constant 0 : index
      %73 = vector.load %arg6[%c0_39, %c0_40] : memref<1x128xf32, #tpu.memory_space<vmem>>, vector<1x128xf32>
      %74 = vector.broadcast %73 : vector<1x128xf32> to vector<256x128xf32>
      %75 = arith.subf %61, %74 : vector<256x128xf32>
      %c0_41 = arith.constant 0 : index
      %c0_42 = arith.constant 0 : index
      %76 = vector.load %arg7[%c0_41, %c0_42] : memref<1x128xf32, #tpu.memory_space<vmem>>, vector<1x128xf32>
      %77 = vector.broadcast %76 : vector<1x128xf32> to vector<256x128xf32>
      %78 = arith.mulf %75, %77 : vector<256x128xf32>
      %c0_43 = arith.constant 0 : index
      %c0_44 = arith.constant 0 : index
      %79 = vector.load %arg4[%c0_43, %c0_44] : memref<1x128xf32, #tpu.memory_space<vmem>>, vector<1x128xf32>
      %80 = vector.broadcast %79 : vector<1x128xf32> to vector<256x128xf32>
      %81 = arith.addf %78, %80 : vector<256x128xf32>
      %cst_45 = arith.constant 0.000000e+00 : f32
      %82 = vector.broadcast %cst_45 : f32 to vector<256x128xf32>
      %83 = arith.maximumf %81, %82 : vector<256x128xf32>
      %c0_46 = arith.constant 0 : index
      %c0_47 = arith.constant 0 : index
      %84 = vector.load %arg5[%c0_46, %c0_47] : memref<256x128xf32, #tpu.memory_space<vmem>>, vector<256x128xf32>
      tpu.vector_store %arg5[%c0_46, %c0_47], %83 {strides = array<i32>} : memref<256x128xf32, #tpu.memory_space<vmem>>, vector<256x128xf32>,
    } else {
    }
    return
  }
  func.func @transform_0(%arg0: i32, %arg1: i32) -> (i32, i32, i32, i32) {
    %c0_i32 = arith.constant 0 : i32
    %c0_i32_0 = arith.constant 0 : i32
    %c0_i32_1 = arith.constant 0 : i32
    %c0_i32_2 = arith.constant 0 : i32
    return %arg1, %c0_i32, %c0_i32_0, %c0_i32_1 : i32, i32, i32, i32
  }
  func.func @transform_1(%arg0: i32, %arg1: i32) -> (i32, i32, i32) {
    %c0_i32 = arith.constant 0 : i32
    %c0_i32_0 = arith.constant 0 : i32
    %c0_i32_1 = arith.constant 0 : i32
    %c0_i32_2 = arith.constant 0 : i32
    return %c0_i32, %c0_i32_0, %c0_i32_1 : i32, i32, i32
  }
  func.func @transform_2(%arg0: i32, %arg1: i32) -> (i32, i32) {
    %c0_i32 = arith.constant 0 : i32
    %c0_i32_0 = arith.constant 0 : i32
    %c0_i32_1 = arith.constant 0 : i32
    return %c0_i32, %c0_i32_0 : i32, i32
  }
  func.func @transform_3(%arg0: i32, %arg1: i32) -> (i32, i32) {
    %c0_i32 = arith.constant 0 : i32
    %c0_i32_0 = arith.constant 0 : i32
    return %arg1, %c0_i32 : i32, i32
  }
}

</mosaic_0001>

<llo_original>
// kernel: conv_block_forward.1
$region0: #{conv_block_forward.1}
  #allocation0 [shape = 'u32[]', space=smem, size = 0x4, offset = 0x4, fixed_abs, tag = 'smem constant byte address 0x4 - core index']
  #allocation1 [shape = 'u32[144,128]{1,0:T(1,128)}', space=vmem, size = 0x12000, scoped, tag = 'internal scratch']
  #allocation2 [shape = 'f32[1,128]{1,0:T(1,128)}', space=vmem, size = 0x200, scoped, tag = 'scratch operand']
  #allocation3 [shape = 'f32[1,128]{1,0:T(1,128)}', space=vmem, size = 0x200, scoped, tag = 'scratch operand']
  %s0 = inlined_call_operand.vmem [shape: bf16[2,18,18,4], index: 0, kind: input, shape index: {}]
  %s1 = inlined_call_operand.vmem [shape: bf16[9,4,128], index: 1, kind: input, shape index: {}]
  %s2 = inlined_call_operand.vmem [shape: f32[1,128], index: 2, kind: input, shape index: {}]
  %s3 = inlined_call_operand.vmem [shape: f32[512,128], index: 3, kind: output, shape index: {}]
  %s4 = sld [smem:[#allocation0]]
  $region61: #{conv_block_forward.1} parent=0
    _
  %s6 = ssub.s32 1, %s4
  %s7 = scalar_select 0, %s6, %s4
  loop: start=0, step=1, limit=6
  $region2: #{conv_block_forward.1} parent=0 // loop_pre_header
    _
  $region3: #{conv_block_forward.1} parent=0 // loop_header
    %s9 = sphi 0, %s13
    %p10 = scmp.ge.s32.totalorder %s9, 6
    %s16 = sphi 0, %s28
    %s17 = sphi 0, %s24
    %s18 = sphi 0, %s16
    %s19 = sphi 0, %s17
    %s20 = sphi 0, %s18
    %s21 = sphi 0, %s19
    %s31 = sphi 0, %s33
    %s34 = sphi 0, %s31
    %s35 = sphi 0, %s34
    %s51 = sphi 0, %s35
    %s55 = sphi 0, %s55
    %s57 = sphi 0, %s55
    %s58 = sphi 0, %s57
    %s72 = sphi 0, %s58
    %s76 = sphi 0, %s76
    %s78 = sphi 0, %s76
    %s79 = sphi 0, %s78
    %s93 = sphi 0, %s79
    %s99 = sphi 0, %s101
    %s102 = sphi 0, %s99
    %s103 = sphi 0, %s102
    %s119 = sphi 0, %s103
  $region4: #{conv_block_forward.1} parent=0 // loop_header_branch
    %12 = sbr.rel (%p10) target = $region8
  $region5: #{conv_block_forward.1} parent=0 // loop_body
    %s14 = ssub.s32 %s9, 1
    %s15 = ssub.s32 %s9, 2
    %s22 = sadd.s32 1, %s17
    %p23 = scmp.ge.s32.totalorder %s22, 2
    %s24 = scalar_select %p23, 0, %s22
    %s25 = sadd.s32 1, %s16
    %s26 = scalar_select %p23, %s25, %s16
    %p27 = scmp.ge.s32.totalorder %s26, 2
    %s28 = scalar_select %p27, 0, %s26
    %s29 = ssub.s32 %s17, %s24
    %p30 = scmp.eq.s32.totalorder %s29, 0
    %s32 = sadd.s32 %s31, 1
    %s33 = scalar_select %p30, %s31, %s32
    %p36 = pneg %p30
    %p37 = scmp.eq.s32.totalorder %s9, 3
    %p38 = por %p36, %p37
    %p39 = scmp.ne.s32.totalorder %s31, %s34
    %p40 = scmp.eq.s32.totalorder %s9, 0
    %p41 = por %p39, %p40
    %p42 = scmp.ne.s32.totalorder %s31, %s34
    %p43 = scmp.eq.s32.totalorder %s14, 3
    %p44 = por %p42, %p43
    %p45 = scmp.ne.s32.totalorder %s34, %s35
    %p46 = scmp.eq.s32.totalorder %s14, 0
    %p47 = por %p45, %p46
    %p48 = scmp.ne.s32.totalorder %s34, %s35
    %p49 = scmp.eq.s32.totalorder %s15, 3
    %p50 = por %p48, %p49
    %p52 = scmp.ne.s32.totalorder %s35, %s51
    %p53 = scmp.eq.s32.totalorder %s15, 0
    %p54 = por %p52, %p53
    %s56 = sadd.s32 %s55, 1
    %p59 = scmp.eq.s32.totalorder %s9, 3
    %p60 = scmp.ne.s32.totalorder %s55, %s57
    %p61 = scmp.eq.s32.totalorder %s9, 0
    %p62 = por %p60, %p61
    %p63 = scmp.ne.s32.totalorder %s55, %s57
    %p64 = scmp.eq.s32.totalorder %s14, 3
    %p65 = por %p63, %p64
    %p66 = scmp.ne.s32.totalorder %s57, %s58
    %p67 = scmp.eq.s32.totalorder %s14, 0
    %p68 = por %p66, %p67
    %p69 = scmp.ne.s32.totalorder %s57, %s58
    %p70 = scmp.eq.s32.totalorder %s15, 3
    %p71 = por %p69, %p70
    %p73 = scmp.ne.s32.totalorder %s58, %s72
    %p74 = scmp.eq.s32.totalorder %s15, 0
    %p75 = por %p73, %p74
    %s77 = sadd.s32 %s76, 1
    %p80 = scmp.eq.s32.totalorder %s9, 3
    %p81 = scmp.ne.s32.totalorder %s76, %s78
    %p82 = scmp.eq.s32.totalorder %s9, 0
    %p83 = por %p81, %p82
    %p84 = scmp.ne.s32.totalorder %s76, %s78
    %p85 = scmp.eq.s32.totalorder %s14, 3
    %p86 = por %p84, %p85
    %p87 = scmp.ne.s32.totalorder %s78, %s79
    %p88 = scmp.eq.s32.totalorder %s14, 0
    %p89 = por %p87, %p88
    %p90 = scmp.ne.s32.totalorder %s78, %s79
    %p91 = scmp.eq.s32.totalorder %s15, 3
    %p92 = por %p90, %p91
    %p94 = scmp.ne.s32.totalorder %s79, %s93
    %p95 = scmp.eq.s32.totalorder %s15, 0
    %p96 = por %p94, %p95
    %s97 = ssub.s32 %s17, %s24
    %p98 = scmp.eq.s32.totalorder %s97, 0
    %s100 = sadd.s32 %s99, 1
    %s101 = scalar_select %p98, %s99, %s100
    %p104 = pneg %p98
    %p105 = scmp.eq.s32.totalorder %s9, 3
    %p106 = por %p104, %p105
    %p107 = scmp.ne.s32.totalorder %s99, %s102
    %p108 = scmp.eq.s32.totalorder %s9, 0
    %p109 = por %p107, %p108
    %p110 = scmp.ne.s32.totalorder %s99, %s102
    %p111 = scmp.eq.s32.totalorder %s14, 3
    %p112 = por %p110, %p111
    %p113 = scmp.ne.s32.totalorder %s102, %s103
    %p114 = scmp.eq.s32.totalorder %s14, 0
    %p115 = por %p113, %p114
    %p116 = scmp.ne.s32.totalorder %s102, %s103
    %p117 = scmp.eq.s32.totalorder %s15, 3
    %p118 = por %p116, %p117
    %p120 = scmp.ne.s32.totalorder %s103, %s119
    %p121 = scmp.eq.s32.totalorder %s15, 0
    %p122 = por %p120, %p121
    %p123 = scmp.le.s32.totalorder 1, %s9
    %p124 = scmp.lt.s32.totalorder %s9, 5
    %p125 = pnand %p123, %p124
    %p126 = pneg %p125
    // Predicated region
    $region9: #{conv_block_forward.1} parent=5 // pred_check
      _
    $region10: #{conv_block_forward.1} parent=5 // pred_check_branch
      %128 = sbr.rel (%p125) target = $region12
    $region11: #{conv_block_forward.1} parent=5 // pred_region
      %s129 = ssub.s32 %s9, 1
      // Predicated region
      $region13: #{conv_block_forward.1} parent=11 // pred_check
        %p130 = pneg %p68
      $region14: #{conv_block_forward.1} parent=11 // pred_check_branch
        %132 = sbr.rel (%p130) target = $region16
      $region15: #{conv_block_forward.1} parent=11 // pred_region
        _
      $region16: #{conv_block_forward.1} parent=11 // pred_fallthru
        _
      // Predicated region
      $region17: #{conv_block_forward.1} parent=11 // pred_check
        %p133 = pneg %p89
      $region18: #{conv_block_forward.1} parent=11 // pred_check_branch
        %135 = sbr.rel (%p133) target = $region20
      $region19: #{conv_block_forward.1} parent=11 // pred_region
        _
      $region20: #{conv_block_forward.1} parent=11 // pred_fallthru
        _
    $region12: #{conv_block_forward.1} parent=5 // pred_fallthru
      _
    %p136 = scmp.lt.s32.totalorder %s9, 4
    // Predicated region
    $region21: #{conv_block_forward.1} parent=5 // pred_check
      %p137 = pneg %p136
    $region22: #{conv_block_forward.1} parent=5 // pred_check_branch
      %139 = sbr.rel (%p137) target = $region24
    $region23: #{conv_block_forward.1} parent=5 // pred_region
      // Predicated region
      $region25: #{conv_block_forward.1} parent=23 // pred_check
        %p140 = pneg %p41
      $region26: #{conv_block_forward.1} parent=23 // pred_check_branch
        %142 = sbr.rel (%p140) target = $region28
      $region27: #{conv_block_forward.1} parent=23 // pred_region
        %p143 = scmp.lt.s32.totalorder %s17, 1
        %s144 = scalar_select %p143, %s17, 1
        %s145 = smul.addr %s144, 54
        %s146 = smul.addr %s145, 4
        %s147 = scalar_lea.vmem %s0, %s146
      $region28: #{conv_block_forward.1} parent=23 // pred_fallthru
        _
    $region24: #{conv_block_forward.1} parent=5 // pred_fallthru
      _
    %p148 = scmp.le.s32.totalorder 1, %s9
    %p149 = scmp.lt.s32.totalorder %s9, 5
    %p150 = pnand %p148, %p149
    %p151 = pneg %p150
    // Predicated region
    $region29: #{conv_block_forward.1} parent=5 // pred_check
      _
    $region30: #{conv_block_forward.1} parent=5 // pred_check_branch
      %153 = sbr.rel (%p150) target = $region32
    $region31: #{conv_block_forward.1} parent=5 // pred_region
      %s154 = ssub.s32 %s9, 1
      %p155 = scmp.lt.s32.totalorder %s19, 1
      %s156 = scalar_select %p155, %s19, 1
      %s157 = smul.addr %s156, 54
      %s158 = smul.addr %s157, 4
      %s159 = scalar_lea.vmem %s0, %s158
      %p160 = pneg %p47
      %p161 = pneg %p44
      %p162 = pneg %p68
      %p163 = pneg %p65
      %p164 = pneg %p89
      %p165 = pneg %p86
      %p166 = pneg %p115
      %p167 = pneg %p112
      %s168 = smul.u32 32, %s19
      %p169 = scmp.lt.s32.totalorder %s168, 63
      %s170 = scalar_select %p169, %s168, 63
      %s171 = smul.addr %s170, 8
      %s172 = scalar_lea.vmem %s3, %s171
      %p173 = scmp.lt.s32.totalorder %s19, 1
      %s174 = scalar_select %p173, %s19, 1
      %s175 = smul.addr %s174, 54
      %s176 = smul.addr %s175, 4
      %s177 = scalar_lea.vmem %s0, %s176
      %s178 = smul.u32 32, %s19
      %p179 = scmp.lt.s32.totalorder %s178, 63
      %s180 = scalar_select %p179, %s178, 63
      %s181 = smul.addr %s180, 8
      %s182 = scalar_lea.vmem %s3, %s181
      %s183 = smul.u32 32, %s19
      %p185 = scmp.eq.s32.totalorder %s18, 0
      %p186 = scmp.eq.s32.totalorder %s19, 0
      %p187 = pnand %p185, %p186
      %p188 = pneg %p187
      // Predicated region
      $region33: #{conv_block_forward.1} parent=31 // pred_check
        _
      $region34: #{conv_block_forward.1} parent=31 // pred_check_branch
        %190 = sbr.rel (%p187) target = $region36
      $region35: #{conv_block_forward.1} parent=31 // pred_region
        %191 = vst [vmem:[#allocation2] sm:$0x1] 0.0
        %192 = vst [vmem:[#allocation3] sm:$0x1] 0.0
      $region36: #{conv_block_forward.1} parent=31 // pred_fallthru
        _
      %v193 = vld [vmem:[%s177] sm:$0xf]
      %v194 = vld [vmem:[%s177 + $0x4] sm:$0xf]
      %v195 = vld [vmem:[%s177 + $0x8] sm:$0x1]
      %v196 = vld [vmem:[%s177 + $0xc] sm:$0xf]
      %v197 = vld [vmem:[%s177 + $0x10] sm:$0xf]
      %v198 = vld [vmem:[%s177 + $0x14] sm:$0x1]
      %v199 = vld [vmem:[%s177 + $0x18] sm:$0xf]
      %v200 = vld [vmem:[%s177 + $0x1c] sm:$0xf]
      %v201 = vld [vmem:[%s177 + $0x20] sm:$0x1]
      %v202 = vld [vmem:[%s177 + $0x24] sm:$0xf]
      %v203 = vld [vmem:[%s177 + $0x28] sm:$0xf]
      %v204 = vld [vmem:[%s177 + $0x2c] sm:$0x1]
      %v205 = vld [vmem:[%s177 + $0x30] sm:$0xf]
      %v206 = vld [vmem:[%s177 + $0x34] sm:$0xf]
      %v207 = vld [vmem:[%s177 + $0x38] sm:$0x1]
      %v208 = vld [vmem:[%s177 + $0x3c] sm:$0xf]
      %v209 = vld [vmem:[%s177 + $0x40] sm:$0xf]
      %v210 = vld [vmem:[%s177 + $0x44] sm:$0x1]
      %v211 = vld [vmem:[%s177 + $0x48] sm:$0xf]
      %v212 = vld [vmem:[%s177 + $0x4c] sm:$0xf]
      %v213 = vld [vmem:[%s177 + $0x50] sm:$0x1]
      %v214 = vld [vmem:[%s177 + $0x54] sm:$0xf]
      %v215 = vld [vmem:[%s177 + $0x58] sm:$0xf]
      %v216 = vld [vmem:[%s177 + $0x5c] sm:$0x1]
      %v217 = vld [vmem:[%s177 + $0x60] sm:$0xf]
      %v218 = vld [vmem:[%s177 + $0x64] sm:$0xf]
      %v219 = vld [vmem:[%s177 + $0x68] sm:$0x1]
      %v220 = vld [vmem:[%s177 + $0x6c] sm:$0xf]
      %v221 = vld [vmem:[%s177 + $0x70] sm:$0xf]
      %v222 = vld [vmem:[%s177 + $0x74] sm:$0x1]
      %v223 = vld [vmem:[%s177 + $0x78] sm:$0xf]
      %v224 = vld [vmem:[%s177 + $0x7c] sm:$0xf]
      %v225 = vld [vmem:[%s177 + $0x80] sm:$0x1]
      %v226 = vld [vmem:[%s177 + $0x84] sm:$0xf]
      %v227 = vld [vmem:[%s177 + $0x88] sm:$0xf]
      %v228 = vld [vmem:[%s177 + $0x8c] sm:$0x1]
      %v229 = vld [vmem:[%s177 + $0x90] sm:$0xf]
      %v230 = vld [vmem:[%s177 + $0x94] sm:$0xf]
      %v231 = vld [vmem:[%s177 + $0x98] sm:$0x1]
      %v232 = vld [vmem:[%s177 + $0x9c] sm:$0xf]
      %v233 = vld [vmem:[%s177 + $0xa0] sm:$0xf]
      %v234 = vld [vmem:[%s177 + $0xa4] sm:$0x1]
      %v235 = vld [vmem:[%s177 + $0xa8] sm:$0xf]
      %v236 = vld [vmem:[%s177 + $0xac] sm:$0xf]
      %v237 = vld [vmem:[%s177 + $0xb0] sm:$0x1]
      %v238 = vld [vmem:[%s177 + $0xb4] sm:$0xf]
      %v239 = vld [vmem:[%s177 + $0xb8] sm:$0xf]
      %v240 = vld [vmem:[%s177 + $0xbc] sm:$0x1]
      %v241 = vld [vmem:[%s177 + $0xc0] sm:$0xf]
      %v242 = vld [vmem:[%s177 + $0xc4] sm:$0xf]
      %v243 = vld [vmem:[%s177 + $0xc8] sm:$0x1]
      %v244 = vld [vmem:[%s177 + $0xcc] sm:$0xf]
      %v245 = vld [vmem:[%s177 + $0xd0] sm:$0xf]
      %v246 = vld [vmem:[%s177 + $0xd4] sm:$0x1]
      %v247 = vld [vmem:[%s1] sm:$0x3]
      %vm248 = vsmask.f32 3328
      %vm249 = vsmask.f32 7440
      %vm250 = vmor %vm248, %vm249
      %v252 = vshrl.u32 %v193, 16
      %v254 = vrot.slane %v252, 4
      %v255 = vshll.u32 %v193, 16
      %v257 = vrot.slane %v255, 5
      %v258 = vor.u32 %v254, %v257
      %v259 = vrot.slane %v258, 4
      %v261 = vshll.u32 %v194, 16
      %v263 = vrot.slane %v261, 5
      %v264 = vsel %vm250, %v259, %v263
      %v265 = vshrl.u32 %v194, 16
      %v267 = vrot.slane %v265, 4
      %v268 = vor.u32 %v267, %v263
      %v269 = vrot.slane %v268, 4
      %v271 = vshll.u32 %v195, 16
      %v273 = vrot.slane %v271, 5
      %v274 = vsel %vm250, %v269, %v273
      %v276 = vshrl.u32 %v196, 16
      %v278 = vrot.slane %v276, 4
      %v279 = vshll.u32 %v196, 16
      %v281 = vrot.slane %v279, 5
      %v282 = vor.u32 %v278, %v281
      %v283 = vrot.slane %v282, 4
      %v285 = vshll.u32 %v197, 16
      %v287 = vrot.slane %v285, 5
      %v288 = vsel %vm250, %v283, %v287
      %v289 = vshrl.u32 %v197, 16
      %v291 = vrot.slane %v289, 4
      %v292 = vor.u32 %v291, %v287
      %v293 = vrot.slane %v292, 4
      %v295 = vshll.u32 %v198, 16
      %v297 = vrot.slane %v295, 5
      %v298 = vsel %vm250, %v293, %v297
      %v300 = vshrl.u32 %v199, 16
      %v302 = vrot.slane %v300, 4
      %v303 = vshll.u32 %v199, 16
      %v305 = vrot.slane %v303, 5
      %v306 = vor.u32 %v302, %v305
      %v307 = vrot.slane %v306, 4
      %v309 = vshll.u32 %v200, 16
      %v311 = vrot.slane %v309, 5
      %v312 = vsel %vm250, %v307, %v311
      %v313 = vshrl.u32 %v200, 16
      %v315 = vrot.slane %v313, 4
      %v316 = vor.u32 %v315, %v311
      %v317 = vrot.slane %v316, 4
      %v319 = vshll.u32 %v201, 16
      %v321 = vrot.slane %v319, 5
      %v322 = vsel %vm250, %v317, %v321
      %v324 = vshrl.u32 %v202, 16
      %v326 = vrot.slane %v324, 4
      %v327 = vshll.u32 %v202, 16
      %v329 = vrot.slane %v327, 5
      %v330 = vor.u32 %v326, %v329
      %v331 = vrot.slane %v330, 4
      %v333 = vshll.u32 %v203, 16
      %v335 = vrot.slane %v333, 5
      %v336 = vsel %vm250, %v331, %v335
      %v337 = vshrl.u32 %v203, 16
      %v339 = vrot.slane %v337, 4
      %v340 = vor.u32 %v339, %v335
      %v341 = vrot.slane %v340, 4
      %v343 = vshll.u32 %v204, 16
      %v345 = vrot.slane %v343, 5
      %v346 = vsel %vm250, %v341, %v345
      %v348 = vshrl.u32 %v205, 16
      %v350 = vrot.slane %v348, 4
      %v351 = vshll.u32 %v205, 16
      %v353 = vrot.slane %v351, 5
      %v354 = vor.u32 %v350, %v353
      %v355 = vrot.slane %v354, 4
      %v357 = vshll.u32 %v206, 16
      %v359 = vrot.slane %v357, 5
      %v360 = vsel %vm250, %v355, %v359
      %v361 = vshrl.u32 %v206, 16
      %v363 = vrot.slane %v361, 4
      %v364 = vor.u32 %v363, %v359
      %v365 = vrot.slane %v364, 4
      %v367 = vshll.u32 %v207, 16
      %v369 = vrot.slane %v367, 5
      %v370 = vsel %vm250, %v365, %v369
      %v372 = vshrl.u32 %v208, 16
      %v374 = vrot.slane %v372, 4
      %v375 = vshll.u32 %v208, 16
      %v377 = vrot.slane %v375, 5
      %v378 = vor.u32 %v374, %v377
      %v379 = vrot.slane %v378, 4
      %v381 = vshll.u32 %v209, 16
      %v383 = vrot.slane %v381, 5
      %v384 = vsel %vm250, %v379, %v383
      %v385 = vshrl.u32 %v209, 16
      %v387 = vrot.slane %v385, 4
      %v388 = vor.u32 %v387, %v383
      %v389 = vrot.slane %v388, 4
      %v391 = vshll.u32 %v210, 16
      %v393 = vrot.slane %v391, 5
      %v394 = vsel %vm250, %v389, %v393
      %v396 = vshrl.u32 %v211, 16
      %v398 = vrot.slane %v396, 4
      %v399 = vshll.u32 %v211, 16
      %v401 = vrot.slane %v399, 5
      %v402 = vor.u32 %v398, %v401
      %v403 = vrot.slane %v402, 4
      %v405 = vshll.u32 %v212, 16
      %v407 = vrot.slane %v405, 5
      %v408 = vsel %vm250, %v403, %v407
      %v409 = vshrl.u32 %v212, 16
      %v411 = vrot.slane %v409, 4
      %v412 = vor.u32 %v411, %v407
      %v413 = vrot.slane %v412, 4
      %v415 = vshll.u32 %v213, 16
      %v417 = vrot.slane %v415, 5
      %v418 = vsel %vm250, %v413, %v417
      %v420 = vshrl.u32 %v214, 16
      %v422 = vrot.slane %v420, 4
      %v423 = vshll.u32 %v214, 16
      %v425 = vrot.slane %v423, 5
      %v426 = vor.u32 %v422, %v425
      %v427 = vrot.slane %v426, 4
      %v429 = vshll.u32 %v215, 16
      %v431 = vrot.slane %v429, 5
      %v432 = vsel %vm250, %v427, %v431
      %v433 = vshrl.u32 %v215, 16
      %v435 = vrot.slane %v433, 4
      %v436 = vor.u32 %v435, %v431
      %v437 = vrot.slane %v436, 4
      %v439 = vshll.u32 %v216, 16
      %v441 = vrot.slane %v439, 5
      %v442 = vsel %vm250, %v437, %v441
      %v444 = vshrl.u32 %v217, 16
      %v446 = vrot.slane %v444, 4
      %v447 = vshll.u32 %v217, 16
      %v449 = vrot.slane %v447, 5
      %v450 = vor.u32 %v446, %v449
      %v451 = vrot.slane %v450, 4
      %v453 = vshll.u32 %v218, 16
      %v455 = vrot.slane %v453, 5
      %v456 = vsel %vm250, %v451, %v455
      %v457 = vshrl.u32 %v218, 16
      %v459 = vrot.slane %v457, 4
      %v460 = vor.u32 %v459, %v455
      %v461 = vrot.slane %v460, 4
      %v463 = vshll.u32 %v219, 16
      %v465 = vrot.slane %v463, 5
      %v466 = vsel %vm250, %v461, %v465
      %v468 = vshrl.u32 %v220, 16
      %v470 = vrot.slane %v468, 4
      %v471 = vshll.u32 %v220, 16
      %v473 = vrot.slane %v471, 5
      %v474 = vor.u32 %v470, %v473
      %v475 = vrot.slane %v474, 4
      %v477 = vshll.u32 %v221, 16
      %v479 = vrot.slane %v477, 5
      %v480 = vsel %vm250, %v475, %v479
      %v481 = vshrl.u32 %v221, 16
      %v483 = vrot.slane %v481, 4
      %v484 = vor.u32 %v483, %v479
      %v485 = vrot.slane %v484, 4
      %v487 = vshll.u32 %v222, 16
      %v489 = vrot.slane %v487, 5
      %v490 = vsel %vm250, %v485, %v489
      %v492 = vshrl.u32 %v223, 16
      %v494 = vrot.slane %v492, 4
      %v495 = vshll.u32 %v223, 16
      %v497 = vrot.slane %v495, 5
      %v498 = vor.u32 %v494, %v497
      %v499 = vrot.slane %v498, 4
      %v501 = vshll.u32 %v224, 16
      %v503 = vrot.slane %v501, 5
      %v504 = vsel %vm250, %v499, %v503
      %v505 = vshrl.u32 %v224, 16
      %v507 = vrot.slane %v505, 4
      %v508 = vor.u32 %v507, %v503
      %v509 = vrot.slane %v508, 4
      %v511 = vshll.u32 %v225, 16
      %v513 = vrot.slane %v511, 5
      %v514 = vsel %vm250, %v509, %v513
      %v516 = vshrl.u32 %v226, 16
      %v518 = vrot.slane %v516, 4
      %v519 = vshll.u32 %v226, 16
      %v521 = vrot.slane %v519, 5
      %v522 = vor.u32 %v518, %v521
      %v523 = vrot.slane %v522, 4
      %v525 = vshll.u32 %v227, 16
      %v527 = vrot.slane %v525, 5
      %v528 = vsel %vm250, %v523, %v527
      %v529 = vshrl.u32 %v227, 16
      %v531 = vrot.slane %v529, 4
      %v532 = vor.u32 %v531, %v527
      %v533 = vrot.slane %v532, 4
      %v535 = vshll.u32 %v228, 16
      %v537 = vrot.slane %v535, 5
      %v538 = vsel %vm250, %v533, %v537
      %v540 = vshrl.u32 %v229, 16
      %v542 = vrot.slane %v540, 4
      %v543 = vshll.u32 %v229, 16
      %v545 = vrot.slane %v543, 5
      %v546 = vor.u32 %v542, %v545
      %v547 = vrot.slane %v546, 4
      %v549 = vshll.u32 %v230, 16
      %v551 = vrot.slane %v549, 5
      %v552 = vsel %vm250, %v547, %v551
      %v553 = vshrl.u32 %v230, 16
      %v555 = vrot.slane %v553, 4
      %v556 = vor.u32 %v555, %v551
      %v557 = vrot.slane %v556, 4
      %v559 = vshll.u32 %v231, 16
      %v561 = vrot.slane %v559, 5
      %v562 = vsel %vm250, %v557, %v561
      %v564 = vshrl.u32 %v232, 16
      %v566 = vrot.slane %v564, 4
      %v567 = vshll.u32 %v232, 16
      %v569 = vrot.slane %v567, 5
      %v570 = vor.u32 %v566, %v569
      %v571 = vrot.slane %v570, 4
      %v573 = vshll.u32 %v233, 16
      %v575 = vrot.slane %v573, 5
      %v576 = vsel %vm250, %v571, %v575
      %v577 = vshrl.u32 %v233, 16
      %v579 = vrot.slane %v577, 4
      %v580 = vor.u32 %v579, %v575
      %v581 = vrot.slane %v580, 4
      %v583 = vshll.u32 %v234, 16
      %v585 = vrot.slane %v583, 5
      %v586 = vsel %vm250, %v581, %v585
      %v588 = vshrl.u32 %v235, 16
      %v590 = vrot.slane %v588, 4
      %v591 = vshll.u32 %v235, 16
      %v593 = vrot.slane %v591, 5
      %v594 = vor.u32 %v590, %v593
      %v595 = vrot.slane %v594, 4
      %v597 = vshll.u32 %v236, 16
      %v599 = vrot.slane %v597, 5
      %v600 = vsel %vm250, %v595, %v599
      %v601 = vshrl.u32 %v236, 16
      %v603 = vrot.slane %v601, 4
      %v604 = vor.u32 %v603, %v599
      %v605 = vrot.slane %v604, 4
      %v607 = vshll.u32 %v237, 16
      %v609 = vrot.slane %v607, 5
      %v610 = vsel %vm250, %v605, %v609
      %v612 = vshrl.u32 %v238, 16
      %v614 = vrot.slane %v612, 4
      %v615 = vshll.u32 %v238, 16
      %v617 = vrot.slane %v615, 5
      %v618 = vor.u32 %v614, %v617
      %v619 = vrot.slane %v618, 4
      %v621 = vshll.u32 %v239, 16
      %v623 = vrot.slane %v621, 5
      %v624 = vsel %vm250, %v619, %v623
      %v625 = vshrl.u32 %v239, 16
      %v627 = vrot.slane %v625, 4
      %v628 = vor.u32 %v627, %v623
      %v629 = vrot.slane %v628, 4
      %v631 = vshll.u32 %v240, 16
      %v633 = vrot.slane %v631, 5
      %v634 = vsel %vm250, %v629, %v633
      %s635 = scalar_lea.vmem %s1, 2
      %v636 = vld [vmem:[%s635] sm:$0x3]
      %v637 = vunpack.c.l.b16 %v264
      %v638 = vunpack.c.l.b16 %v274
      %v639 = vunpack.c.l.b16 %v288
      %v640 = vunpack.c.l.b16 %v298
      %v641 = vunpack.c.l.b16 %v312
      %v642 = vunpack.c.l.b16 %v322
      %v643 = vunpack.c.l.b16 %v336
      %v644 = vunpack.c.l.b16 %v346
      %v645 = vunpack.c.l.b16 %v360
      %v646 = vunpack.c.l.b16 %v370
      %v647 = vunpack.c.l.b16 %v384
      %v648 = vunpack.c.l.b16 %v394
      %v649 = vunpack.c.l.b16 %v408
      %v650 = vunpack.c.l.b16 %v418
      %v651 = vunpack.c.l.b16 %v432
      %v652 = vunpack.c.l.b16 %v442
      %v653 = vunpack.c.l.b16 %v456
      %v654 = vunpack.c.l.b16 %v466
      %v655 = vunpack.c.l.b16 %v480
      %v656 = vunpack.c.l.b16 %v490
      %v657 = vunpack.c.l.b16 %v504
      %v658 = vunpack.c.l.b16 %v514
      %v659 = vunpack.c.l.b16 %v528
      %v660 = vunpack.c.l.b16 %v538
      %v661 = vunpack.c.l.b16 %v552
      %v662 = vunpack.c.l.b16 %v562
      %v663 = vunpack.c.l.b16 %v576
      %v664 = vunpack.c.l.b16 %v586
      %v665 = vunpack.c.l.b16 %v600
      %v666 = vunpack.c.l.b16 %v610
      %v667 = vunpack.c.l.b16 %v624
      %v668 = vunpack.c.l.b16 %v634
      %v669 = vpack.c.b16 %v638, %v637
      %v670 = vpack.c.b16 %v640, %v639
      %v671 = vpack.c.b16 %v642, %v641
      %v672 = vpack.c.b16 %v644, %v643
      %v673 = vpack.c.b16 %v646, %v645
      %v674 = vpack.c.b16 %v648, %v647
      %v675 = vpack.c.b16 %v650, %v649
      %v676 = vpack.c.b16 %v652, %v651
      %v677 = vpack.c.b16 %v654, %v653
      %v678 = vpack.c.b16 %v656, %v655
      %v679 = vpack.c.b16 %v658, %v657
      %v680 = vpack.c.b16 %v660, %v659
      %v681 = vpack.c.b16 %v662, %v661
      %v682 = vpack.c.b16 %v664, %v663
      %v683 = vpack.c.b16 %v666, %v665
      %v684 = vpack.c.b16 %v668, %v667
      %vm685 = vcmask 31744
      %v687 = vsel %vm685, %v669, 0
      %v690 = vsel %vm685, %v670, 0
      %v693 = vsel %vm685, %v671, 0
      %v696 = vsel %vm685, %v672, 0
      %v699 = vsel %vm685, %v673, 0
      %v702 = vsel %vm685, %v674, 0
      %v705 = vsel %vm685, %v675, 0
      %v708 = vsel %vm685, %v676, 0
      %v711 = vsel %vm685, %v677, 0
      %v714 = vsel %vm685, %v678, 0
      %v717 = vsel %vm685, %v679, 0
      %v720 = vsel %vm685, %v680, 0
      %v723 = vsel %vm685, %v681, 0
      %v726 = vsel %vm685, %v682, 0
      %v729 = vsel %vm685, %v683, 0
      %v732 = vsel %vm685, %v684, 0
      %vm734 = vcmask 1041408
      %v736 = vsel %vm734, %v636, 0
      %738 = vmatprep.subr.bf16.mxu0 0
      %739 = vmatpush1.bf16.msra.mxu0 0
      %740 = vmatprep.subr.bf16.mxu0 0
      %741 = vmatpush1.bf16.msra.mxu0 0
      %742 = vmatprep.subr.bf16.mxu0 0
      %743 = vmatpush1.bf16.msra.mxu0 0
      %744 = vmatprep.subr.bf16.mxu0 0
      %745 = vmatpush1.bf16.msra.mxu0 0
      %746 = vmatprep.subr.bf16.mxu0 0
      %747 = vmatpush1.bf16.msra.mxu0 0
      %748 = vmatprep.subr.bf16.mxu0 0
      %749 = vmatpush1.bf16.msra.mxu0 0
      %750 = vmatprep.subr.bf16.mxu0 0
      %751 = vmatpush1.bf16.msra.mxu0 0
      %752 = vmatprep.subr.bf16.mxu0 0
      %753 = vmatpush1.bf16.msra.mxu0 %v736
      %754 = vmatprep.subr.bf16.mxu0 0
      %755 = vmatpush2.bf16.msra.mxu0 0
      %756 = vmatprep.subr.bf16.mxu0 0
      %757 = vmatpush2.bf16.msra.mxu0 0
      %758 = vmatprep.subr.bf16.mxu0 0
      %759 = vmatpush2.bf16.msra.mxu0 0
      %760 = vmatprep.subr.bf16.mxu0 0
      %761 = vmatpush2.bf16.msra.mxu0 0
      %762 = vmatprep.subr.bf16.mxu0 0
      %763 = vmatpush2.bf16.msra.mxu0 0
      %764 = vmatprep.subr.bf16.mxu0 0
      %765 = vmatpush2.bf16.msra.mxu0 0
      %766 = vmatprep.subr.bf16.mxu0 0
      %767 = vmatpush2.bf16.msra.mxu0 0
      %768 = vmatprep.subr.bf16.mxu0 0
      %769 = vmatpush2.bf16.msra.mxu0 0
      %770 = vmatprep.mubr.bf16.mxu0 0
      %771 = vmatmul.mubr.bf16.gmra.mxu0 %v687
      %v772 = vpop.f32.mrf.mxu0
      %v773 = vadd.f32 0.0, %v772
      %v774 = vpop.f32.mrf.mxu0
      %v775 = vpop.f32.mrf.mxu0
      %v776 = vadd.f32 0.0, %v775
      %v777 = vpop.f32.mrf.mxu0
      %778 = vmatprep.mubr.bf16.mxu0 0
      %779 = vmatmul.mubr.bf16.gmra.mxu0 %v690
      %v780 = vpop.f32.mrf.mxu0
      %v781 = vadd.f32 0.0, %v780
      %v782 = vpop.f32.mrf.mxu0
      %v783 = vpop.f32.mrf.mxu0
      %v784 = vadd.f32 0.0, %v783
      %v785 = vpop.f32.mrf.mxu0
      %786 = vmatprep.mubr.bf16.mxu0 0
      %787 = vmatmul.mubr.bf16.gmra.mxu0 %v693
      %v788 = vpop.f32.mrf.mxu0
      %v789 = vadd.f32 0.0, %v788
      %v790 = vpop.f32.mrf.mxu0
      %v791 = vpop.f32.mrf.mxu0
      %v792 = vadd.f32 0.0, %v791
      %v793 = vpop.f32.mrf.mxu0
      %794 = vmatprep.mubr.bf16.mxu0 0
      %795 = vmatmul.mubr.bf16.gmra.mxu0 %v696
      %v796 = vpop.f32.mrf.mxu0
      %v797 = vadd.f32 0.0, %v796
      %v798 = vpop.f32.mrf.mxu0
      %v799 = vpop.f32.mrf.mxu0
      %v800 = vadd.f32 0.0, %v799
      %v801 = vpop.f32.mrf.mxu0
      %802 = vmatprep.mubr.bf16.mxu0 0
      %803 = vmatmul.mubr.bf16.gmra.mxu0 %v699
      %v804 = vpop.f32.mrf.mxu0
      %v805 = vadd.f32 0.0, %v804
      %v806 = vpop.f32.mrf.mxu0
      %v807 = vpop.f32.mrf.mxu0
      %v808 = vadd.f32 0.0, %v807
      %v809 = vpop.f32.mrf.mxu0
      %810 = vmatprep.mubr.bf16.mxu0 0
      %811 = vmatmul.mubr.bf16.gmra.mxu0 %v702
      %v812 = vpop.f32.mrf.mxu0
      %v813 = vadd.f32 0.0, %v812
      %v814 = vpop.f32.mrf.mxu0
      %v815 = vpop.f32.mrf.mxu0
      %v816 = vadd.f32 0.0, %v815
      %v817 = vpop.f32.mrf.mxu0
      %818 = vmatprep.mubr.bf16.mxu0 0
      %819 = vmatmul.mubr.bf16.gmra.mxu0 %v705
      %v820 = vpop.f32.mrf.mxu0
      %v821 = vadd.f32 0.0, %v820
      %v822 = vpop.f32.mrf.mxu0
      %v823 = vpop.f32.mrf.mxu0
      %v824 = vadd.f32 0.0, %v823
      %v825 = vpop.f32.mrf.mxu0
      %826 = vmatprep.mubr.bf16.mxu0 0
      %827 = vmatmul.mubr.bf16.gmra.mxu0 %v708
      %v828 = vpop.f32.mrf.mxu0
      %v829 = vadd.f32 0.0, %v828
      %v830 = vpop.f32.mrf.mxu0
      %v831 = vpop.f32.mrf.mxu0
      %v832 = vadd.f32 0.0, %v831
      %v833 = vpop.f32.mrf.mxu0
      %834 = vmatprep.mubr.bf16.mxu0 0
      %835 = vmatmul.mubr.bf16.gmra.mxu0 %v711
      %v836 = vpop.f32.mrf.mxu0
      %v837 = vadd.f32 0.0, %v836
      %v838 = vpop.f32.mrf.mxu0
      %v839 = vpop.f32.mrf.mxu0
      %v840 = vadd.f32 0.0, %v839
      %v841 = vpop.f32.mrf.mxu0
      %842 = vmatprep.mubr.bf16.mxu0 0
      %843 = vmatmul.mubr.bf16.gmra.mxu0 %v714
      %v844 = vpop.f32.mrf.mxu0
      %v845 = vadd.f32 0.0, %v844
      %v846 = vpop.f32.mrf.mxu0
      %v847 = vpop.f32.mrf.mxu0
      %v848 = vadd.f32 0.0, %v847
      %v849 = vpop.f32.mrf.mxu0
      %850 = vmatprep.mubr.bf16.mxu0 0
      %851 = vmatmul.mubr.bf16.gmra.mxu0 %v717
      %v852 = vpop.f32.mrf.mxu0
      %v853 = vadd.f32 0.0, %v852
      %v854 = vpop.f32.mrf.mxu0
      %v855 = vpop.f32.mrf.mxu0
      %v856 = vadd.f32 0.0, %v855
      %v857 = vpop.f32.mrf.mxu0
      %858 = vmatprep.mubr.bf16.mxu0 0
      %859 = vmatmul.mubr.bf16.gmra.mxu0 %v720
      %v860 = vpop.f32.mrf.mxu0
      %v861 = vadd.f32 0.0, %v860
      %v862 = vpop.f32.mrf.mxu0
      %v863 = vpop.f32.mrf.mxu0
      %v864 = vadd.f32 0.0, %v863
      %v865 = vpop.f32.mrf.mxu0
      %866 = vmatprep.mubr.bf16.mxu0 0
      %867 = vmatmul.mubr.bf16.gmra.mxu0 %v723
      %v868 = vpop.f32.mrf.mxu0
      %v869 = vadd.f32 0.0, %v868
      %v870 = vpop.f32.mrf.mxu0
      %v871 = vpop.f32.mrf.mxu0
      %v872 = vadd.f32 0.0, %v871
      %v873 = vpop.f32.mrf.mxu0
      %874 = vmatprep.mubr.bf16.mxu0 0
      %875 = vmatmul.mubr.bf16.gmra.mxu0 %v726
      %v876 = vpop.f32.mrf.mxu0
      %v877 = vadd.f32 0.0, %v876
      %v878 = vpop.f32.mrf.mxu0
      %v879 = vpop.f32.mrf.mxu0
      %v880 = vadd.f32 0.0, %v879
      %v881 = vpop.f32.mrf.mxu0
      %882 = vmatprep.mubr.bf16.mxu0 0
      %883 = vmatmul.mubr.bf16.gmra.mxu0 %v729
      %v884 = vpop.f32.mrf.mxu0
      %v885 = vadd.f32 0.0, %v884
      %v886 = vpop.f32.mrf.mxu0
      %v887 = vpop.f32.mrf.mxu0
      %v888 = vadd.f32 0.0, %v887
      %v889 = vpop.f32.mrf.mxu0
      %890 = vmatprep.mubr.bf16.mxu0 0
      %891 = vmatmul.mubr.bf16.gmra.mxu0 %v732
      %v892 = vpop.f32.mrf.mxu0
      %v893 = vadd.f32 0.0, %v892
      %v894 = vpop.f32.mrf.mxu0
      %v895 = vpop.f32.mrf.mxu0
      %v896 = vadd.f32 0.0, %v895
      %v897 = vpop.f32.mrf.mxu0
      %898 = vdwg.mxu0
      %v931 = vunpack.c.l.b16 %v193
      %v932 = vunpack.c.l.b16 %v194
      %v933 = vunpack.c.l.b16 %v196
      %v934 = vunpack.c.l.b16 %v197
      %v935 = vunpack.c.l.b16 %v199
      %v936 = vunpack.c.l.b16 %v200
      %v937 = vunpack.c.l.b16 %v202
      %v938 = vunpack.c.l.b16 %v203
      %v939 = vunpack.c.l.b16 %v205
      %v940 = vunpack.c.l.b16 %v206
      %v941 = vunpack.c.l.b16 %v208
      %v942 = vunpack.c.l.b16 %v209
      %v943 = vunpack.c.l.b16 %v211
      %v944 = vunpack.c.l.b16 %v212
      %v945 = vunpack.c.l.b16 %v214
      %v946 = vunpack.c.l.b16 %v215
      %v947 = vunpack.c.l.b16 %v217
      %v948 = vunpack.c.l.b16 %v218
      %v949 = vunpack.c.l.b16 %v220
      %v950 = vunpack.c.l.b16 %v221
      %v951 = vunpack.c.l.b16 %v223
      %v952 = vunpack.c.l.b16 %v224
      %v953 = vunpack.c.l.b16 %v226
      %v954 = vunpack.c.l.b16 %v227
      %v955 = vunpack.c.l.b16 %v229
      %v956 = vunpack.c.l.b16 %v230
      %v957 = vunpack.c.l.b16 %v232
      %v958 = vunpack.c.l.b16 %v233
      %v959 = vunpack.c.l.b16 %v235
      %v960 = vunpack.c.l.b16 %v236
      %v961 = vunpack.c.l.b16 %v238
      %v962 = vunpack.c.l.b16 %v239
      %v963 = vpack.c.b16 %v932, %v931
      %v964 = vpack.c.b16 %v934, %v933
      %v965 = vpack.c.b16 %v936, %v935
      %v966 = vpack.c.b16 %v938, %v937
      %v967 = vpack.c.b16 %v940, %v939
      %v968 = vpack.c.b16 %v942, %v941
      %v969 = vpack.c.b16 %v944, %v943
      %v970 = vpack.c.b16 %v946, %v945
      %v971 = vpack.c.b16 %v948, %v947
      %v972 = vpack.c.b16 %v950, %v949
      %v973 = vpack.c.b16 %v952, %v951
      %v974 = vpack.c.b16 %v954, %v953
      %v975 = vpack.c.b16 %v956, %v955
      %v976 = vpack.c.b16 %v958, %v957
      %v977 = vpack.c.b16 %v960, %v959
      %v978 = vpack.c.b16 %v962, %v961
      %v980 = vsel %vm685, %v963, 0
      %v983 = vsel %vm685, %v964, 0
      %v986 = vsel %vm685, %v965, 0
      %v989 = vsel %vm685, %v966, 0
      %v992 = vsel %vm685, %v967, 0
      %v995 = vsel %vm685, %v968, 0
      %v998 = vsel %vm685, %v969, 0
      %v1001 = vsel %vm685, %v970, 0
      %v1004 = vsel %vm685, %v971, 0
      %v1007 = vsel %vm685, %v972, 0
      %v1010 = vsel %vm685, %v973, 0
      %v1013 = vsel %vm685, %v974, 0
      %v1016 = vsel %vm685, %v975, 0
      %v1019 = vsel %vm685, %v976, 0
      %v1022 = vsel %vm685, %v977, 0
      %v1025 = vsel %vm685, %v978, 0
      %v1028 = vsel %vm734, %v247, 0
      %1030 = vmatprep.subr.bf16.mxu0 0
      %1031 = vmatpush1.bf16.msra.mxu0 0
      %1032 = vmatprep.subr.bf16.mxu0 0
      %1033 = vmatpush1.bf16.msra.mxu0 0
      %1034 = vmatprep.subr.bf16.mxu0 0
      %1035 = vmatpush1.bf16.msra.mxu0 0
      %1036 = vmatprep.subr.bf16.mxu0 0
      %1037 = vmatpush1.bf16.msra.mxu0 0
      %1038 = vmatprep.subr.bf16.mxu0 0
      %1039 = vmatpush1.bf16.msra.mxu0 0
      %1040 = vmatprep.subr.bf16.mxu0 0
      %1041 = vmatpush1.bf16.msra.mxu0 0
      %1042 = vmatprep.subr.bf16.mxu0 0
      %1043 = vmatpush1.bf16.msra.mxu0 0
      %1044 = vmatprep.subr.bf16.mxu0 0
      %1045 = vmatpush1.bf16.msra.mxu0 %v1028
      %1046 = vmatprep.subr.bf16.mxu0 0
      %1047 = vmatpush2.bf16.msra.mxu0 0
      %1048 = vmatprep.subr.bf16.mxu0 0
      %1049 = vmatpush2.bf16.msra.mxu0 0
      %1050 = vmatprep.subr.bf16.mxu0 0
      %1051 = vmatpush2.bf16.msra.mxu0 0
      %1052 = vmatprep.subr.bf16.mxu0 0
      %1053 = vmatpush2.bf16.msra.mxu0 0
      %1054 = vmatprep.subr.bf16.mxu0 0
      %1055 = vmatpush2.bf16.msra.mxu0 0
      %1056 = vmatprep.subr.bf16.mxu0 0
      %1057 = vmatpush2.bf16.msra.mxu0 0
      %1058 = vmatprep.subr.bf16.mxu0 0
      %1059 = vmatpush2.bf16.msra.mxu0 0
      %1060 = vmatprep.subr.bf16.mxu0 0
      %1061 = vmatpush2.bf16.msra.mxu0 0
      %1062 = vmatprep.mubr.bf16.mxu0 0
      %1063 = vmatmul.mubr.bf16.gmra.mxu0 %v980
      %v1064 = vpop.f32.mrf.mxu0
      %v1065 = vadd.f32 %v773, %v1064
      %v1066 = vpop.f32.mrf.mxu0
      %v1067 = vpop.f32.mrf.mxu0
      %v1068 = vadd.f32 %v776, %v1067
      %v1069 = vpop.f32.mrf.mxu0
      %1070 = vmatprep.mubr.bf16.mxu0 0
      %1071 = vmatmul.mubr.bf16.gmra.mxu0 %v983
      %v1072 = vpop.f32.mrf.mxu0
      %v1073 = vadd.f32 %v781, %v1072
      %v1074 = vpop.f32.mrf.mxu0
      %v1075 = vpop.f32.mrf.mxu0
      %v1076 = vadd.f32 %v784, %v1075
      %v1077 = vpop.f32.mrf.mxu0
      %1078 = vmatprep.mubr.bf16.mxu0 0
      %1079 = vmatmul.mubr.bf16.gmra.mxu0 %v986
      %v1080 = vpop.f32.mrf.mxu0
      %v1081 = vadd.f32 %v789, %v1080
      %v1082 = vpop.f32.mrf.mxu0
      %v1083 = vpop.f32.mrf.mxu0
      %v1084 = vadd.f32 %v792, %v1083
      %v1085 = vpop.f32.mrf.mxu0
      %1086 = vmatprep.mubr.bf16.mxu0 0
      %1087 = vmatmul.mubr.bf16.gmra.mxu0 %v989
      %v1088 = vpop.f32.mrf.mxu0
      %v1089 = vadd.f32 %v797, %v1088
      %v1090 = vpop.f32.mrf.mxu0
      %v1091 = vpop.f32.mrf.mxu0
      %v1092 = vadd.f32 %v800, %v1091
      %v1093 = vpop.f32.mrf.mxu0
      %1094 = vmatprep.mubr.bf16.mxu0 0
      %1095 = vmatmul.mubr.bf16.gmra.mxu0 %v992
      %v1096 = vpop.f32.mrf.mxu0
      %v1097 = vadd.f32 %v805, %v1096
      %v1098 = vpop.f32.mrf.mxu0
      %v1099 = vpop.f32.mrf.mxu0
      %v1100 = vadd.f32 %v808, %v1099
      %v1101 = vpop.f32.mrf.mxu0
      %1102 = vmatprep.mubr.bf16.mxu0 0
      %1103 = vmatmul.mubr.bf16.gmra.mxu0 %v995
      %v1104 = vpop.f32.mrf.mxu0
      %v1105 = vadd.f32 %v813, %v1104
      %v1106 = vpop.f32.mrf.mxu0
      %v1107 = vpop.f32.mrf.mxu0
      %v1108 = vadd.f32 %v816, %v1107
      %v1109 = vpop.f32.mrf.mxu0
      %1110 = vmatprep.mubr.bf16.mxu0 0
      %1111 = vmatmul.mubr.bf16.gmra.mxu0 %v998
      %v1112 = vpop.f32.mrf.mxu0
      %v1113 = vadd.f32 %v821, %v1112
      %v1114 = vpop.f32.mrf.mxu0
      %v1115 = vpop.f32.mrf.mxu0
      %v1116 = vadd.f32 %v824, %v1115
      %v1117 = vpop.f32.mrf.mxu0
      %1118 = vmatprep.mubr.bf16.mxu0 0
      %1119 = vmatmul.mubr.bf16.gmra.mxu0 %v1001
      %v1120 = vpop.f32.mrf.mxu0
      %v1121 = vadd.f32 %v829, %v1120
      %v1122 = vpop.f32.mrf.mxu0
      %v1123 = vpop.f32.mrf.mxu0
      %v1124 = vadd.f32 %v832, %v1123
      %v1125 = vpop.f32.mrf.mxu0
      %1126 = vmatprep.mubr.bf16.mxu0 0
      %1127 = vmatmul.mubr.bf16.gmra.mxu0 %v1004
      %v1128 = vpop.f32.mrf.mxu0
      %v1129 = vadd.f32 %v837, %v1128
      %v1130 = vpop.f32.mrf.mxu0
      %v1131 = vpop.f32.mrf.mxu0
      %v1132 = vadd.f32 %v840, %v1131
      %v1133 = vpop.f32.mrf.mxu0
      %1134 = vmatprep.mubr.bf16.mxu0 0
      %1135 = vmatmul.mubr.bf16.gmra.mxu0 %v1007
      %v1136 = vpop.f32.mrf.mxu0
      %v1137 = vadd.f32 %v845, %v1136
      %v1138 = vpop.f32.mrf.mxu0
      %v1139 = vpop.f32.mrf.mxu0
      %v1140 = vadd.f32 %v848, %v1139
      %v1141 = vpop.f32.mrf.mxu0
      %1142 = vmatprep.mubr.bf16.mxu0 0
      %1143 = vmatmul.mubr.bf16.gmra.mxu0 %v1010
      %v1144 = vpop.f32.mrf.mxu0
      %v1145 = vadd.f32 %v853, %v1144
      %v1146 = vpop.f32.mrf.mxu0
      %v1147 = vpop.f32.mrf.mxu0
      %v1148 = vadd.f32 %v856, %v1147
      %v1149 = vpop.f32.mrf.mxu0
      %1150 = vmatprep.mubr.bf16.mxu0 0
      %1151 = vmatmul.mubr.bf16.gmra.mxu0 %v1013
      %v1152 = vpop.f32.mrf.mxu0
      %v1153 = vadd.f32 %v861, %v1152
      %v1154 = vpop.f32.mrf.mxu0
      %v1155 = vpop.f32.mrf.mxu0
      %v1156 = vadd.f32 %v864, %v1155
      %v1157 = vpop.f32.mrf.mxu0
      %1158 = vmatprep.mubr.bf16.mxu0 0
      %1159 = vmatmul.mubr.bf16.gmra.mxu0 %v1016
      %v1160 = vpop.f32.mrf.mxu0
      %v1161 = vadd.f32 %v869, %v1160
      %v1162 = vpop.f32.mrf.mxu0
      %v1163 = vpop.f32.mrf.mxu0
      %v1164 = vadd.f32 %v872, %v1163
      %v1165 = vpop.f32.mrf.mxu0
      %1166 = vmatprep.mubr.bf16.mxu0 0
      %1167 = vmatmul.mubr.bf16.gmra.mxu0 %v1019
      %v1168 = vpop.f32.mrf.mxu0
      %v1169 = vadd.f32 %v877, %v1168
      %v1170 = vpop.f32.mrf.mxu0
      %v1171 = vpop.f32.mrf.mxu0
      %v1172 = vadd.f32 %v880, %v1171
      %v1173 = vpop.f32.mrf.mxu0
      %1174 = vmatprep.mubr.bf16.mxu0 0
      %1175 = vmatmul.mubr.bf16.gmra.mxu0 %v1022
      %v1176 = vpop.f32.mrf.mxu0
      %v1177 = vadd.f32 %v885, %v1176
      %v1178 = vpop.f32.mrf.mxu0
      %v1179 = vpop.f32.mrf.mxu0
      %v1180 = vadd.f32 %v888, %v1179
      %v1181 = vpop.f32.mrf.mxu0
      %1182 = vmatprep.mubr.bf16.mxu0 0
      %1183 = vmatmul.mubr.bf16.gmra.mxu0 %v1025
      %v1184 = vpop.f32.mrf.mxu0
      %v1185 = vadd.f32 %v893, %v1184
      %v1186 = vpop.f32.mrf.mxu0
      %v1187 = vpop.f32.mrf.mxu0
      %v1188 = vadd.f32 %v896, %v1187
      %v1189 = vpop.f32.mrf.mxu0
      %1190 = vdwg.mxu0
      %vm1207 = vcmask 1042432
      %vm1208 = vcmask 1046532
      %vm1209 = vmor %vm1207, %vm1208
      %v1210 = vrot.slane %v193, 5
      %v1211 = vrot.slane %v1210, 4
      %v1212 = vrot.slane %v194, 5
      %v1213 = vsel %vm1209, %v1211, %v1212
      %v1214 = vrot.slane %v1212, 4
      %v1215 = vrot.slane %v195, 5
      %v1216 = vsel %vm1209, %v1214, %v1215
      %v1217 = vrot.slane %v196, 5
      %v1218 = vrot.slane %v1217, 4
      %v1219 = vrot.slane %v197, 5
      %v1220 = vsel %vm1209, %v1218, %v1219
      %v1221 = vrot.slane %v1219, 4
      %v1222 = vrot.slane %v198, 5
      %v1223 = vsel %vm1209, %v1221, %v1222
      %v1224 = vrot.slane %v199, 5
      %v1225 = vrot.slane %v1224, 4
      %v1226 = vrot.slane %v200, 5
      %v1227 = vsel %vm1209, %v1225, %v1226
      %v1228 = vrot.slane %v1226, 4
      %v1229 = vrot.slane %v201, 5
      %v1230 = vsel %vm1209, %v1228, %v1229
      %v1231 = vrot.slane %v202, 5
      %v1232 = vrot.slane %v1231, 4
      %v1233 = vrot.slane %v203, 5
      %v1234 = vsel %vm1209, %v1232, %v1233
      %v1235 = vrot.slane %v1233, 4
      %v1236 = vrot.slane %v204, 5
      %v1237 = vsel %vm1209, %v1235, %v1236
      %v1238 = vrot.slane %v205, 5
      %v1239 = vrot.slane %v1238, 4
      %v1240 = vrot.slane %v206, 5
      %v1241 = vsel %vm1209, %v1239, %v1240
      %v1242 = vrot.slane %v1240, 4
      %v1243 = vrot.slane %v207, 5
      %v1244 = vsel %vm1209, %v1242, %v1243
      %v1245 = vrot.slane %v208, 5
      %v1246 = vrot.slane %v1245, 4
      %v1247 = vrot.slane %v209, 5
      %v1248 = vsel %vm1209, %v1246, %v1247
      %v1249 = vrot.slane %v1247, 4
      %v1250 = vrot.slane %v210, 5
      %v1251 = vsel %vm1209, %v1249, %v1250
      %v1252 = vrot.slane %v211, 5
      %v1253 = vrot.slane %v1252, 4
      %v1254 = vrot.slane %v212, 5
      %v1255 = vsel %vm1209, %v1253, %v1254
      %v1256 = vrot.slane %v1254, 4
      %v1257 = vrot.slane %v213, 5
      %v1258 = vsel %vm1209, %v1256, %v1257
      %v1259 = vrot.slane %v214, 5
      %v1260 = vrot.slane %v1259, 4
      %v1261 = vrot.slane %v215, 5
      %v1262 = vsel %vm1209, %v1260, %v1261
      %v1263 = vrot.slane %v1261, 4
      %v1264 = vrot.slane %v216, 5
      %v1265 = vsel %vm1209, %v1263, %v1264
      %v1266 = vrot.slane %v217, 5
      %v1267 = vrot.slane %v1266, 4
      %v1268 = vrot.slane %v218, 5
      %v1269 = vsel %vm1209, %v1267, %v1268
      %v1270 = vrot.slane %v1268, 4
      %v1271 = vrot.slane %v219, 5
      %v1272 = vsel %vm1209, %v1270, %v1271
      %v1273 = vrot.slane %v220, 5
      %v1274 = vrot.slane %v1273, 4
      %v1275 = vrot.slane %v221, 5
      %v1276 = vsel %vm1209, %v1274, %v1275
      %v1277 = vrot.slane %v1275, 4
      %v1278 = vrot.slane %v222, 5
      %v1279 = vsel %vm1209, %v1277, %v1278
      %v1280 = vrot.slane %v223, 5
      %v1281 = vrot.slane %v1280, 4
      %v1282 = vrot.slane %v224, 5
      %v1283 = vsel %vm1209, %v1281, %v1282
      %v1284 = vrot.slane %v1282, 4
      %v1285 = vrot.slane %v225, 5
      %v1286 = vsel %vm1209, %v1284, %v1285
      %v1287 = vrot.slane %v226, 5
      %v1288 = vrot.slane %v1287, 4
      %v1289 = vrot.slane %v227, 5
      %v1290 = vsel %vm1209, %v1288, %v1289
      %v1291 = vrot.slane %v1289, 4
      %v1292 = vrot.slane %v228, 5
      %v1293 = vsel %vm1209, %v1291, %v1292
      %v1294 = vrot.slane %v229, 5
      %v1295 = vrot.slane %v1294, 4
      %v1296 = vrot.slane %v230, 5
      %v1297 = vsel %vm1209, %v1295, %v1296
      %v1298 = vrot.slane %v1296, 4
      %v1299 = vrot.slane %v231, 5
      %v1300 = vsel %vm1209, %v1298, %v1299
      %v1301 = vrot.slane %v232, 5
      %v1302 = vrot.slane %v1301, 4
      %v1303 = vrot.slane %v233, 5
      %v1304 = vsel %vm1209, %v1302, %v1303
      %v1305 = vrot.slane %v1303, 4
      %v1306 = vrot.slane %v234, 5
      %v1307 = vsel %vm1209, %v1305, %v1306
      %v1308 = vrot.slane %v235, 5
      %v1309 = vrot.slane %v1308, 4
      %v1310 = vrot.slane %v236, 5
      %v1311 = vsel %vm1209, %v1309, %v1310
      %v1312 = vrot.slane %v1310, 4
      %v1313 = vrot.slane %v237, 5
      %v1314 = vsel %vm1209, %v1312, %v1313
      %v1315 = vrot.slane %v238, 5
      %v1316 = vrot.slane %v1315, 4
      %v1317 = vrot.slane %v239, 5
      %v1318 = vsel %vm1209, %v1316, %v1317
      %v1319 = vrot.slane %v1317, 4
      %v1320 = vrot.slane %v240, 5
      %v1321 = vsel %vm1209, %v1319, %v1320
      %s1322 = scalar_lea.vmem %s1, 4
      %v1323 = vld [vmem:[%s1322] sm:$0x3]
      %v1324 = vunpack.c.l.b16 %v1213
      %v1325 = vunpack.c.l.b16 %v1216
      %v1326 = vunpack.c.l.b16 %v1220
      %v1327 = vunpack.c.l.b16 %v1223
      %v1328 = vunpack.c.l.b16 %v1227
      %v1329 = vunpack.c.l.b16 %v1230
      %v1330 = vunpack.c.l.b16 %v1234
      %v1331 = vunpack.c.l.b16 %v1237
      %v1332 = vunpack.c.l.b16 %v1241
      %v1333 = vunpack.c.l.b16 %v1244
      %v1334 = vunpack.c.l.b16 %v1248
      %v1335 = vunpack.c.l.b16 %v1251
      %v1336 = vunpack.c.l.b16 %v1255
      %v1337 = vunpack.c.l.b16 %v1258
      %v1338 = vunpack.c.l.b16 %v1262
      %v1339 = vunpack.c.l.b16 %v1265
      %v1340 = vunpack.c.l.b16 %v1269
      %v1341 = vunpack.c.l.b16 %v1272
      %v1342 = vunpack.c.l.b16 %v1276
      %v1343 = vunpack.c.l.b16 %v1279
      %v1344 = vunpack.c.l.b16 %v1283
      %v1345 = vunpack.c.l.b16 %v1286
      %v1346 = vunpack.c.l.b16 %v1290
      %v1347 = vunpack.c.l.b16 %v1293
      %v1348 = vunpack.c.l.b16 %v1297
      %v1349 = vunpack.c.l.b16 %v1300
      %v1350 = vunpack.c.l.b16 %v1304
      %v1351 = vunpack.c.l.b16 %v1307
      %v1352 = vunpack.c.l.b16 %v1311
      %v1353 = vunpack.c.l.b16 %v1314
      %v1354 = vunpack.c.l.b16 %v1318
      %v1355 = vunpack.c.l.b16 %v1321
      %v1356 = vpack.c.b16 %v1325, %v1324
      %v1357 = vpack.c.b16 %v1327, %v1326
      %v1358 = vpack.c.b16 %v1329, %v1328
      %v1359 = vpack.c.b16 %v1331, %v1330
      %v1360 = vpack.c.b16 %v1333, %v1332
      %v1361 = vpack.c.b16 %v1335, %v1334
      %v1362 = vpack.c.b16 %v1337, %v1336
      %v1363 = vpack.c.b16 %v1339, %v1338
      %v1364 = vpack.c.b16 %v1341, %v1340
      %v1365 = vpack.c.b16 %v1343, %v1342
      %v1366 = vpack.c.b16 %v1345, %v1344
      %v1367 = vpack.c.b16 %v1347, %v1346
      %v1368 = vpack.c.b16 %v1349, %v1348
      %v1369 = vpack.c.b16 %v1351, %v1350
      %v1370 = vpack.c.b16 %v1353, %v1352
      %v1371 = vpack.c.b16 %v1355, %v1354
      %v1373 = vsel %vm685, %v1356, 0
      %v1376 = vsel %vm685, %v1357, 0
      %v1379 = vsel %vm685, %v1358, 0
      %v1382 = vsel %vm685, %v1359, 0
      %v1385 = vsel %vm685, %v1360, 0
      %v1388 = vsel %vm685, %v1361, 0
      %v1391 = vsel %vm685, %v1362, 0
      %v1394 = vsel %vm685, %v1363, 0
      %v1397 = vsel %vm685, %v1364, 0
      %v1400 = vsel %vm685, %v1365, 0
      %v1403 = vsel %vm685, %v1366, 0
      %v1406 = vsel %vm685, %v1367, 0
      %v1409 = vsel %vm685, %v1368, 0
      %v1412 = vsel %vm685, %v1369, 0
      %v1415 = vsel %vm685, %v1370, 0
      %v1418 = vsel %vm685, %v1371, 0
      %v1421 = vsel %vm734, %v1323, 0
      %1423 = vmatprep.subr.bf16.mxu0 0
      %1424 = vmatpush1.bf16.msra.mxu0 0
      %1425 = vmatprep.subr.bf16.mxu0 0
      %1426 = vmatpush1.bf16.msra.mxu0 0
      %1427 = vmatprep.subr.bf16.mxu0 0
      %1428 = vmatpush1.bf16.msra.mxu0 0
      %1429 = vmatprep.subr.bf16.mxu0 0
      %1430 = vmatpush1.bf16.msra.mxu0 0
      %1431 = vmatprep.subr.bf16.mxu0 0
      %1432 = vmatpush1.bf16.msra.mxu0 0
      %1433 = vmatprep.subr.bf16.mxu0 0
      %1434 = vmatpush1.bf16.msra.mxu0 0
      %1435 = vmatprep.subr.bf16.mxu0 0
      %1436 = vmatpush1.bf16.msra.mxu0 0
      %1437 = vmatprep.subr.bf16.mxu0 0
      %1438 = vmatpush1.bf16.msra.mxu0 %v1421
      %1439 = vmatprep.subr.bf16.mxu0 0
      %1440 = vmatpush2.bf16.msra.mxu0 0
      %1441 = vmatprep.subr.bf16.mxu0 0
      %1442 = vmatpush2.bf16.msra.mxu0 0
      %1443 = vmatprep.subr.bf16.mxu0 0
      %1444 = vmatpush2.bf16.msra.mxu0 0
      %1445 = vmatprep.subr.bf16.mxu0 0
      %1446 = vmatpush2.bf16.msra.mxu0 0
      %1447 = vmatprep.subr.bf16.mxu0 0
      %1448 = vmatpush2.bf16.msra.mxu0 0
      %1449 = vmatprep.subr.bf16.mxu0 0
      %1450 = vmatpush2.bf16.msra.mxu0 0
      %1451 = vmatprep.subr.bf16.mxu0 0
      %1452 = vmatpush2.bf16.msra.mxu0 0
      %1453 = vmatprep.subr.bf16.mxu0 0
      %1454 = vmatpush2.bf16.msra.mxu0 0
      %1455 = vmatprep.mubr.bf16.mxu0 0
      %1456 = vmatmul.mubr.bf16.gmra.mxu0 %v1373
      %v1457 = vpop.f32.mrf.mxu0
      %v1458 = vadd.f32 0.0, %v1457
      %v1459 = vpop.f32.mrf.mxu0
      %v1460 = vpop.f32.mrf.mxu0
      %v1461 = vadd.f32 0.0, %v1460
      %v1462 = vpop.f32.mrf.mxu0
      %1463 = vmatprep.mubr.bf16.mxu0 0
      %1464 = vmatmul.mubr.bf16.gmra.mxu0 %v1376
      %v1465 = vpop.f32.mrf.mxu0
      %v1466 = vadd.f32 0.0, %v1465
      %v1467 = vpop.f32.mrf.mxu0
      %v1468 = vpop.f32.mrf.mxu0
      %v1469 = vadd.f32 0.0, %v1468
      %v1470 = vpop.f32.mrf.mxu0
      %1471 = vmatprep.mubr.bf16.mxu0 0
      %1472 = vmatmul.mubr.bf16.gmra.mxu0 %v1379
      %v1473 = vpop.f32.mrf.mxu0
      %v1474 = vadd.f32 0.0, %v1473
      %v1475 = vpop.f32.mrf.mxu0
      %v1476 = vpop.f32.mrf.mxu0
      %v1477 = vadd.f32 0.0, %v1476
      %v1478 = vpop.f32.mrf.mxu0
      %1479 = vmatprep.mubr.bf16.mxu0 0
      %1480 = vmatmul.mubr.bf16.gmra.mxu0 %v1382
      %v1481 = vpop.f32.mrf.mxu0
      %v1482 = vadd.f32 0.0, %v1481
      %v1483 = vpop.f32.mrf.mxu0
      %v1484 = vpop.f32.mrf.mxu0
      %v1485 = vadd.f32 0.0, %v1484
      %v1486 = vpop.f32.mrf.mxu0
      %1487 = vmatprep.mubr.bf16.mxu0 0
      %1488 = vmatmul.mubr.bf16.gmra.mxu0 %v1385
      %v1489 = vpop.f32.mrf.mxu0
      %v1490 = vadd.f32 0.0, %v1489
      %v1491 = vpop.f32.mrf.mxu0
      %v1492 = vpop.f32.mrf.mxu0
      %v1493 = vadd.f32 0.0, %v1492
      %v1494 = vpop.f32.mrf.mxu0
      %1495 = vmatprep.mubr.bf16.mxu0 0
      %1496 = vmatmul.mubr.bf16.gmra.mxu0 %v1388
      %v1497 = vpop.f32.mrf.mxu0
      %v1498 = vadd.f32 0.0, %v1497
      %v1499 = vpop.f32.mrf.mxu0
      %v1500 = vpop.f32.mrf.mxu0
      %v1501 = vadd.f32 0.0, %v1500
      %v1502 = vpop.f32.mrf.mxu0
      %1503 = vmatprep.mubr.bf16.mxu0 0
      %1504 = vmatmul.mubr.bf16.gmra.mxu0 %v1391
      %v1505 = vpop.f32.mrf.mxu0
      %v1506 = vadd.f32 0.0, %v1505
      %v1507 = vpop.f32.mrf.mxu0
      %v1508 = vpop.f32.mrf.mxu0
      %v1509 = vadd.f32 0.0, %v1508
      %v1510 = vpop.f32.mrf.mxu0
      %1511 = vmatprep.mubr.bf16.mxu0 0
      %1512 = vmatmul.mubr.bf16.gmra.mxu0 %v1394
      %v1513 = vpop.f32.mrf.mxu0
      %v1514 = vadd.f32 0.0, %v1513
      %v1515 = vpop.f32.mrf.mxu0
      %v1516 = vpop.f32.mrf.mxu0
      %v1517 = vadd.f32 0.0, %v1516
      %v1518 = vpop.f32.mrf.mxu0
      %1519 = vmatprep.mubr.bf16.mxu0 0
      %1520 = vmatmul.mubr.bf16.gmra.mxu0 %v1397
      %v1521 = vpop.f32.mrf.mxu0
      %v1522 = vadd.f32 0.0, %v1521
      %v1523 = vpop.f32.mrf.mxu0
      %v1524 = vpop.f32.mrf.mxu0
      %v1525 = vadd.f32 0.0, %v1524
      %v1526 = vpop.f32.mrf.mxu0
      %1527 = vmatprep.mubr.bf16.mxu0 0
      %1528 = vmatmul.mubr.bf16.gmra.mxu0 %v1400
      %v1529 = vpop.f32.mrf.mxu0
      %v1530 = vadd.f32 0.0, %v1529
      %v1531 = vpop.f32.mrf.mxu0
      %v1532 = vpop.f32.mrf.mxu0
      %v1533 = vadd.f32 0.0, %v1532
      %v1534 = vpop.f32.mrf.mxu0
      %1535 = vmatprep.mubr.bf16.mxu0 0
      %1536 = vmatmul.mubr.bf16.gmra.mxu0 %v1403
      %v1537 = vpop.f32.mrf.mxu0
      %v1538 = vadd.f32 0.0, %v1537
      %v1539 = vpop.f32.mrf.mxu0
      %v1540 = vpop.f32.mrf.mxu0
      %v1541 = vadd.f32 0.0, %v1540
      %v1542 = vpop.f32.mrf.mxu0
      %1543 = vmatprep.mubr.bf16.mxu0 0
      %1544 = vmatmul.mubr.bf16.gmra.mxu0 %v1406
      %v1545 = vpop.f32.mrf.mxu0
      %v1546 = vadd.f32 0.0, %v1545
      %v1547 = vpop.f32.mrf.mxu0
      %v1548 = vpop.f32.mrf.mxu0
      %v1549 = vadd.f32 0.0, %v1548
      %v1550 = vpop.f32.mrf.mxu0
      %1551 = vmatprep.mubr.bf16.mxu0 0
      %1552 = vmatmul.mubr.bf16.gmra.mxu0 %v1409
      %v1553 = vpop.f32.mrf.mxu0
      %v1554 = vadd.f32 0.0, %v1553
      %v1555 = vpop.f32.mrf.mxu0
      %v1556 = vpop.f32.mrf.mxu0
      %v1557 = vadd.f32 0.0, %v1556
      %v1558 = vpop.f32.mrf.mxu0
      %1559 = vmatprep.mubr.bf16.mxu0 0
      %1560 = vmatmul.mubr.bf16.gmra.mxu0 %v1412
      %v1561 = vpop.f32.mrf.mxu0
      %v1562 = vadd.f32 0.0, %v1561
      %v1563 = vpop.f32.mrf.mxu0
      %v1564 = vpop.f32.mrf.mxu0
      %v1565 = vadd.f32 0.0, %v1564
      %v1566 = vpop.f32.mrf.mxu0
      %1567 = vmatprep.mubr.bf16.mxu0 0
      %1568 = vmatmul.mubr.bf16.gmra.mxu0 %v1415
      %v1569 = vpop.f32.mrf.mxu0
      %v1570 = vadd.f32 0.0, %v1569
      %v1571 = vpop.f32.mrf.mxu0
      %v1572 = vpop.f32.mrf.mxu0
      %v1573 = vadd.f32 0.0, %v1572
      %v1574 = vpop.f32.mrf.mxu0
      %1575 = vmatprep.mubr.bf16.mxu0 0
      %1576 = vmatmul.mubr.bf16.gmra.mxu0 %v1418
      %v1577 = vpop.f32.mrf.mxu0
      %v1578 = vadd.f32 0.0, %v1577
      %v1579 = vpop.f32.mrf.mxu0
      %v1580 = vpop.f32.mrf.mxu0
      %v1581 = vadd.f32 0.0, %v1580
      %v1582 = vpop.f32.mrf.mxu0
      %1583 = vdwg.mxu0
      %v1584 = vadd.f32 %v1065, %v1458
      %v1585 = vadd.f32 %v1068, %v1461
      %v1586 = vadd.f32 %v1073, %v1466
      %v1587 = vadd.f32 %v1076, %v1469
      %v1588 = vadd.f32 %v1081, %v1474
      %v1589 = vadd.f32 %v1084, %v1477
      %v1590 = vadd.f32 %v1089, %v1482
      %v1591 = vadd.f32 %v1092, %v1485
      %v1592 = vadd.f32 %v1097, %v1490
      %v1593 = vadd.f32 %v1100, %v1493
      %v1594 = vadd.f32 %v1105, %v1498
      %v1595 = vadd.f32 %v1108, %v1501
      %v1596 = vadd.f32 %v1113, %v1506
      %v1597 = vadd.f32 %v1116, %v1509
      %v1598 = vadd.f32 %v1121, %v1514
      %v1599 = vadd.f32 %v1124, %v1517
      %v1600 = vadd.f32 %v1129, %v1522
      %v1601 = vadd.f32 %v1132, %v1525
      %v1602 = vadd.f32 %v1137, %v1530
      %v1603 = vadd.f32 %v1140, %v1533
      %v1604 = vadd.f32 %v1145, %v1538
      %v1605 = vadd.f32 %v1148, %v1541
      %v1606 = vadd.f32 %v1153, %v1546
      %v1607 = vadd.f32 %v1156, %v1549
      %v1608 = vadd.f32 %v1161, %v1554
      %v1609 = vadd.f32 %v1164, %v1557
      %v1610 = vadd.f32 %v1169, %v1562
      %v1611 = vadd.f32 %v1172, %v1565
      %v1612 = vadd.f32 %v1177, %v1570
      %v1613 = vadd.f32 %v1180, %v1573
      %v1614 = vadd.f32 %v1185, %v1578
      %v1615 = vadd.f32 %v1188, %v1581
      %s1616 = scalar_lea.vmem %s1, 6
      %v1617 = vld [vmem:[%s1616] sm:$0x3]
      %v1620 = vunpack.c.l.b16 %v241
      %v1621 = vunpack.c.l.b16 %v242
      %v1622 = vpack.c.b16 %v1621, %v1620
      %v1624 = vsel %vm685, %v1622, 0
      %v1627 = vsel %vm734, %v1617, 0
      %1629 = vmatprep.subr.bf16.mxu0 0
      %1630 = vmatpush1.bf16.msra.mxu0 0
      %1631 = vmatprep.subr.bf16.mxu0 0
      %1632 = vmatpush1.bf16.msra.mxu0 0
      %1633 = vmatprep.subr.bf16.mxu0 0
      %1634 = vmatpush1.bf16.msra.mxu0 0
      %1635 = vmatprep.subr.bf16.mxu0 0
      %1636 = vmatpush1.bf16.msra.mxu0 0
      %1637 = vmatprep.subr.bf16.mxu0 0
      %1638 = vmatpush1.bf16.msra.mxu0 0
      %1639 = vmatprep.subr.bf16.mxu0 0
      %1640 = vmatpush1.bf16.msra.mxu0 0
      %1641 = vmatprep.subr.bf16.mxu0 0
      %1642 = vmatpush1.bf16.msra.mxu0 0
      %1643 = vmatprep.subr.bf16.mxu0 0
      %1644 = vmatpush1.bf16.msra.mxu0 %v1627
      %1645 = vmatprep.subr.bf16.mxu0 0
      %1646 = vmatpush2.bf16.msra.mxu0 0
      %1647 = vmatprep.subr.bf16.mxu0 0
      %1648 = vmatpush2.bf16.msra.mxu0 0
      %1649 = vmatprep.subr.bf16.mxu0 0
      %1650 = vmatpush2.bf16.msra.mxu0 0
      %1651 = vmatprep.subr.bf16.mxu0 0
      %1652 = vmatpush2.bf16.msra.mxu0 0
      %1653 = vmatprep.subr.bf16.mxu0 0
      %1654 = vmatpush2.bf16.msra.mxu0 0
      %1655 = vmatprep.subr.bf16.mxu0 0
      %1656 = vmatpush2.bf16.msra.mxu0 0
      %1657 = vmatprep.subr.bf16.mxu0 0
      %1658 = vmatpush2.bf16.msra.mxu0 0
      %1659 = vmatprep.subr.bf16.mxu0 0
      %1660 = vmatpush2.bf16.msra.mxu0 0
      %1661 = vmatprep.mubr.bf16.mxu0 0
      %1662 = vmatmul.mubr.bf16.gmra.mxu0 %v983
      %v1663 = vpop.f32.mrf.mxu0
      %v1664 = vadd.f32 0.0, %v1663
      %v1665 = vpop.f32.mrf.mxu0
      %v1666 = vpop.f32.mrf.mxu0
      %v1667 = vadd.f32 0.0, %v1666
      %v1668 = vpop.f32.mrf.mxu0
      %1669 = vmatprep.mubr.bf16.mxu0 0
      %1670 = vmatmul.mubr.bf16.gmra.mxu0 %v986
      %v1671 = vpop.f32.mrf.mxu0
      %v1672 = vadd.f32 0.0, %v1671
      %v1673 = vpop.f32.mrf.mxu0
      %v1674 = vpop.f32.mrf.mxu0
      %v1675 = vadd.f32 0.0, %v1674
      %v1676 = vpop.f32.mrf.mxu0
      %1677 = vmatprep.mubr.bf16.mxu0 0
      %1678 = vmatmul.mubr.bf16.gmra.mxu0 %v989
      %v1679 = vpop.f32.mrf.mxu0
      %v1680 = vadd.f32 0.0, %v1679
      %v1681 = vpop.f32.mrf.mxu0
      %v1682 = vpop.f32.mrf.mxu0
      %v1683 = vadd.f32 0.0, %v1682
      %v1684 = vpop.f32.mrf.mxu0
      %1685 = vmatprep.mubr.bf16.mxu0 0
      %1686 = vmatmul.mubr.bf16.gmra.mxu0 %v992
      %v1687 = vpop.f32.mrf.mxu0
      %v1688 = vadd.f32 0.0, %v1687
      %v1689 = vpop.f32.mrf.mxu0
      %v1690 = vpop.f32.mrf.mxu0
      %v1691 = vadd.f32 0.0, %v1690
      %v1692 = vpop.f32.mrf.mxu0
      %1693 = vmatprep.mubr.bf16.mxu0 0
      %1694 = vmatmul.mubr.bf16.gmra.mxu0 %v995
      %v1695 = vpop.f32.mrf.mxu0
      %v1696 = vadd.f32 0.0, %v1695
      %v1697 = vpop.f32.mrf.mxu0
      %v1698 = vpop.f32.mrf.mxu0
      %v1699 = vadd.f32 0.0, %v1698
      %v1700 = vpop.f32.mrf.mxu0
      %1701 = vmatprep.mubr.bf16.mxu0 0
      %1702 = vmatmul.mubr.bf16.gmra.mxu0 %v998
      %v1703 = vpop.f32.mrf.mxu0
      %v1704 = vadd.f32 0.0, %v1703
      %v1705 = vpop.f32.mrf.mxu0
      %v1706 = vpop.f32.mrf.mxu0
      %v1707 = vadd.f32 0.0, %v1706
      %v1708 = vpop.f32.mrf.mxu0
      %1709 = vmatprep.mubr.bf16.mxu0 0
      %1710 = vmatmul.mubr.bf16.gmra.mxu0 %v1001
      %v1711 = vpop.f32.mrf.mxu0
      %v1712 = vadd.f32 0.0, %v1711
      %v1713 = vpop.f32.mrf.mxu0
      %v1714 = vpop.f32.mrf.mxu0
      %v1715 = vadd.f32 0.0, %v1714
      %v1716 = vpop.f32.mrf.mxu0
      %1717 = vmatprep.mubr.bf16.mxu0 0
      %1718 = vmatmul.mubr.bf16.gmra.mxu0 %v1004
      %v1719 = vpop.f32.mrf.mxu0
      %v1720 = vadd.f32 0.0, %v1719
      %v1721 = vpop.f32.mrf.mxu0
      %v1722 = vpop.f32.mrf.mxu0
      %v1723 = vadd.f32 0.0, %v1722
      %v1724 = vpop.f32.mrf.mxu0
      %1725 = vmatprep.mubr.bf16.mxu0 0
      %1726 = vmatmul.mubr.bf16.gmra.mxu0 %v1007
      %v1727 = vpop.f32.mrf.mxu0
      %v1728 = vadd.f32 0.0, %v1727
      %v1729 = vpop.f32.mrf.mxu0
      %v1730 = vpop.f32.mrf.mxu0
      %v1731 = vadd.f32 0.0, %v1730
      %v1732 = vpop.f32.mrf.mxu0
      %1733 = vmatprep.mubr.bf16.mxu0 0
      %1734 = vmatmul.mubr.bf16.gmra.mxu0 %v1010
      %v1735 = vpop.f32.mrf.mxu0
      %v1736 = vadd.f32 0.0, %v1735
      %v1737 = vpop.f32.mrf.mxu0
      %v1738 = vpop.f32.mrf.mxu0
      %v1739 = vadd.f32 0.0, %v1738
      %v1740 = vpop.f32.mrf.mxu0
      %1741 = vmatprep.mubr.bf16.mxu0 0
      %1742 = vmatmul.mubr.bf16.gmra.mxu0 %v1013
      %v1743 = vpop.f32.mrf.mxu0
      %v1744 = vadd.f32 0.0, %v1743
      %v1745 = vpop.f32.mrf.mxu0
      %v1746 = vpop.f32.mrf.mxu0
      %v1747 = vadd.f32 0.0, %v1746
      %v1748 = vpop.f32.mrf.mxu0
      %1749 = vmatprep.mubr.bf16.mxu0 0
      %1750 = vmatmul.mubr.bf16.gmra.mxu0 %v1016
      %v1751 = vpop.f32.mrf.mxu0
      %v1752 = vadd.f32 0.0, %v1751
      %v1753 = vpop.f32.mrf.mxu0
      %v1754 = vpop.f32.mrf.mxu0
      %v1755 = vadd.f32 0.0, %v1754
      %v1756 = vpop.f32.mrf.mxu0
      %1757 = vmatprep.mubr.bf16.mxu0 0
      %1758 = vmatmul.mubr.bf16.gmra.mxu0 %v1019
      %v1759 = vpop.f32.mrf.mxu0
      %v1760 = vadd.f32 0.0, %v1759
      %v1761 = vpop.f32.mrf.mxu0
      %v1762 = vpop.f32.mrf.mxu0
      %v1763 = vadd.f32 0.0, %v1762
      %v1764 = vpop.f32.mrf.mxu0
      %1765 = vmatprep.mubr.bf16.mxu0 0
      %1766 = vmatmul.mubr.bf16.gmra.mxu0 %v1022
      %v1767 = vpop.f32.mrf.mxu0
      %v1768 = vadd.f32 0.0, %v1767
      %v1769 = vpop.f32.mrf.mxu0
      %v1770 = vpop.f32.mrf.mxu0
      %v1771 = vadd.f32 0.0, %v1770
      %v1772 = vpop.f32.mrf.mxu0
      %1773 = vmatprep.mubr.bf16.mxu0 0
      %1774 = vmatmul.mubr.bf16.gmra.mxu0 %v1025
      %v1775 = vpop.f32.mrf.mxu0
      %v1776 = vadd.f32 0.0, %v1775
      %v1777 = vpop.f32.mrf.mxu0
      %v1778 = vpop.f32.mrf.mxu0
      %v1779 = vadd.f32 0.0, %v1778
      %v1780 = vpop.f32.mrf.mxu0
      %1781 = vmatprep.mubr.bf16.mxu0 0
      %1782 = vmatmul.mubr.bf16.gmra.mxu0 %v1624
      %v1783 = vpop.f32.mrf.mxu0
      %v1784 = vadd.f32 0.0, %v1783
      %v1785 = vpop.f32.mrf.mxu0
      %v1786 = vpop.f32.mrf.mxu0
      %v1787 = vadd.f32 0.0, %v1786
      %v1788 = vpop.f32.mrf.mxu0
      %1789 = vdwg.mxu0
      %v1790 = vadd.f32 %v1584, %v1664
      %v1791 = vadd.f32 %v1585, %v1667
      %v1792 = vadd.f32 %v1586, %v1672
      %v1793 = vadd.f32 %v1587, %v1675
      %v1794 = vadd.f32 %v1588, %v1680
      %v1795 = vadd.f32 %v1589, %v1683
      %v1796 = vadd.f32 %v1590, %v1688
      %v1797 = vadd.f32 %v1591, %v1691
      %v1798 = vadd.f32 %v1592, %v1696
      %v1799 = vadd.f32 %v1593, %v1699
      %v1800 = vadd.f32 %v1594, %v1704
      %v1801 = vadd.f32 %v1595, %v1707
      %v1802 = vadd.f32 %v1596, %v1712
      %v1803 = vadd.f32 %v1597, %v1715
      %v1804 = vadd.f32 %v1598, %v1720
      %v1805 = vadd.f32 %v1599, %v1723
      %v1806 = vadd.f32 %v1600, %v1728
      %v1807 = vadd.f32 %v1601, %v1731
      %v1808 = vadd.f32 %v1602, %v1736
      %v1809 = vadd.f32 %v1603, %v1739
      %v1810 = vadd.f32 %v1604, %v1744
      %v1811 = vadd.f32 %v1605, %v1747
      %v1812 = vadd.f32 %v1606, %v1752
      %v1813 = vadd.f32 %v1607, %v1755
      %v1814 = vadd.f32 %v1608, %v1760
      %v1815 = vadd.f32 %v1609, %v1763
      %v1816 = vadd.f32 %v1610, %v1768
      %v1817 = vadd.f32 %v1611, %v1771
      %v1818 = vadd.f32 %v1612, %v1776
      %v1819 = vadd.f32 %v1613, %v1779
      %v1820 = vadd.f32 %v1614, %v1784
      %v1821 = vadd.f32 %v1615, %v1787
      %v1823 = vshrl.u32 %v241, 16
      %v1825 = vrot.slane %v1823, 4
      %v1826 = vshll.u32 %v241, 16
      %v1828 = vrot.slane %v1826, 5
      %v1829 = vor.u32 %v1825, %v1828
      %v1830 = vrot.slane %v1829, 4
      %v1832 = vshll.u32 %v242, 16
      %v1834 = vrot.slane %v1832, 5
      %v1835 = vsel %vm250, %v1830, %v1834
      %v1836 = vshrl.u32 %v242, 16
      %v1838 = vrot.slane %v1836, 4
      %v1839 = vor.u32 %v1838, %v1834
      %v1840 = vrot.slane %v1839, 4
      %v1842 = vshll.u32 %v243, 16
      %v1844 = vrot.slane %v1842, 5
      %v1845 = vsel %vm250, %v1840, %v1844
      %s1846 = scalar_lea.vmem %s1, 8
      %v1847 = vld [vmem:[%s1846] sm:$0x3]
      %v1848 = vunpack.c.l.b16 %v1835
      %v1849 = vunpack.c.l.b16 %v1845
      %v1850 = vpack.c.b16 %v1849, %v1848
      %v1852 = vsel %vm685, %v1850, 0
      %v1855 = vsel %vm734, %v1847, 0
      %1857 = vmatprep.subr.bf16.mxu0 0
      %1858 = vmatpush1.bf16.msra.mxu0 0
      %1859 = vmatprep.subr.bf16.mxu0 0
      %1860 = vmatpush1.bf16.msra.mxu0 0
      %1861 = vmatprep.subr.bf16.mxu0 0
      %1862 = vmatpush1.bf16.msra.mxu0 0
      %1863 = vmatprep.subr.bf16.mxu0 0
      %1864 = vmatpush1.bf16.msra.mxu0 0
      %1865 = vmatprep.subr.bf16.mxu0 0
      %1866 = vmatpush1.bf16.msra.mxu0 0
      %1867 = vmatprep.subr.bf16.mxu0 0
      %1868 = vmatpush1.bf16.msra.mxu0 0
      %1869 = vmatprep.subr.bf16.mxu0 0
      %1870 = vmatpush1.bf16.msra.mxu0 0
      %1871 = vmatprep.subr.bf16.mxu0 0
      %1872 = vmatpush1.bf16.msra.mxu0 %v1855
      %1873 = vmatprep.subr.bf16.mxu0 0
      %1874 = vmatpush2.bf16.msra.mxu0 0
      %1875 = vmatprep.subr.bf16.mxu0 0
      %1876 = vmatpush2.bf16.msra.mxu0 0
      %1877 = vmatprep.subr.bf16.mxu0 0
      %1878 = vmatpush2.bf16.msra.mxu0 0
      %1879 = vmatprep.subr.bf16.mxu0 0
      %1880 = vmatpush2.bf16.msra.mxu0 0
      %1881 = vmatprep.subr.bf16.mxu0 0
      %1882 = vmatpush2.bf16.msra.mxu0 0
      %1883 = vmatprep.subr.bf16.mxu0 0
      %1884 = vmatpush2.bf16.msra.mxu0 0
      %1885 = vmatprep.subr.bf16.mxu0 0
      %1886 = vmatpush2.bf16.msra.mxu0 0
      %1887 = vmatprep.subr.bf16.mxu0 0
      %1888 = vmatpush2.bf16.msra.mxu0 0
      %1889 = vmatprep.mubr.bf16.mxu0 0
      %1890 = vmatmul.mubr.bf16.gmra.mxu0 %v690
      %v1891 = vpop.f32.mrf.mxu0
      %v1892 = vadd.f32 0.0, %v1891
      %v1893 = vpop.f32.mrf.mxu0
      %v1894 = vpop.f32.mrf.mxu0
      %v1895 = vadd.f32 0.0, %v1894
      %v1896 = vpop.f32.mrf.mxu0
      %1897 = vmatprep.mubr.bf16.mxu0 0
      %1898 = vmatmul.mubr.bf16.gmra.mxu0 %v693
      %v1899 = vpop.f32.mrf.mxu0
      %v1900 = vadd.f32 0.0, %v1899
      %v1901 = vpop.f32.mrf.mxu0
      %v1902 = vpop.f32.mrf.mxu0
      %v1903 = vadd.f32 0.0, %v1902
      %v1904 = vpop.f32.mrf.mxu0
      %1905 = vmatprep.mubr.bf16.mxu0 0
      %1906 = vmatmul.mubr.bf16.gmra.mxu0 %v696
      %v1907 = vpop.f32.mrf.mxu0
      %v1908 = vadd.f32 0.0, %v1907
      %v1909 = vpop.f32.mrf.mxu0
      %v1910 = vpop.f32.mrf.mxu0
      %v1911 = vadd.f32 0.0, %v1910
      %v1912 = vpop.f32.mrf.mxu0
      %1913 = vmatprep.mubr.bf16.mxu0 0
      %1914 = vmatmul.mubr.bf16.gmra.mxu0 %v699
      %v1915 = vpop.f32.mrf.mxu0
      %v1916 = vadd.f32 0.0, %v1915
      %v1917 = vpop.f32.mrf.mxu0
      %v1918 = vpop.f32.mrf.mxu0
      %v1919 = vadd.f32 0.0, %v1918
      %v1920 = vpop.f32.mrf.mxu0
      %1921 = vmatprep.mubr.bf16.mxu0 0
      %1922 = vmatmul.mubr.bf16.gmra.mxu0 %v702
      %v1923 = vpop.f32.mrf.mxu0
      %v1924 = vadd.f32 0.0, %v1923
      %v1925 = vpop.f32.mrf.mxu0
      %v1926 = vpop.f32.mrf.mxu0
      %v1927 = vadd.f32 0.0, %v1926
      %v1928 = vpop.f32.mrf.mxu0
      %1929 = vmatprep.mubr.bf16.mxu0 0
      %1930 = vmatmul.mubr.bf16.gmra.mxu0 %v705
      %v1931 = vpop.f32.mrf.mxu0
      %v1932 = vadd.f32 0.0, %v1931
      %v1933 = vpop.f32.mrf.mxu0
      %v1934 = vpop.f32.mrf.mxu0
      %v1935 = vadd.f32 0.0, %v1934
      %v1936 = vpop.f32.mrf.mxu0
      %1937 = vmatprep.mubr.bf16.mxu0 0
      %1938 = vmatmul.mubr.bf16.gmra.mxu0 %v708
      %v1939 = vpop.f32.mrf.mxu0
      %v1940 = vadd.f32 0.0, %v1939
      %v1941 = vpop.f32.mrf.mxu0
      %v1942 = vpop.f32.mrf.mxu0
      %v1943 = vadd.f32 0.0, %v1942
      %v1944 = vpop.f32.mrf.mxu0
      %1945 = vmatprep.mubr.bf16.mxu0 0
      %1946 = vmatmul.mubr.bf16.gmra.mxu0 %v711
      %v1947 = vpop.f32.mrf.mxu0
      %v1948 = vadd.f32 0.0, %v1947
      %v1949 = vpop.f32.mrf.mxu0
      %v1950 = vpop.f32.mrf.mxu0
      %v1951 = vadd.f32 0.0, %v1950
      %v1952 = vpop.f32.mrf.mxu0
      %1953 = vmatprep.mubr.bf16.mxu0 0
      %1954 = vmatmul.mubr.bf16.gmra.mxu0 %v714
      %v1955 = vpop.f32.mrf.mxu0
      %v1956 = vadd.f32 0.0, %v1955
      %v1957 = vpop.f32.mrf.mxu0
      %v1958 = vpop.f32.mrf.mxu0
      %v1959 = vadd.f32 0.0, %v1958
      %v1960 = vpop.f32.mrf.mxu0
      %1961 = vmatprep.mubr.bf16.mxu0 0
      %1962 = vmatmul.mubr.bf16.gmra.mxu0 %v717
      %v1963 = vpop.f32.mrf.mxu0
      %v1964 = vadd.f32 0.0, %v1963
      %v1965 = vpop.f32.mrf.mxu0
      %v1966 = vpop.f32.mrf.mxu0
      %v1967 = vadd.f32 0.0, %v1966
      %v1968 = vpop.f32.mrf.mxu0
      %1969 = vmatprep.mubr.bf16.mxu0 0
      %1970 = vmatmul.mubr.bf16.gmra.mxu0 %v720
      %v1971 = vpop.f32.mrf.mxu0
      %v1972 = vadd.f32 0.0, %v1971
      %v1973 = vpop.f32.mrf.mxu0
      %v1974 = vpop.f32.mrf.mxu0
      %v1975 = vadd.f32 0.0, %v1974
      %v1976 = vpop.f32.mrf.mxu0
      %1977 = vmatprep.mubr.bf16.mxu0 0
      %1978 = vmatmul.mubr.bf16.gmra.mxu0 %v723
      %v1979 = vpop.f32.mrf.mxu0
      %v1980 = vadd.f32 0.0, %v1979
      %v1981 = vpop.f32.mrf.mxu0
      %v1982 = vpop.f32.mrf.mxu0
      %v1983 = vadd.f32 0.0, %v1982
      %v1984 = vpop.f32.mrf.mxu0
      %1985 = vmatprep.mubr.bf16.mxu0 0
      %1986 = vmatmul.mubr.bf16.gmra.mxu0 %v726
      %v1987 = vpop.f32.mrf.mxu0
      %v1988 = vadd.f32 0.0, %v1987
      %v1989 = vpop.f32.mrf.mxu0
      %v1990 = vpop.f32.mrf.mxu0
      %v1991 = vadd.f32 0.0, %v1990
      %v1992 = vpop.f32.mrf.mxu0
      %1993 = vmatprep.mubr.bf16.mxu0 0
      %1994 = vmatmul.mubr.bf16.gmra.mxu0 %v729
      %v1995 = vpop.f32.mrf.mxu0
      %v1996 = vadd.f32 0.0, %v1995
      %v1997 = vpop.f32.mrf.mxu0
      %v1998 = vpop.f32.mrf.mxu0
      %v1999 = vadd.f32 0.0, %v1998
      %v2000 = vpop.f32.mrf.mxu0
      %2001 = vmatprep.mubr.bf16.mxu0 0
      %2002 = vmatmul.mubr.bf16.gmra.mxu0 %v732
      %v2003 = vpop.f32.mrf.mxu0
      %v2004 = vadd.f32 0.0, %v2003
      %v2005 = vpop.f32.mrf.mxu0
      %v2006 = vpop.f32.mrf.mxu0
      %v2007 = vadd.f32 0.0, %v2006
      %v2008 = vpop.f32.mrf.mxu0
      %2009 = vmatprep.mubr.bf16.mxu0 0
      %2010 = vmatmul.mubr.bf16.gmra.mxu0 %v1852
      %v2011 = vpop.f32.mrf.mxu0
      %v2012 = vadd.f32 0.0, %v2011
      %v2013 = vpop.f32.mrf.mxu0
      %v2014 = vpop.f32.mrf.mxu0
      %v2015 = vadd.f32 0.0, %v2014
      %v2016 = vpop.f32.mrf.mxu0
      %2017 = vdwg.mxu0
      %v2018 = vadd.f32 %v1790, %v1892
      %v2019 = vadd.f32 %v1791, %v1895
      %v2020 = vadd.f32 %v1792, %v1900
      %v2021 = vadd.f32 %v1793, %v1903
      %v2022 = vadd.f32 %v1794, %v1908
      %v2023 = vadd.f32 %v1795, %v1911
      %v2024 = vadd.f32 %v1796, %v1916
      %v2025 = vadd.f32 %v1797, %v1919
      %v2026 = vadd.f32 %v1798, %v1924
      %v2027 = vadd.f32 %v1799, %v1927
      %v2028 = vadd.f32 %v1800, %v1932
      %v2029 = vadd.f32 %v1801, %v1935
      %v2030 = vadd.f32 %v1802, %v1940
      %v2031 = vadd.f32 %v1803, %v1943
      %v2032 = vadd.f32 %v1804, %v1948
      %v2033 = vadd.f32 %v1805, %v1951
      %v2034 = vadd.f32 %v1806, %v1956
      %v2035 = vadd.f32 %v1807, %v1959
      %v2036 = vadd.f32 %v1808, %v1964
      %v2037 = vadd.f32 %v1809, %v1967
      %v2038 = vadd.f32 %v1810, %v1972
      %v2039 = vadd.f32 %v1811, %v1975
      %v2040 = vadd.f32 %v1812, %v1980
      %v2041 = vadd.f32 %v1813, %v1983
      %v2042 = vadd.f32 %v1814, %v1988
      %v2043 = vadd.f32 %v1815, %v1991
      %v2044 = vadd.f32 %v1816, %v1996
      %v2045 = vadd.f32 %v1817, %v1999
      %v2046 = vadd.f32 %v1818, %v2004
      %v2047 = vadd.f32 %v1819, %v2007
      %v2048 = vadd.f32 %v1820, %v2012
      %v2049 = vadd.f32 %v1821, %v2015
      %v2051 = vrot.slane %v241, 5
      %v2052 = vrot.slane %v2051, 4
      %v2053 = vrot.slane %v242, 5
      %v2054 = vsel %vm1209, %v2052, %v2053
      %v2055 = vrot.slane %v2053, 4
      %v2056 = vrot.slane %v243, 5
      %v2057 = vsel %vm1209, %v2055, %v2056
      %s2058 = scalar_lea.vmem %s1, 10
      %v2059 = vld [vmem:[%s2058] sm:$0x3]
      %v2060 = vunpack.c.l.b16 %v2054
      %v2061 = vunpack.c.l.b16 %v2057
      %v2062 = vpack.c.b16 %v2061, %v2060
      %v2064 = vsel %vm685, %v2062, 0
      %v2067 = vsel %vm734, %v2059, 0
      %2069 = vmatprep.subr.bf16.mxu0 0
      %2070 = vmatpush1.bf16.msra.mxu0 0
      %2071 = vmatprep.subr.bf16.mxu0 0
      %2072 = vmatpush1.bf16.msra.mxu0 0
      %2073 = vmatprep.subr.bf16.mxu0 0
      %2074 = vmatpush1.bf16.msra.mxu0 0
      %2075 = vmatprep.subr.bf16.mxu0 0
      %2076 = vmatpush1.bf16.msra.mxu0 0
      %2077 = vmatprep.subr.bf16.mxu0 0
      %2078 = vmatpush1.bf16.msra.mxu0 0
      %2079 = vmatprep.subr.bf16.mxu0 0
      %2080 = vmatpush1.bf16.msra.mxu0 0
      %2081 = vmatprep.subr.bf16.mxu0 0
      %2082 = vmatpush1.bf16.msra.mxu0 0
      %2083 = vmatprep.subr.bf16.mxu0 0
      %2084 = vmatpush1.bf16.msra.mxu0 %v2067
      %2085 = vmatprep.subr.bf16.mxu0 0
      %2086 = vmatpush2.bf16.msra.mxu0 0
      %2087 = vmatprep.subr.bf16.mxu0 0
      %2088 = vmatpush2.bf16.msra.mxu0 0
      %2089 = vmatprep.subr.bf16.mxu0 0
      %2090 = vmatpush2.bf16.msra.mxu0 0
      %2091 = vmatprep.subr.bf16.mxu0 0
      %2092 = vmatpush2.bf16.msra.mxu0 0
      %2093 = vmatprep.subr.bf16.mxu0 0
      %2094 = vmatpush2.bf16.msra.mxu0 0
      %2095 = vmatprep.subr.bf16.mxu0 0
      %2096 = vmatpush2.bf16.msra.mxu0 0
      %2097 = vmatprep.subr.bf16.mxu0 0
      %2098 = vmatpush2.bf16.msra.mxu0 0
      %2099 = vmatprep.subr.bf16.mxu0 0
      %2100 = vmatpush2.bf16.msra.mxu0 0
      %2101 = vmatprep.mubr.bf16.mxu0 0
      %2102 = vmatmul.mubr.bf16.gmra.mxu0 %v1376
      %v2103 = vpop.f32.mrf.mxu0
      %v2104 = vadd.f32 0.0, %v2103
      %v2105 = vpop.f32.mrf.mxu0
      %v2106 = vpop.f32.mrf.mxu0
      %v2107 = vadd.f32 0.0, %v2106
      %v2108 = vpop.f32.mrf.mxu0
      %2109 = vmatprep.mubr.bf16.mxu0 0
      %2110 = vmatmul.mubr.bf16.gmra.mxu0 %v1379
      %v2111 = vpop.f32.mrf.mxu0
      %v2112 = vadd.f32 0.0, %v2111
      %v2113 = vpop.f32.mrf.mxu0
      %v2114 = vpop.f32.mrf.mxu0
      %v2115 = vadd.f32 0.0, %v2114
      %v2116 = vpop.f32.mrf.mxu0
      %2117 = vmatprep.mubr.bf16.mxu0 0
      %2118 = vmatmul.mubr.bf16.gmra.mxu0 %v1382
      %v2119 = vpop.f32.mrf.mxu0
      %v2120 = vadd.f32 0.0, %v2119
      %v2121 = vpop.f32.mrf.mxu0
      %v2122 = vpop.f32.mrf.mxu0
      %v2123 = vadd.f32 0.0, %v2122
      %v2124 = vpop.f32.mrf.mxu0
      %2125 = vmatprep.mubr.bf16.mxu0 0
      %2126 = vmatmul.mubr.bf16.gmra.mxu0 %v1385
      %v2127 = vpop.f32.mrf.mxu0
      %v2128 = vadd.f32 0.0, %v2127
      %v2129 = vpop.f32.mrf.mxu0
      %v2130 = vpop.f32.mrf.mxu0
      %v2131 = vadd.f32 0.0, %v2130
      %v2132 = vpop.f32.mrf.mxu0
      %2133 = vmatprep.mubr.bf16.mxu0 0
      %2134 = vmatmul.mubr.bf16.gmra.mxu0 %v1388
      %v2135 = vpop.f32.mrf.mxu0
      %v2136 = vadd.f32 0.0, %v2135
      %v2137 = vpop.f32.mrf.mxu0
      %v2138 = vpop.f32.mrf.mxu0
      %v2139 = vadd.f32 0.0, %v2138
      %v2140 = vpop.f32.mrf.mxu0
      %2141 = vmatprep.mubr.bf16.mxu0 0
      %2142 = vmatmul.mubr.bf16.gmra.mxu0 %v1391
      %v2143 = vpop.f32.mrf.mxu0
      %v2144 = vadd.f32 0.0, %v2143
      %v2145 = vpop.f32.mrf.mxu0
      %v2146 = vpop.f32.mrf.mxu0
      %v2147 = vadd.f32 0.0, %v2146
      %v2148 = vpop.f32.mrf.mxu0
      %2149 = vmatprep.mubr.bf16.mxu0 0
      %2150 = vmatmul.mubr.bf16.gmra.mxu0 %v1394
      %v2151 = vpop.f32.mrf.mxu0
      %v2152 = vadd.f32 0.0, %v2151
      %v2153 = vpop.f32.mrf.mxu0
      %v2154 = vpop.f32.mrf.mxu0
      %v2155 = vadd.f32 0.0, %v2154
      %v2156 = vpop.f32.mrf.mxu0
      %2157 = vmatprep.mubr.bf16.mxu0 0
      %2158 = vmatmul.mubr.bf16.gmra.mxu0 %v1397
      %v2159 = vpop.f32.mrf.mxu0
      %v2160 = vadd.f32 0.0, %v2159
      %v2161 = vpop.f32.mrf.mxu0
      %v2162 = vpop.f32.mrf.mxu0
      %v2163 = vadd.f32 0.0, %v2162
      %v2164 = vpop.f32.mrf.mxu0
      %2165 = vmatprep.mubr.bf16.mxu0 0
      %2166 = vmatmul.mubr.bf16.gmra.mxu0 %v1400
      %v2167 = vpop.f32.mrf.mxu0
      %v2168 = vadd.f32 0.0, %v2167
      %v2169 = vpop.f32.mrf.mxu0
      %v2170 = vpop.f32.mrf.mxu0
      %v2171 = vadd.f32 0.0, %v2170
      %v2172 = vpop.f32.mrf.mxu0
      %2173 = vmatprep.mubr.bf16.mxu0 0
      %2174 = vmatmul.mubr.bf16.gmra.mxu0 %v1403
      %v2175 = vpop.f32.mrf.mxu0
      %v2176 = vadd.f32 0.0, %v2175
      %v2177 = vpop.f32.mrf.mxu0
      %v2178 = vpop.f32.mrf.mxu0
      %v2179 = vadd.f32 0.0, %v2178
      %v2180 = vpop.f32.mrf.mxu0
      %2181 = vmatprep.mubr.bf16.mxu0 0
      %2182 = vmatmul.mubr.bf16.gmra.mxu0 %v1406
      %v2183 = vpop.f32.mrf.mxu0
      %v2184 = vadd.f32 0.0, %v2183
      %v2185 = vpop.f32.mrf.mxu0
      %v2186 = vpop.f32.mrf.mxu0
      %v2187 = vadd.f32 0.0, %v2186
      %v2188 = vpop.f32.mrf.mxu0
      %2189 = vmatprep.mubr.bf16.mxu0 0
      %2190 = vmatmul.mubr.bf16.gmra.mxu0 %v1409
      %v2191 = vpop.f32.mrf.mxu0
      %v2192 = vadd.f32 0.0, %v2191
      %v2193 = vpop.f32.mrf.mxu0
      %v2194 = vpop.f32.mrf.mxu0
      %v2195 = vadd.f32 0.0, %v2194
      %v2196 = vpop.f32.mrf.mxu0
      %2197 = vmatprep.mubr.bf16.mxu0 0
      %2198 = vmatmul.mubr.bf16.gmra.mxu0 %v1412
      %v2199 = vpop.f32.mrf.mxu0
      %v2200 = vadd.f32 0.0, %v2199
      %v2201 = vpop.f32.mrf.mxu0
      %v2202 = vpop.f32.mrf.mxu0
      %v2203 = vadd.f32 0.0, %v2202
      %v2204 = vpop.f32.mrf.mxu0
      %2205 = vmatprep.mubr.bf16.mxu0 0
      %2206 = vmatmul.mubr.bf16.gmra.mxu0 %v1415
      %v2207 = vpop.f32.mrf.mxu0
      %v2208 = vadd.f32 0.0, %v2207
      %v2209 = vpop.f32.mrf.mxu0
      %v2210 = vpop.f32.mrf.mxu0
      %v2211 = vadd.f32 0.0, %v2210
      %v2212 = vpop.f32.mrf.mxu0
      %2213 = vmatprep.mubr.bf16.mxu0 0
      %2214 = vmatmul.mubr.bf16.gmra.mxu0 %v1418
      %v2215 = vpop.f32.mrf.mxu0
      %v2216 = vadd.f32 0.0, %v2215
      %v2217 = vpop.f32.mrf.mxu0
      %v2218 = vpop.f32.mrf.mxu0
      %v2219 = vadd.f32 0.0, %v2218
      %v2220 = vpop.f32.mrf.mxu0
      %2221 = vmatprep.mubr.bf16.mxu0 0
      %2222 = vmatmul.mubr.bf16.gmra.mxu0 %v2064
      %v2223 = vpop.f32.mrf.mxu0
      %v2224 = vadd.f32 0.0, %v2223
      %v2225 = vpop.f32.mrf.mxu0
      %v2226 = vpop.f32.mrf.mxu0
      %v2227 = vadd.f32 0.0, %v2226
      %v2228 = vpop.f32.mrf.mxu0
      %2229 = vdwg.mxu0
      %v2230 = vadd.f32 %v2018, %v2104
      %v2231 = vadd.f32 %v2019, %v2107
      %v2232 = vadd.f32 %v2020, %v2112
      %v2233 = vadd.f32 %v2021, %v2115
      %v2234 = vadd.f32 %v2022, %v2120
      %v2235 = vadd.f32 %v2023, %v2123
      %v2236 = vadd.f32 %v2024, %v2128
      %v2237 = vadd.f32 %v2025, %v2131
      %v2238 = vadd.f32 %v2026, %v2136
      %v2239 = vadd.f32 %v2027, %v2139
      %v2240 = vadd.f32 %v2028, %v2144
      %v2241 = vadd.f32 %v2029, %v2147
      %v2242 = vadd.f32 %v2030, %v2152
      %v2243 = vadd.f32 %v2031, %v2155
      %v2244 = vadd.f32 %v2032, %v2160
      %v2245 = vadd.f32 %v2033, %v2163
      %v2246 = vadd.f32 %v2034, %v2168
      %v2247 = vadd.f32 %v2035, %v2171
      %v2248 = vadd.f32 %v2036, %v2176
      %v2249 = vadd.f32 %v2037, %v2179
      %v2250 = vadd.f32 %v2038, %v2184
      %v2251 = vadd.f32 %v2039, %v2187
      %v2252 = vadd.f32 %v2040, %v2192
      %v2253 = vadd.f32 %v2041, %v2195
      %v2254 = vadd.f32 %v2042, %v2200
      %v2255 = vadd.f32 %v2043, %v2203
      %v2256 = vadd.f32 %v2044, %v2208
      %v2257 = vadd.f32 %v2045, %v2211
      %v2258 = vadd.f32 %v2046, %v2216
      %v2259 = vadd.f32 %v2047, %v2219
      %v2260 = vadd.f32 %v2048, %v2224
      %v2261 = vadd.f32 %v2049, %v2227
      %s2262 = scalar_lea.vmem %s1, 12
      %v2263 = vld [vmem:[%s2262] sm:$0x3]
      %v2266 = vunpack.c.l.b16 %v244
      %v2267 = vunpack.c.l.b16 %v245
      %v2268 = vpack.c.b16 %v2267, %v2266
      %v2270 = vsel %vm685, %v2268, 0
      %v2273 = vsel %vm734, %v2263, 0
      %2275 = vmatprep.subr.bf16.mxu0 0
      %2276 = vmatpush1.bf16.msra.mxu0 0
      %2277 = vmatprep.subr.bf16.mxu0 0
      %2278 = vmatpush1.bf16.msra.mxu0 0
      %2279 = vmatprep.subr.bf16.mxu0 0
      %2280 = vmatpush1.bf16.msra.mxu0 0
      %2281 = vmatprep.subr.bf16.mxu0 0
      %2282 = vmatpush1.bf16.msra.mxu0 0
      %2283 = vmatprep.subr.bf16.mxu0 0
      %2284 = vmatpush1.bf16.msra.mxu0 0
      %2285 = vmatprep.subr.bf16.mxu0 0
      %2286 = vmatpush1.bf16.msra.mxu0 0
      %2287 = vmatprep.subr.bf16.mxu0 0
      %2288 = vmatpush1.bf16.msra.mxu0 0
      %2289 = vmatprep.subr.bf16.mxu0 0
      %2290 = vmatpush1.bf16.msra.mxu0 %v2273
      %2291 = vmatprep.subr.bf16.mxu0 0
      %2292 = vmatpush2.bf16.msra.mxu0 0
      %2293 = vmatprep.subr.bf16.mxu0 0
      %2294 = vmatpush2.bf16.msra.mxu0 0
      %2295 = vmatprep.subr.bf16.mxu0 0
      %2296 = vmatpush2.bf16.msra.mxu0 0
      %2297 = vmatprep.subr.bf16.mxu0 0
      %2298 = vmatpush2.bf16.msra.mxu0 0
      %2299 = vmatprep.subr.bf16.mxu0 0
      %2300 = vmatpush2.bf16.msra.mxu0 0
      %2301 = vmatprep.subr.bf16.mxu0 0
      %2302 = vmatpush2.bf16.msra.mxu0 0
      %2303 = vmatprep.subr.bf16.mxu0 0
      %2304 = vmatpush2.bf16.msra.mxu0 0
      %2305 = vmatprep.subr.bf16.mxu0 0
      %2306 = vmatpush2.bf16.msra.mxu0 0
      %2307 = vmatprep.mubr.bf16.mxu0 0
      %2308 = vmatmul.mubr.bf16.gmra.mxu0 %v986
      %v2309 = vpop.f32.mrf.mxu0
      %v2310 = vadd.f32 0.0, %v2309
      %v2311 = vpop.f32.mrf.mxu0
      %v2312 = vpop.f32.mrf.mxu0
      %v2313 = vadd.f32 0.0, %v2312
      %v2314 = vpop.f32.mrf.mxu0
      %2315 = vmatprep.mubr.bf16.mxu0 0
      %2316 = vmatmul.mubr.bf16.gmra.mxu0 %v989
      %v2317 = vpop.f32.mrf.mxu0
      %v2318 = vadd.f32 0.0, %v2317
      %v2319 = vpop.f32.mrf.mxu0
      %v2320 = vpop.f32.mrf.mxu0
      %v2321 = vadd.f32 0.0, %v2320
      %v2322 = vpop.f32.mrf.mxu0
      %2323 = vmatprep.mubr.bf16.mxu0 0
      %2324 = vmatmul.mubr.bf16.gmra.mxu0 %v992
      %v2325 = vpop.f32.mrf.mxu0
      %v2326 = vadd.f32 0.0, %v2325
      %v2327 = vpop.f32.mrf.mxu0
      %v2328 = vpop.f32.mrf.mxu0
      %v2329 = vadd.f32 0.0, %v2328
      %v2330 = vpop.f32.mrf.mxu0
      %2331 = vmatprep.mubr.bf16.mxu0 0
      %2332 = vmatmul.mubr.bf16.gmra.mxu0 %v995
      %v2333 = vpop.f32.mrf.mxu0
      %v2334 = vadd.f32 0.0, %v2333
      %v2335 = vpop.f32.mrf.mxu0
      %v2336 = vpop.f32.mrf.mxu0
      %v2337 = vadd.f32 0.0, %v2336
      %v2338 = vpop.f32.mrf.mxu0
      %2339 = vmatprep.mubr.bf16.mxu0 0
      %2340 = vmatmul.mubr.bf16.gmra.mxu0 %v998
      %v2341 = vpop.f32.mrf.mxu0
      %v2342 = vadd.f32 0.0, %v2341
      %v2343 = vpop.f32.mrf.mxu0
      %v2344 = vpop.f32.mrf.mxu0
      %v2345 = vadd.f32 0.0, %v2344
      %v2346 = vpop.f32.mrf.mxu0
      %2347 = vmatprep.mubr.bf16.mxu0 0
      %2348 = vmatmul.mubr.bf16.gmra.mxu0 %v1001
      %v2349 = vpop.f32.mrf.mxu0
      %v2350 = vadd.f32 0.0, %v2349
      %v2351 = vpop.f32.mrf.mxu0
      %v2352 = vpop.f32.mrf.mxu0
      %v2353 = vadd.f32 0.0, %v2352
      %v2354 = vpop.f32.mrf.mxu0
      %2355 = vmatprep.mubr.bf16.mxu0 0
      %2356 = vmatmul.mubr.bf16.gmra.mxu0 %v1004
      %v2357 = vpop.f32.mrf.mxu0
      %v2358 = vadd.f32 0.0, %v2357
      %v2359 = vpop.f32.mrf.mxu0
      %v2360 = vpop.f32.mrf.mxu0
      %v2361 = vadd.f32 0.0, %v2360
      %v2362 = vpop.f32.mrf.mxu0
      %2363 = vmatprep.mubr.bf16.mxu0 0
      %2364 = vmatmul.mubr.bf16.gmra.mxu0 %v1007
      %v2365 = vpop.f32.mrf.mxu0
      %v2366 = vadd.f32 0.0, %v2365
      %v2367 = vpop.f32.mrf.mxu0
      %v2368 = vpop.f32.mrf.mxu0
      %v2369 = vadd.f32 0.0, %v2368
      %v2370 = vpop.f32.mrf.mxu0
      %2371 = vmatprep.mubr.bf16.mxu0 0
      %2372 = vmatmul.mubr.bf16.gmra.mxu0 %v1010
      %v2373 = vpop.f32.mrf.mxu0
      %v2374 = vadd.f32 0.0, %v2373
      %v2375 = vpop.f32.mrf.mxu0
      %v2376 = vpop.f32.mrf.mxu0
      %v2377 = vadd.f32 0.0, %v2376
      %v2378 = vpop.f32.mrf.mxu0
      %2379 = vmatprep.mubr.bf16.mxu0 0
      %2380 = vmatmul.mubr.bf16.gmra.mxu0 %v1013
      %v2381 = vpop.f32.mrf.mxu0
      %v2382 = vadd.f32 0.0, %v2381
      %v2383 = vpop.f32.mrf.mxu0
      %v2384 = vpop.f32.mrf.mxu0
      %v2385 = vadd.f32 0.0, %v2384
      %v2386 = vpop.f32.mrf.mxu0
      %2387 = vmatprep.mubr.bf16.mxu0 0
      %2388 = vmatmul.mubr.bf16.gmra.mxu0 %v1016
      %v2389 = vpop.f32.mrf.mxu0
      %v2390 = vadd.f32 0.0, %v2389
      %v2391 = vpop.f32.mrf.mxu0
      %v2392 = vpop.f32.mrf.mxu0
      %v2393 = vadd.f32 0.0, %v2392
      %v2394 = vpop.f32.mrf.mxu0
      %2395 = vmatprep.mubr.bf16.mxu0 0
      %2396 = vmatmul.mubr.bf16.gmra.mxu0 %v1019
      %v2397 = vpop.f32.mrf.mxu0
      %v2398 = vadd.f32 0.0, %v2397
      %v2399 = vpop.f32.mrf.mxu0
      %v2400 = vpop.f32.mrf.mxu0
      %v2401 = vadd.f32 0.0, %v2400
      %v2402 = vpop.f32.mrf.mxu0
      %2403 = vmatprep.mubr.bf16.mxu0 0
      %2404 = vmatmul.mubr.bf16.gmra.mxu0 %v1022
      %v2405 = vpop.f32.mrf.mxu0
      %v2406 = vadd.f32 0.0, %v2405
      %v2407 = vpop.f32.mrf.mxu0
      %v2408 = vpop.f32.mrf.mxu0
      %v2409 = vadd.f32 0.0, %v2408
      %v2410 = vpop.f32.mrf.mxu0
      %2411 = vmatprep.mubr.bf16.mxu0 0
      %2412 = vmatmul.mubr.bf16.gmra.mxu0 %v1025
      %v2413 = vpop.f32.mrf.mxu0
      %v2414 = vadd.f32 0.0, %v2413
      %v2415 = vpop.f32.mrf.mxu0
      %v2416 = vpop.f32.mrf.mxu0
      %v2417 = vadd.f32 0.0, %v2416
      %v2418 = vpop.f32.mrf.mxu0
      %2419 = vmatprep.mubr.bf16.mxu0 0
      %2420 = vmatmul.mubr.bf16.gmra.mxu0 %v1624
      %v2421 = vpop.f32.mrf.mxu0
      %v2422 = vadd.f32 0.0, %v2421
      %v2423 = vpop.f32.mrf.mxu0
      %v2424 = vpop.f32.mrf.mxu0
      %v2425 = vadd.f32 0.0, %v2424
      %v2426 = vpop.f32.mrf.mxu0
      %2427 = vmatprep.mubr.bf16.mxu0 0
      %2428 = vmatmul.mubr.bf16.gmra.mxu0 %v2270
      %v2429 = vpop.f32.mrf.mxu0
      %v2430 = vadd.f32 0.0, %v2429
      %v2431 = vpop.f32.mrf.mxu0
      %v2432 = vpop.f32.mrf.mxu0
      %v2433 = vadd.f32 0.0, %v2432
      %v2434 = vpop.f32.mrf.mxu0
      %2435 = vdwg.mxu0
      %v2436 = vadd.f32 %v2230, %v2310
      %v2437 = vadd.f32 %v2231, %v2313
      %v2438 = vadd.f32 %v2232, %v2318
      %v2439 = vadd.f32 %v2233, %v2321
      %v2440 = vadd.f32 %v2234, %v2326
      %v2441 = vadd.f32 %v2235, %v2329
      %v2442 = vadd.f32 %v2236, %v2334
      %v2443 = vadd.f32 %v2237, %v2337
      %v2444 = vadd.f32 %v2238, %v2342
      %v2445 = vadd.f32 %v2239, %v2345
      %v2446 = vadd.f32 %v2240, %v2350
      %v2447 = vadd.f32 %v2241, %v2353
      %v2448 = vadd.f32 %v2242, %v2358
      %v2449 = vadd.f32 %v2243, %v2361
      %v2450 = vadd.f32 %v2244, %v2366
      %v2451 = vadd.f32 %v2245, %v2369
      %v2452 = vadd.f32 %v2246, %v2374
      %v2453 = vadd.f32 %v2247, %v2377
      %v2454 = vadd.f32 %v2248, %v2382
      %v2455 = vadd.f32 %v2249, %v2385
      %v2456 = vadd.f32 %v2250, %v2390
      %v2457 = vadd.f32 %v2251, %v2393
      %v2458 = vadd.f32 %v2252, %v2398
      %v2459 = vadd.f32 %v2253, %v2401
      %v2460 = vadd.f32 %v2254, %v2406
      %v2461 = vadd.f32 %v2255, %v2409
      %v2462 = vadd.f32 %v2256, %v2414
      %v2463 = vadd.f32 %v2257, %v2417
      %v2464 = vadd.f32 %v2258, %v2422
      %v2465 = vadd.f32 %v2259, %v2425
      %v2466 = vadd.f32 %v2260, %v2430
      %v2467 = vadd.f32 %v2261, %v2433
      %v2469 = vshrl.u32 %v244, 16
      %v2471 = vrot.slane %v2469, 4
      %v2472 = vshll.u32 %v244, 16
      %v2474 = vrot.slane %v2472, 5
      %v2475 = vor.u32 %v2471, %v2474
      %v2476 = vrot.slane %v2475, 4
      %v2478 = vshll.u32 %v245, 16
      %v2480 = vrot.slane %v2478, 5
      %v2481 = vsel %vm250, %v2476, %v2480
      %v2482 = vshrl.u32 %v245, 16
      %v2484 = vrot.slane %v2482, 4
      %v2485 = vor.u32 %v2484, %v2480
      %v2486 = vrot.slane %v2485, 4
      %v2488 = vshll.u32 %v246, 16
      %v2490 = vrot.slane %v2488, 5
      %v2491 = vsel %vm250, %v2486, %v2490
      %s2492 = scalar_lea.vmem %s1, 14
      %v2493 = vld [vmem:[%s2492] sm:$0x3]
      %v2494 = vunpack.c.l.b16 %v2481
      %v2495 = vunpack.c.l.b16 %v2491
      %v2496 = vpack.c.b16 %v2495, %v2494
      %v2498 = vsel %vm685, %v2496, 0
      %v2501 = vsel %vm734, %v2493, 0
      %2503 = vmatprep.subr.bf16.mxu0 0
      %2504 = vmatpush1.bf16.msra.mxu0 0
      %2505 = vmatprep.subr.bf16.mxu0 0
      %2506 = vmatpush1.bf16.msra.mxu0 0
      %2507 = vmatprep.subr.bf16.mxu0 0
      %2508 = vmatpush1.bf16.msra.mxu0 0
      %2509 = vmatprep.subr.bf16.mxu0 0
      %2510 = vmatpush1.bf16.msra.mxu0 0
      %2511 = vmatprep.subr.bf16.mxu0 0
      %2512 = vmatpush1.bf16.msra.mxu0 0
      %2513 = vmatprep.subr.bf16.mxu0 0
      %2514 = vmatpush1.bf16.msra.mxu0 0
      %2515 = vmatprep.subr.bf16.mxu0 0
      %2516 = vmatpush1.bf16.msra.mxu0 0
      %2517 = vmatprep.subr.bf16.mxu0 0
      %2518 = vmatpush1.bf16.msra.mxu0 %v2501
      %2519 = vmatprep.subr.bf16.mxu0 0
      %2520 = vmatpush2.bf16.msra.mxu0 0
      %2521 = vmatprep.subr.bf16.mxu0 0
      %2522 = vmatpush2.bf16.msra.mxu0 0
      %2523 = vmatprep.subr.bf16.mxu0 0
      %2524 = vmatpush2.bf16.msra.mxu0 0
      %2525 = vmatprep.subr.bf16.mxu0 0
      %2526 = vmatpush2.bf16.msra.mxu0 0
      %2527 = vmatprep.subr.bf16.mxu0 0
      %2528 = vmatpush2.bf16.msra.mxu0 0
      %2529 = vmatprep.subr.bf16.mxu0 0
      %2530 = vmatpush2.bf16.msra.mxu0 0
      %2531 = vmatprep.subr.bf16.mxu0 0
      %2532 = vmatpush2.bf16.msra.mxu0 0
      %2533 = vmatprep.subr.bf16.mxu0 0
      %2534 = vmatpush2.bf16.msra.mxu0 0
      %2535 = vmatprep.mubr.bf16.mxu0 0
      %2536 = vmatmul.mubr.bf16.gmra.mxu0 %v693
      %v2537 = vpop.f32.mrf.mxu0
      %v2538 = vadd.f32 0.0, %v2537
      %v2539 = vpop.f32.mrf.mxu0
      %v2540 = vpop.f32.mrf.mxu0
      %v2541 = vadd.f32 0.0, %v2540
      %v2542 = vpop.f32.mrf.mxu0
      %2543 = vmatprep.mubr.bf16.mxu0 0
      %2544 = vmatmul.mubr.bf16.gmra.mxu0 %v696
      %v2545 = vpop.f32.mrf.mxu0
      %v2546 = vadd.f32 0.0, %v2545
      %v2547 = vpop.f32.mrf.mxu0
      %v2548 = vpop.f32.mrf.mxu0
      %v2549 = vadd.f32 0.0, %v2548
      %v2550 = vpop.f32.mrf.mxu0
      %2551 = vmatprep.mubr.bf16.mxu0 0
      %2552 = vmatmul.mubr.bf16.gmra.mxu0 %v699
      %v2553 = vpop.f32.mrf.mxu0
      %v2554 = vadd.f32 0.0, %v2553
      %v2555 = vpop.f32.mrf.mxu0
      %v2556 = vpop.f32.mrf.mxu0
      %v2557 = vadd.f32 0.0, %v2556
      %v2558 = vpop.f32.mrf.mxu0
      %2559 = vmatprep.mubr.bf16.mxu0 0
      %2560 = vmatmul.mubr.bf16.gmra.mxu0 %v702
      %v2561 = vpop.f32.mrf.mxu0
      %v2562 = vadd.f32 0.0, %v2561
      %v2563 = vpop.f32.mrf.mxu0
      %v2564 = vpop.f32.mrf.mxu0
      %v2565 = vadd.f32 0.0, %v2564
      %v2566 = vpop.f32.mrf.mxu0
      %2567 = vmatprep.mubr.bf16.mxu0 0
      %2568 = vmatmul.mubr.bf16.gmra.mxu0 %v705
      %v2569 = vpop.f32.mrf.mxu0
      %v2570 = vadd.f32 0.0, %v2569
      %v2571 = vpop.f32.mrf.mxu0
      %v2572 = vpop.f32.mrf.mxu0
      %v2573 = vadd.f32 0.0, %v2572
      %v2574 = vpop.f32.mrf.mxu0
      %2575 = vmatprep.mubr.bf16.mxu0 0
      %2576 = vmatmul.mubr.bf16.gmra.mxu0 %v708
      %v2577 = vpop.f32.mrf.mxu0
      %v2578 = vadd.f32 0.0, %v2577
      %v2579 = vpop.f32.mrf.mxu0
      %v2580 = vpop.f32.mrf.mxu0
      %v2581 = vadd.f32 0.0, %v2580
      %v2582 = vpop.f32.mrf.mxu0
      %2583 = vmatprep.mubr.bf16.mxu0 0
      %2584 = vmatmul.mubr.bf16.gmra.mxu0 %v711
      %v2585 = vpop.f32.mrf.mxu0
      %v2586 = vadd.f32 0.0, %v2585
      %v2587 = vpop.f32.mrf.mxu0
      %v2588 = vpop.f32.mrf.mxu0
      %v2589 = vadd.f32 0.0, %v2588
      %v2590 = vpop.f32.mrf.mxu0
      %2591 = vmatprep.mubr.bf16.mxu0 0
      %2592 = vmatmul.mubr.bf16.gmra.mxu0 %v714
      %v2593 = vpop.f32.mrf.mxu0
      %v2594 = vadd.f32 0.0, %v2593
      %v2595 = vpop.f32.mrf.mxu0
      %v2596 = vpop.f32.mrf.mxu0
      %v2597 = vadd.f32 0.0, %v2596
      %v2598 = vpop.f32.mrf.mxu0
      %2599 = vmatprep.mubr.bf16.mxu0 0
      %2600 = vmatmul.mubr.bf16.gmra.mxu0 %v717
      %v2601 = vpop.f32.mrf.mxu0
      %v2602 = vadd.f32 0.0, %v2601
      %v2603 = vpop.f32.mrf.mxu0
      %v2604 = vpop.f32.mrf.mxu0
      %v2605 = vadd.f32 0.0, %v2604
      %v2606 = vpop.f32.mrf.mxu0
      %2607 = vmatprep.mubr.bf16.mxu0 0
      %2608 = vmatmul.mubr.bf16.gmra.mxu0 %v720
      %v2609 = vpop.f32.mrf.mxu0
      %v2610 = vadd.f32 0.0, %v2609
      %v2611 = vpop.f32.mrf.mxu0
      %v2612 = vpop.f32.mrf.mxu0
      %v2613 = vadd.f32 0.0, %v2612
      %v2614 = vpop.f32.mrf.mxu0
      %2615 = vmatprep.mubr.bf16.mxu0 0
      %2616 = vmatmul.mubr.bf16.gmra.mxu0 %v723
      %v2617 = vpop.f32.mrf.mxu0
      %v2618 = vadd.f32 0.0, %v2617
      %v2619 = vpop.f32.mrf.mxu0
      %v2620 = vpop.f32.mrf.mxu0
      %v2621 = vadd.f32 0.0, %v2620
      %v2622 = vpop.f32.mrf.mxu0
      %2623 = vmatprep.mubr.bf16.mxu0 0
      %2624 = vmatmul.mubr.bf16.gmra.mxu0 %v726
      %v2625 = vpop.f32.mrf.mxu0
      %v2626 = vadd.f32 0.0, %v2625
      %v2627 = vpop.f32.mrf.mxu0
      %v2628 = vpop.f32.mrf.mxu0
      %v2629 = vadd.f32 0.0, %v2628
      %v2630 = vpop.f32.mrf.mxu0
      %2631 = vmatprep.mubr.bf16.mxu0 0
      %2632 = vmatmul.mubr.bf16.gmra.mxu0 %v729
      %v2633 = vpop.f32.mrf.mxu0
      %v2634 = vadd.f32 0.0, %v2633
      %v2635 = vpop.f32.mrf.mxu0
      %v2636 = vpop.f32.mrf.mxu0
      %v2637 = vadd.f32 0.0, %v2636
      %v2638 = vpop.f32.mrf.mxu0
      %2639 = vmatprep.mubr.bf16.mxu0 0
      %2640 = vmatmul.mubr.bf16.gmra.mxu0 %v732
      %v2641 = vpop.f32.mrf.mxu0
      %v2642 = vadd.f32 0.0, %v2641
      %v2643 = vpop.f32.mrf.mxu0
      %v2644 = vpop.f32.mrf.mxu0
      %v2645 = vadd.f32 0.0, %v2644
      %v2646 = vpop.f32.mrf.mxu0
      %2647 = vmatprep.mubr.bf16.mxu0 0
      %2648 = vmatmul.mubr.bf16.gmra.mxu0 %v1852
      %v2649 = vpop.f32.mrf.mxu0
      %v2650 = vadd.f32 0.0, %v2649
      %v2651 = vpop.f32.mrf.mxu0
      %v2652 = vpop.f32.mrf.mxu0
      %v2653 = vadd.f32 0.0, %v2652
      %v2654 = vpop.f32.mrf.mxu0
      %2655 = vmatprep.mubr.bf16.mxu0 0
      %2656 = vmatmul.mubr.bf16.gmra.mxu0 %v2498
      %v2657 = vpop.f32.mrf.mxu0
      %v2658 = vadd.f32 0.0, %v2657
      %v2659 = vpop.f32.mrf.mxu0
      %v2660 = vpop.f32.mrf.mxu0
      %v2661 = vadd.f32 0.0, %v2660
      %v2662 = vpop.f32.mrf.mxu0
      %2663 = vdwg.mxu0
      %v2664 = vadd.f32 %v2436, %v2538
      %v2665 = vadd.f32 %v2437, %v2541
      %v2666 = vadd.f32 %v2438, %v2546
      %v2667 = vadd.f32 %v2439, %v2549
      %v2668 = vadd.f32 %v2440, %v2554
      %v2669 = vadd.f32 %v2441, %v2557
      %v2670 = vadd.f32 %v2442, %v2562
      %v2671 = vadd.f32 %v2443, %v2565
      %v2672 = vadd.f32 %v2444, %v2570
      %v2673 = vadd.f32 %v2445, %v2573
      %v2674 = vadd.f32 %v2446, %v2578
      %v2675 = vadd.f32 %v2447, %v2581
      %v2676 = vadd.f32 %v2448, %v2586
      %v2677 = vadd.f32 %v2449, %v2589
      %v2678 = vadd.f32 %v2450, %v2594
      %v2679 = vadd.f32 %v2451, %v2597
      %v2680 = vadd.f32 %v2452, %v2602
      %v2681 = vadd.f32 %v2453, %v2605
      %v2682 = vadd.f32 %v2454, %v2610
      %v2683 = vadd.f32 %v2455, %v2613
      %v2684 = vadd.f32 %v2456, %v2618
      %v2685 = vadd.f32 %v2457, %v2621
      %v2686 = vadd.f32 %v2458, %v2626
      %v2687 = vadd.f32 %v2459, %v2629
      %v2688 = vadd.f32 %v2460, %v2634
      %v2689 = vadd.f32 %v2461, %v2637
      %v2690 = vadd.f32 %v2462, %v2642
      %v2691 = vadd.f32 %v2463, %v2645
      %v2692 = vadd.f32 %v2464, %v2650
      %v2693 = vadd.f32 %v2465, %v2653
      %v2694 = vadd.f32 %v2466, %v2658
      %v2695 = vadd.f32 %v2467, %v2661
      %v2697 = vrot.slane %v244, 5
      %v2698 = vrot.slane %v2697, 4
      %v2699 = vrot.slane %v245, 5
      %v2700 = vsel %vm1209, %v2698, %v2699
      %v2701 = vrot.slane %v2699, 4
      %v2702 = vrot.slane %v246, 5
      %v2703 = vsel %vm1209, %v2701, %v2702
      %s2704 = scalar_lea.vmem %s1, 16
      %v2705 = vld [vmem:[%s2704] sm:$0x3]
      %v2706 = vunpack.c.l.b16 %v2700
      %v2707 = vunpack.c.l.b16 %v2703
      %v2708 = vpack.c.b16 %v2707, %v2706
      %v2710 = vsel %vm685, %v2708, 0
      %v2713 = vsel %vm734, %v2705, 0
      %2715 = vmatprep.subr.bf16.mxu0 0
      %2716 = vmatpush1.bf16.msra.mxu0 0
      %2717 = vmatprep.subr.bf16.mxu0 0
      %2718 = vmatpush1.bf16.msra.mxu0 0
      %2719 = vmatprep.subr.bf16.mxu0 0
      %2720 = vmatpush1.bf16.msra.mxu0 0
      %2721 = vmatprep.subr.bf16.mxu0 0
      %2722 = vmatpush1.bf16.msra.mxu0 0
      %2723 = vmatprep.subr.bf16.mxu0 0
      %2724 = vmatpush1.bf16.msra.mxu0 0
      %2725 = vmatprep.subr.bf16.mxu0 0
      %2726 = vmatpush1.bf16.msra.mxu0 0
      %2727 = vmatprep.subr.bf16.mxu0 0
      %2728 = vmatpush1.bf16.msra.mxu0 0
      %2729 = vmatprep.subr.bf16.mxu0 0
      %2730 = vmatpush1.bf16.msra.mxu0 %v2713
      %2731 = vmatprep.subr.bf16.mxu0 0
      %2732 = vmatpush2.bf16.msra.mxu0 0
      %2733 = vmatprep.subr.bf16.mxu0 0
      %2734 = vmatpush2.bf16.msra.mxu0 0
      %2735 = vmatprep.subr.bf16.mxu0 0
      %2736 = vmatpush2.bf16.msra.mxu0 0
      %2737 = vmatprep.subr.bf16.mxu0 0
      %2738 = vmatpush2.bf16.msra.mxu0 0
      %2739 = vmatprep.subr.bf16.mxu0 0
      %2740 = vmatpush2.bf16.msra.mxu0 0
      %2741 = vmatprep.subr.bf16.mxu0 0
      %2742 = vmatpush2.bf16.msra.mxu0 0
      %2743 = vmatprep.subr.bf16.mxu0 0
      %2744 = vmatpush2.bf16.msra.mxu0 0
      %2745 = vmatprep.subr.bf16.mxu0 0
      %2746 = vmatpush2.bf16.msra.mxu0 0
      %2747 = vmatprep.mubr.bf16.mxu0 0
      %2748 = vmatmul.mubr.bf16.gmra.mxu0 %v1379
      %v2749 = vpop.f32.mrf.mxu0
      %v2750 = vadd.f32 0.0, %v2749
      %v2751 = vpop.f32.mrf.mxu0
      %v2752 = vpop.f32.mrf.mxu0
      %v2753 = vadd.f32 0.0, %v2752
      %v2754 = vpop.f32.mrf.mxu0
      %2755 = vmatprep.mubr.bf16.mxu0 0
      %2756 = vmatmul.mubr.bf16.gmra.mxu0 %v1382
      %v2757 = vpop.f32.mrf.mxu0
      %v2758 = vadd.f32 0.0, %v2757
      %v2759 = vpop.f32.mrf.mxu0
      %v2760 = vpop.f32.mrf.mxu0
      %v2761 = vadd.f32 0.0, %v2760
      %v2762 = vpop.f32.mrf.mxu0
      %2763 = vmatprep.mubr.bf16.mxu0 0
      %2764 = vmatmul.mubr.bf16.gmra.mxu0 %v1385
      %v2765 = vpop.f32.mrf.mxu0
      %v2766 = vadd.f32 0.0, %v2765
      %v2767 = vpop.f32.mrf.mxu0
      %v2768 = vpop.f32.mrf.mxu0
      %v2769 = vadd.f32 0.0, %v2768
      %v2770 = vpop.f32.mrf.mxu0
      %2771 = vmatprep.mubr.bf16.mxu0 0
      %2772 = vmatmul.mubr.bf16.gmra.mxu0 %v1388
      %v2773 = vpop.f32.mrf.mxu0
      %v2774 = vadd.f32 0.0, %v2773
      %v2775 = vpop.f32.mrf.mxu0
      %v2776 = vpop.f32.mrf.mxu0
      %v2777 = vadd.f32 0.0, %v2776
      %v2778 = vpop.f32.mrf.mxu0
      %2779 = vmatprep.mubr.bf16.mxu0 0
      %2780 = vmatmul.mubr.bf16.gmra.mxu0 %v1391
      %v2781 = vpop.f32.mrf.mxu0
      %v2782 = vadd.f32 0.0, %v2781
      %v2783 = vpop.f32.mrf.mxu0
      %v2784 = vpop.f32.mrf.mxu0
      %v2785 = vadd.f32 0.0, %v2784
      %v2786 = vpop.f32.mrf.mxu0
      %2787 = vmatprep.mubr.bf16.mxu0 0
      %2788 = vmatmul.mubr.bf16.gmra.mxu0 %v1394
      %v2789 = vpop.f32.mrf.mxu0
      %v2790 = vadd.f32 0.0, %v2789
      %v2791 = vpop.f32.mrf.mxu0
      %v2792 = vpop.f32.mrf.mxu0
      %v2793 = vadd.f32 0.0, %v2792
      %v2794 = vpop.f32.mrf.mxu0
      %2795 = vmatprep.mubr.bf16.mxu0 0
      %2796 = vmatmul.mubr.bf16.gmra.mxu0 %v1397
      %v2797 = vpop.f32.mrf.mxu0
      %v2798 = vadd.f32 0.0, %v2797
      %v2799 = vpop.f32.mrf.mxu0
      %v2800 = vpop.f32.mrf.mxu0
      %v2801 = vadd.f32 0.0, %v2800
      %v2802 = vpop.f32.mrf.mxu0
      %2803 = vmatprep.mubr.bf16.mxu0 0
      %2804 = vmatmul.mubr.bf16.gmra.mxu0 %v1400
      %v2805 = vpop.f32.mrf.mxu0
      %v2806 = vadd.f32 0.0, %v2805
      %v2807 = vpop.f32.mrf.mxu0
      %v2808 = vpop.f32.mrf.mxu0
      %v2809 = vadd.f32 0.0, %v2808
      %v2810 = vpop.f32.mrf.mxu0
      %2811 = vmatprep.mubr.bf16.mxu0 0
      %2812 = vmatmul.mubr.bf16.gmra.mxu0 %v1403
      %v2813 = vpop.f32.mrf.mxu0
      %v2814 = vadd.f32 0.0, %v2813
      %v2815 = vpop.f32.mrf.mxu0
      %v2816 = vpop.f32.mrf.mxu0
      %v2817 = vadd.f32 0.0, %v2816
      %v2818 = vpop.f32.mrf.mxu0
      %2819 = vmatprep.mubr.bf16.mxu0 0
      %2820 = vmatmul.mubr.bf16.gmra.mxu0 %v1406
      %v2821 = vpop.f32.mrf.mxu0
      %v2822 = vadd.f32 0.0, %v2821
      %v2823 = vpop.f32.mrf.mxu0
      %v2824 = vpop.f32.mrf.mxu0
      %v2825 = vadd.f32 0.0, %v2824
      %v2826 = vpop.f32.mrf.mxu0
      %2827 = vmatprep.mubr.bf16.mxu0 0
      %2828 = vmatmul.mubr.bf16.gmra.mxu0 %v1409
      %v2829 = vpop.f32.mrf.mxu0
      %v2830 = vadd.f32 0.0, %v2829
      %v2831 = vpop.f32.mrf.mxu0
      %v2832 = vpop.f32.mrf.mxu0
      %v2833 = vadd.f32 0.0, %v2832
      %v2834 = vpop.f32.mrf.mxu0
      %2835 = vmatprep.mubr.bf16.mxu0 0
      %2836 = vmatmul.mubr.bf16.gmra.mxu0 %v1412
      %v2837 = vpop.f32.mrf.mxu0
      %v2838 = vadd.f32 0.0, %v2837
      %v2839 = vpop.f32.mrf.mxu0
      %v2840 = vpop.f32.mrf.mxu0
      %v2841 = vadd.f32 0.0, %v2840
      %v2842 = vpop.f32.mrf.mxu0
      %2843 = vmatprep.mubr.bf16.mxu0 0
      %2844 = vmatmul.mubr.bf16.gmra.mxu0 %v1415
      %v2845 = vpop.f32.mrf.mxu0
      %v2846 = vadd.f32 0.0, %v2845
      %v2847 = vpop.f32.mrf.mxu0
      %v2848 = vpop.f32.mrf.mxu0
      %v2849 = vadd.f32 0.0, %v2848
      %v2850 = vpop.f32.mrf.mxu0
      %2851 = vmatprep.mubr.bf16.mxu0 0
      %2852 = vmatmul.mubr.bf16.gmra.mxu0 %v1418
      %v2853 = vpop.f32.mrf.mxu0
      %v2854 = vadd.f32 0.0, %v2853
      %v2855 = vpop.f32.mrf.mxu0
      %v2856 = vpop.f32.mrf.mxu0
      %v2857 = vadd.f32 0.0, %v2856
      %v2858 = vpop.f32.mrf.mxu0
      %2859 = vmatprep.mubr.bf16.mxu0 0
      %2860 = vmatmul.mubr.bf16.gmra.mxu0 %v2064
      %v2861 = vpop.f32.mrf.mxu0
      %v2862 = vadd.f32 0.0, %v2861
      %v2863 = vpop.f32.mrf.mxu0
      %v2864 = vpop.f32.mrf.mxu0
      %v2865 = vadd.f32 0.0, %v2864
      %v2866 = vpop.f32.mrf.mxu0
      %2867 = vmatprep.mubr.bf16.mxu0 0
      %2868 = vmatmul.mubr.bf16.gmra.mxu0 %v2710
      %v2869 = vpop.f32.mrf.mxu0
      %v2870 = vadd.f32 0.0, %v2869
      %v2871 = vpop.f32.mrf.mxu0
      %v2872 = vpop.f32.mrf.mxu0
      %v2873 = vadd.f32 0.0, %v2872
      %v2874 = vpop.f32.mrf.mxu0
      %2875 = vdwg.mxu0
      %v2876 = vadd.f32 %v2664, %v2750
      %v2877 = vadd.f32 %v2665, %v2753
      %v2878 = vadd.f32 %v2666, %v2758
      %v2879 = vadd.f32 %v2667, %v2761
      %v2880 = vadd.f32 %v2668, %v2766
      %v2881 = vadd.f32 %v2669, %v2769
      %v2882 = vadd.f32 %v2670, %v2774
      %v2883 = vadd.f32 %v2671, %v2777
      %v2884 = vadd.f32 %v2672, %v2782
      %v2885 = vadd.f32 %v2673, %v2785
      %v2886 = vadd.f32 %v2674, %v2790
      %v2887 = vadd.f32 %v2675, %v2793
      %v2888 = vadd.f32 %v2676, %v2798
      %v2889 = vadd.f32 %v2677, %v2801
      %v2890 = vadd.f32 %v2678, %v2806
      %v2891 = vadd.f32 %v2679, %v2809
      %v2892 = vadd.f32 %v2680, %v2814
      %v2893 = vadd.f32 %v2681, %v2817
      %v2894 = vadd.f32 %v2682, %v2822
      %v2895 = vadd.f32 %v2683, %v2825
      %v2896 = vadd.f32 %v2684, %v2830
      %v2897 = vadd.f32 %v2685, %v2833
      %v2898 = vadd.f32 %v2686, %v2838
      %v2899 = vadd.f32 %v2687, %v2841
      %v2900 = vadd.f32 %v2688, %v2846
      %v2901 = vadd.f32 %v2689, %v2849
      %v2902 = vadd.f32 %v2690, %v2854
      %v2903 = vadd.f32 %v2691, %v2857
      %v2904 = vadd.f32 %v2692, %v2862
      %v2905 = vadd.f32 %v2693, %v2865
      %v2906 = vadd.f32 %v2694, %v2870
      %v2907 = vadd.f32 %v2695, %v2873
      // Predicated region
      $region37: #{conv_block_forward.1} parent=31 // pred_check
        %p2908 = pneg %p185
      $region38: #{conv_block_forward.1} parent=31 // pred_check_branch
        %2910 = sbr.rel (%p2908) target = $region40
      $region39: #{conv_block_forward.1} parent=31 // pred_region
        %v2911 = vld [vmem:[#allocation2] sm:$0x1]
        %v2912 = vadd.f32 %v2876, %v2877
        %v2913 = vadd.f32 %v2912, %v2878
        %v2914 = vadd.f32 %v2913, %v2879
        %v2915 = vadd.f32 %v2914, %v2880
        %v2916 = vadd.f32 %v2915, %v2881
        %v2917 = vadd.f32 %v2916, %v2882
        %v2918 = vadd.f32 %v2917, %v2883
        %v2919 = vadd.f32 %v2918, %v2884
        %v2920 = vadd.f32 %v2919, %v2885
        %v2921 = vadd.f32 %v2920, %v2886
        %v2922 = vadd.f32 %v2921, %v2887
        %v2923 = vadd.f32 %v2922, %v2888
        %v2924 = vadd.f32 %v2923, %v2889
        %v2925 = vadd.f32 %v2924, %v2890
        %v2926 = vadd.f32 %v2925, %v2891
        %v2927 = vadd.f32 %v2926, %v2892
        %v2928 = vadd.f32 %v2927, %v2893
        %v2929 = vadd.f32 %v2928, %v2894
        %v2930 = vadd.f32 %v2929, %v2895
        %v2931 = vadd.f32 %v2930, %v2896
        %v2932 = vadd.f32 %v2931, %v2897
        %v2933 = vadd.f32 %v2932, %v2898
        %v2934 = vadd.f32 %v2933, %v2899
        %v2935 = vadd.f32 %v2934, %v2900
        %v2936 = vadd.f32 %v2935, %v2901
        %v2937 = vadd.f32 %v2936, %v2902
        %v2938 = vadd.f32 %v2937, %v2903
        %v2939 = vadd.f32 %v2938, %v2904
        %v2940 = vadd.f32 %v2939, %v2905
        %v2941 = vadd.f32 %v2940, %v2906
        %v2942 = vadd.f32 %v2941, %v2907
        %v2943 = vrot.slane %v2942, 4
        %v2944 = vadd.f32 %v2942, %v2943
        %v2945 = vrot.slane %v2944, 2
        %v2946 = vadd.f32 %v2944, %v2945
        %v2947 = vrot.slane %v2946, 1
        %v2948 = vadd.f32 %v2946, %v2947
        %v2949 = vadd.f32 %v2911, %v2948
        %2950 = vst [vmem:[#allocation2] sm:$0x1] %v2949
        %v2951 = vld [vmem:[#allocation3] sm:$0x1]
        %v2952 = vmul.f32 %v2876, %v2876
        %v2953 = vmul.f32 %v2877, %v2877
        %v2954 = vmul.f32 %v2878, %v2878
        %v2955 = vmul.f32 %v2879, %v2879
        %v2956 = vmul.f32 %v2880, %v2880
        %v2957 = vmul.f32 %v2881, %v2881
        %v2958 = vmul.f32 %v2882, %v2882
        %v2959 = vmul.f32 %v2883, %v2883
        %v2960 = vmul.f32 %v2884, %v2884
        %v2961 = vmul.f32 %v2885, %v2885
        %v2962 = vmul.f32 %v2886, %v2886
        %v2963 = vmul.f32 %v2887, %v2887
        %v2964 = vmul.f32 %v2888, %v2888
        %v2965 = vmul.f32 %v2889, %v2889
        %v2966 = vmul.f32 %v2890, %v2890
        %v2967 = vmul.f32 %v2891, %v2891
        %v2968 = vmul.f32 %v2892, %v2892
        %v2969 = vmul.f32 %v2893, %v2893
        %v2970 = vmul.f32 %v2894, %v2894
        %v2971 = vmul.f32 %v2895, %v2895
        %v2972 = vmul.f32 %v2896, %v2896
        %v2973 = vmul.f32 %v2897, %v2897
        %v2974 = vmul.f32 %v2898, %v2898
        %v2975 = vmul.f32 %v2899, %v2899
        %v2976 = vmul.f32 %v2900, %v2900
        %v2977 = vmul.f32 %v2901, %v2901
        %v2978 = vmul.f32 %v2902, %v2902
        %v2979 = vmul.f32 %v2903, %v2903
        %v2980 = vmul.f32 %v2904, %v2904
        %v2981 = vmul.f32 %v2905, %v2905
        %v2982 = vmul.f32 %v2906, %v2906
        %v2983 = vmul.f32 %v2907, %v2907
        %v2984 = vadd.f32 %v2952, %v2953
        %v2985 = vadd.f32 %v2984, %v2954
        %v2986 = vadd.f32 %v2985, %v2955
        %v2987 = vadd.f32 %v2986, %v2956
        %v2988 = vadd.f32 %v2987, %v2957
        %v2989 = vadd.f32 %v2988, %v2958
        %v2990 = vadd.f32 %v2989, %v2959
        %v2991 = vadd.f32 %v2990, %v2960
        %v2992 = vadd.f32 %v2991, %v2961
        %v2993 = vadd.f32 %v2992, %v2962
        %v2994 = vadd.f32 %v2993, %v2963
        %v2995 = vadd.f32 %v2994, %v2964
        %v2996 = vadd.f32 %v2995, %v2965
        %v2997 = vadd.f32 %v2996, %v2966
        %v2998 = vadd.f32 %v2997, %v2967
        %v2999 = vadd.f32 %v2998, %v2968
        %v3000 = vadd.f32 %v2999, %v2969
        %v3001 = vadd.f32 %v3000, %v2970
        %v3002 = vadd.f32 %v3001, %v2971
        %v3003 = vadd.f32 %v3002, %v2972
        %v3004 = vadd.f32 %v3003, %v2973
        %v3005 = vadd.f32 %v3004, %v2974
        %v3006 = vadd.f32 %v3005, %v2975
        %v3007 = vadd.f32 %v3006, %v2976
        %v3008 = vadd.f32 %v3007, %v2977
        %v3009 = vadd.f32 %v3008, %v2978
        %v3010 = vadd.f32 %v3009, %v2979
        %v3011 = vadd.f32 %v3010, %v2980
        %v3012 = vadd.f32 %v3011, %v2981
        %v3013 = vadd.f32 %v3012, %v2982
        %v3014 = vadd.f32 %v3013, %v2983
        %v3015 = vrot.slane %v3014, 4
        %v3016 = vadd.f32 %v3014, %v3015
        %v3017 = vrot.slane %v3016, 2
        %v3018 = vadd.f32 %v3016, %v3017
        %v3019 = vrot.slane %v3018, 1
        %v3020 = vadd.f32 %v3018, %v3019
        %v3021 = vadd.f32 %v2951, %v3020
        %3022 = vst [vmem:[#allocation3] sm:$0x1] %v3021
        %3023 = vst [vmem:[%s182] sm:$0xff] %v2876
        %3024 = vst [vmem:[%s182 + $0x8] sm:$0xff] %v2877
        %3025 = vst [vmem:[%s182 + $0x10] sm:$0xff] %v2878
        %3026 = vst [vmem:[%s182 + $0x18] sm:$0xff] %v2879
        %3027 = vst [vmem:[%s182 + $0x20] sm:$0xff] %v2880
        %3028 = vst [vmem:[%s182 + $0x28] sm:$0xff] %v2881
        %3029 = vst [vmem:[%s182 + $0x30] sm:$0xff] %v2882
        %3030 = vst [vmem:[%s182 + $0x38] sm:$0xff] %v2883
        %3031 = vst [vmem:[%s182 + $0x40] sm:$0xff] %v2884
        %3032 = vst [vmem:[%s182 + $0x48] sm:$0xff] %v2885
        %3033 = vst [vmem:[%s182 + $0x50] sm:$0xff] %v2886
        %3034 = vst [vmem:[%s182 + $0x58] sm:$0xff] %v2887
        %3035 = vst [vmem:[%s182 + $0x60] sm:$0xff] %v2888
        %3036 = vst [vmem:[%s182 + $0x68] sm:$0xff] %v2889
        %3037 = vst [vmem:[%s182 + $0x70] sm:$0xff] %v2890
        %3038 = vst [vmem:[%s182 + $0x78] sm:$0xff] %v2891
        %3039 = vst [vmem:[%s182 + $0x80] sm:$0xff] %v2892
        %3040 = vst [vmem:[%s182 + $0x88] sm:$0xff] %v2893
        %3041 = vst [vmem:[%s182 + $0x90] sm:$0xff] %v2894
        %3042 = vst [vmem:[%s182 + $0x98] sm:$0xff] %v2895
        %3043 = vst [vmem:[%s182 + $0xa0] sm:$0xff] %v2896
        %3044 = vst [vmem:[%s182 + $0xa8] sm:$0xff] %v2897
        %3045 = vst [vmem:[%s182 + $0xb0] sm:$0xff] %v2898
        %3046 = vst [vmem:[%s182 + $0xb8] sm:$0xff] %v2899
        %3047 = vst [vmem:[%s182 + $0xc0] sm:$0xff] %v2900
        %3048 = vst [vmem:[%s182 + $0xc8] sm:$0xff] %v2901
        %3049 = vst [vmem:[%s182 + $0xd0] sm:$0xff] %v2902
        %3050 = vst [vmem:[%s182 + $0xd8] sm:$0xff] %v2903
        %3051 = vst [vmem:[%s182 + $0xe0] sm:$0xff] %v2904
        %3052 = vst [vmem:[%s182 + $0xe8] sm:$0xff] %v2905
        %3053 = vst [vmem:[%s182 + $0xf0] sm:$0xff] %v2906
        %3054 = vst [vmem:[%s182 + $0xf8] sm:$0xff] %v2907
      $region40: #{conv_block_forward.1} parent=31 // pred_fallthru
        _
      %p3055 = scmp.eq.s32.totalorder %s18, 1
      %p3056 = pnand %p3055, %p186
      %p3057 = pneg %p3056
      // Predicated region
      $region41: #{conv_block_forward.1} parent=31 // pred_check
        _
      $region42: #{conv_block_forward.1} parent=31 // pred_check_branch
        %3059 = sbr.rel (%p3056) target = $region44
      $region43: #{conv_block_forward.1} parent=31 // pred_region
        %v3060 = vld [vmem:[#allocation2] sm:$0x1]
        %v3061 = vmul.f32 %v3060, 0.001953125
        %v3062 = vld [vmem:[#allocation3] sm:$0x1]
        %v3063 = vmul.f32 %v3062, 0.001953125
        %v3064 = vmul.f32 %v3061, %v3061
        %v3065 = vsub.f32 %v3063, %v3064
        %3066 = vst [vmem:[#allocation2] sm:$0x1] %v3061
        %v3067 = vadd.f32 %v3065, 1e-05
        %v3068 = vrsqrt.pop %v3067
        %3069 = vst [vmem:[#allocation3] sm:$0x1] %v3068
      $region44: #{conv_block_forward.1} parent=31 // pred_fallthru
        _
      // Predicated region
      $region45: #{conv_block_forward.1} parent=31 // pred_check
        %p3070 = pneg %p3055
      $region46: #{conv_block_forward.1} parent=31 // pred_check_branch
        %3072 = sbr.rel (%p3070) target = $region48
      $region47: #{conv_block_forward.1} parent=31 // pred_region
        %v3073 = vld [vmem:[#allocation2] sm:$0x1]
        %v3075 = vlaneseq
        %v3076 = vshrl.u32 %v3075, 7
        %v3077 = vsub.s32 0, %v3076
        %v3078 = vrot.slane %v3073, %v3077
        %v3080 = vsub.f32 %v2876, %v3078
        %v3081 = vsub.f32 %v2877, %v3078
        %v3082 = vsub.f32 %v2878, %v3078
        %v3083 = vsub.f32 %v2879, %v3078
        %v3084 = vsub.f32 %v2880, %v3078
        %v3085 = vsub.f32 %v2881, %v3078
        %v3086 = vsub.f32 %v2882, %v3078
        %v3087 = vsub.f32 %v2883, %v3078
        %v3088 = vsub.f32 %v2884, %v3078
        %v3089 = vsub.f32 %v2885, %v3078
        %v3090 = vsub.f32 %v2886, %v3078
        %v3091 = vsub.f32 %v2887, %v3078
        %v3092 = vsub.f32 %v2888, %v3078
        %v3093 = vsub.f32 %v2889, %v3078
        %v3094 = vsub.f32 %v2890, %v3078
        %v3095 = vsub.f32 %v2891, %v3078
        %v3096 = vsub.f32 %v2892, %v3078
        %v3097 = vsub.f32 %v2893, %v3078
        %v3098 = vsub.f32 %v2894, %v3078
        %v3099 = vsub.f32 %v2895, %v3078
        %v3100 = vsub.f32 %v2896, %v3078
        %v3101 = vsub.f32 %v2897, %v3078
        %v3102 = vsub.f32 %v2898, %v3078
        %v3103 = vsub.f32 %v2899, %v3078
        %v3104 = vsub.f32 %v2900, %v3078
        %v3105 = vsub.f32 %v2901, %v3078
        %v3106 = vsub.f32 %v2902, %v3078
        %v3107 = vsub.f32 %v2903, %v3078
        %v3108 = vsub.f32 %v2904, %v3078
        %v3109 = vsub.f32 %v2905, %v3078
        %v3110 = vsub.f32 %v2906, %v3078
        %v3111 = vsub.f32 %v2907, %v3078
        %v3112 = vld [vmem:[#allocation3] sm:$0x1]
        %v3114 = vlaneseq
        %v3115 = vshrl.u32 %v3114, 7
        %v3116 = vsub.s32 0, %v3115
        %v3117 = vrot.slane %v3112, %v3116
        %v3119 = vmul.f32 %v3080, %v3117
        %v3120 = vmul.f32 %v3081, %v3117
        %v3121 = vmul.f32 %v3082, %v3117
        %v3122 = vmul.f32 %v3083, %v3117
        %v3123 = vmul.f32 %v3084, %v3117
        %v3124 = vmul.f32 %v3085, %v3117
        %v3125 = vmul.f32 %v3086, %v3117
        %v3126 = vmul.f32 %v3087, %v3117
        %v3127 = vmul.f32 %v3088, %v3117
        %v3128 = vmul.f32 %v3089, %v3117
        %v3129 = vmul.f32 %v3090, %v3117
        %v3130 = vmul.f32 %v3091, %v3117
        %v3131 = vmul.f32 %v3092, %v3117
        %v3132 = vmul.f32 %v3093, %v3117
        %v3133 = vmul.f32 %v3094, %v3117
        %v3134 = vmul.f32 %v3095, %v3117
        %v3135 = vmul.f32 %v3096, %v3117
        %v3136 = vmul.f32 %v3097, %v3117
        %v3137 = vmul.f32 %v3098, %v3117
        %v3138 = vmul.f32 %v3099, %v3117
        %v3139 = vmul.f32 %v3100, %v3117
        %v3140 = vmul.f32 %v3101, %v3117
        %v3141 = vmul.f32 %v3102, %v3117
        %v3142 = vmul.f32 %v3103, %v3117
        %v3143 = vmul.f32 %v3104, %v3117
        %v3144 = vmul.f32 %v3105, %v3117
        %v3145 = vmul.f32 %v3106, %v3117
        %v3146 = vmul.f32 %v3107, %v3117
        %v3147 = vmul.f32 %v3108, %v3117
        %v3148 = vmul.f32 %v3109, %v3117
        %v3149 = vmul.f32 %v3110, %v3117
        %v3150 = vmul.f32 %v3111, %v3117
        %v3151 = vld [vmem:[%s2] sm:$0x1]
        %v3153 = vlaneseq
        %v3154 = vshrl.u32 %v3153, 7
        %v3155 = vsub.s32 0, %v3154
        %v3156 = vrot.slane %v3151, %v3155
        %v3158 = vadd.f32 %v3119, %v3156
        %v3159 = vadd.f32 %v3120, %v3156
        %v3160 = vadd.f32 %v3121, %v3156
        %v3161 = vadd.f32 %v3122, %v3156
        %v3162 = vadd.f32 %v3123, %v3156
        %v3163 = vadd.f32 %v3124, %v3156
        %v3164 = vadd.f32 %v3125, %v3156
        %v3165 = vadd.f32 %v3126, %v3156
        %v3166 = vadd.f32 %v3127, %v3156
        %v3167 = vadd.f32 %v3128, %v3156
        %v3168 = vadd.f32 %v3129, %v3156
        %v3169 = vadd.f32 %v3130, %v3156
        %v3170 = vadd.f32 %v3131, %v3156
        %v3171 = vadd.f32 %v3132, %v3156
        %v3172 = vadd.f32 %v3133, %v3156
        %v3173 = vadd.f32 %v3134, %v3156
        %v3174 = vadd.f32 %v3135, %v3156
        %v3175 = vadd.f32 %v3136, %v3156
        %v3176 = vadd.f32 %v3137, %v3156
        %v3177 = vadd.f32 %v3138, %v3156
        %v3178 = vadd.f32 %v3139, %v3156
        %v3179 = vadd.f32 %v3140, %v3156
        %v3180 = vadd.f32 %v3141, %v3156
        %v3181 = vadd.f32 %v3142, %v3156
        %v3182 = vadd.f32 %v3143, %v3156
        %v3183 = vadd.f32 %v3144, %v3156
        %v3184 = vadd.f32 %v3145, %v3156
        %v3185 = vadd.f32 %v3146, %v3156
        %v3186 = vadd.f32 %v3147, %v3156
        %v3187 = vadd.f32 %v3148, %v3156
        %v3188 = vadd.f32 %v3149, %v3156
        %v3189 = vadd.f32 %v3150, %v3156
        %v3190 = vmax.f32 %v3158, 0.0
        %v3191 = vmax.f32 %v3159, 0.0
        %v3192 = vmax.f32 %v3160, 0.0
        %v3193 = vmax.f32 %v3161, 0.0
        %v3194 = vmax.f32 %v3162, 0.0
        %v3195 = vmax.f32 %v3163, 0.0
        %v3196 = vmax.f32 %v3164, 0.0
        %v3197 = vmax.f32 %v3165, 0.0
        %v3198 = vmax.f32 %v3166, 0.0
        %v3199 = vmax.f32 %v3167, 0.0
        %v3200 = vmax.f32 %v3168, 0.0
        %v3201 = vmax.f32 %v3169, 0.0
        %v3202 = vmax.f32 %v3170, 0.0
        %v3203 = vmax.f32 %v3171, 0.0
        %v3204 = vmax.f32 %v3172, 0.0
        %v3205 = vmax.f32 %v3173, 0.0
        %v3206 = vmax.f32 %v3174, 0.0
        %v3207 = vmax.f32 %v3175, 0.0
        %v3208 = vmax.f32 %v3176, 0.0
        %v3209 = vmax.f32 %v3177, 0.0
        %v3210 = vmax.f32 %v3178, 0.0
        %v3211 = vmax.f32 %v3179, 0.0
        %v3212 = vmax.f32 %v3180, 0.0
        %v3213 = vmax.f32 %v3181, 0.0
        %v3214 = vmax.f32 %v3182, 0.0
        %v3215 = vmax.f32 %v3183, 0.0
        %v3216 = vmax.f32 %v3184, 0.0
        %v3217 = vmax.f32 %v3185, 0.0
        %v3218 = vmax.f32 %v3186, 0.0
        %v3219 = vmax.f32 %v3187, 0.0
        %v3220 = vmax.f32 %v3188, 0.0
        %v3221 = vmax.f32 %v3189, 0.0
        %3222 = vst [vmem:[%s182] sm:$0xff] %v3190
        %3223 = vst [vmem:[%s182 + $0x8] sm:$0xff] %v3191
        %3224 = vst [vmem:[%s182 + $0x10] sm:$0xff] %v3192
        %3225 = vst [vmem:[%s182 + $0x18] sm:$0xff] %v3193
        %3226 = vst [vmem:[%s182 + $0x20] sm:$0xff] %v3194
        %3227 = vst [vmem:[%s182 + $0x28] sm:$0xff] %v3195
        %3228 = vst [vmem:[%s182 + $0x30] sm:$0xff] %v3196
        %3229 = vst [vmem:[%s182 + $0x38] sm:$0xff] %v3197
        %3230 = vst [vmem:[%s182 + $0x40] sm:$0xff] %v3198
        %3231 = vst [vmem:[%s182 + $0x48] sm:$0xff] %v3199
        %3232 = vst [vmem:[%s182 + $0x50] sm:$0xff] %v3200
        %3233 = vst [vmem:[%s182 + $0x58] sm:$0xff] %v3201
        %3234 = vst [vmem:[%s182 + $0x60] sm:$0xff] %v3202
        %3235 = vst [vmem:[%s182 + $0x68] sm:$0xff] %v3203
        %3236 = vst [vmem:[%s182 + $0x70] sm:$0xff] %v3204
        %3237 = vst [vmem:[%s182 + $0x78] sm:$0xff] %v3205
        %3238 = vst [vmem:[%s182 + $0x80] sm:$0xff] %v3206
        %3239 = vst [vmem:[%s182 + $0x88] sm:$0xff] %v3207
        %3240 = vst [vmem:[%s182 + $0x90] sm:$0xff] %v3208
        %3241 = vst [vmem:[%s182 + $0x98] sm:$0xff] %v3209
        %3242 = vst [vmem:[%s182 + $0xa0] sm:$0xff] %v3210
        %3243 = vst [vmem:[%s182 + $0xa8] sm:$0xff] %v3211
        %3244 = vst [vmem:[%s182 + $0xb0] sm:$0xff] %v3212
        %3245 = vst [vmem:[%s182 + $0xb8] sm:$0xff] %v3213
        %3246 = vst [vmem:[%s182 + $0xc0] sm:$0xff] %v3214
        %3247 = vst [vmem:[%s182 + $0xc8] sm:$0xff] %v3215
        %3248 = vst [vmem:[%s182 + $0xd0] sm:$0xff] %v3216
        %3249 = vst [vmem:[%s182 + $0xd8] sm:$0xff] %v3217
        %3250 = vst [vmem:[%s182 + $0xe0] sm:$0xff] %v3218
        %3251 = vst [vmem:[%s182 + $0xe8] sm:$0xff] %v3219
        %3252 = vst [vmem:[%s182 + $0xf0] sm:$0xff] %v3220
        %3253 = vst [vmem:[%s182 + $0xf8] sm:$0xff] %v3221
      $region48: #{conv_block_forward.1} parent=31 // pred_fallthru
        _
      %s3254 = smul.u32 32, %s19
      %p3255 = scmp.lt.s32.totalorder %s3254, 63
      %s3256 = scalar_select %p3255, %s3254, 63
      %s3257 = smul.addr %s3256, 8
      %s3258 = scalar_lea.vmem %s3, %s3257
      // Predicated region
      $region49: #{conv_block_forward.1} parent=31 // pred_check
        %p3259 = pneg %p112
      $region50: #{conv_block_forward.1} parent=31 // pred_check_branch
        %3261 = sbr.rel (%p3259) target = $region52
      $region51: #{conv_block_forward.1} parent=31 // pred_region
        %s3262 = smul.u32 32, %s19
      $region52: #{conv_block_forward.1} parent=31 // pred_fallthru
        _
    $region32: #{conv_block_forward.1} parent=5 // pred_fallthru
      _
    %p3263 = scmp.le.s32.totalorder 2, %s9
    // Predicated region
    $region53: #{conv_block_forward.1} parent=5 // pred_check
      %p3264 = pneg %p3263
    $region54: #{conv_block_forward.1} parent=5 // pred_check_branch
      %3266 = sbr.rel (%p3264) target = $region56
    $region55: #{conv_block_forward.1} parent=5 // pred_region
      %s3267 = ssub.s32 %s9, 2
      // Predicated region
      $region57: #{conv_block_forward.1} parent=55 // pred_check
        %p3268 = pneg %p118
      $region58: #{conv_block_forward.1} parent=55 // pred_check_branch
        %3270 = sbr.rel (%p3268) target = $region60
      $region59: #{conv_block_forward.1} parent=55 // pred_region
        %s3271 = smul.u32 32, %s21
        %p3272 = scmp.lt.s32.totalorder %s3271, 63
        %s3273 = scalar_select %p3272, %s3271, 63
        %s3274 = smul.addr %s3273, 8
        %s3275 = scalar_lea.vmem %s3, %s3274
      $region60: #{conv_block_forward.1} parent=55 // pred_fallthru
        _
    $region56: #{conv_block_forward.1} parent=5 // pred_fallthru
      _
  $region6: #{conv_block_forward.1} parent=0 // loop_footer
    %s13 = sadd.s32 1, %s9
  $region7: #{conv_block_forward.1} parent=0 // loop_footer_branch
    %8 = sbr.rel target = $region3
  $region8: #{conv_block_forward.1} parent=0 // loop_exit
    _

</llo_original>
